<compile_context>
chip_gen: v6e
topology: v6e:2x2x1
jax: 0.10.0
libtpu: 0.0.40
codegen_flags: <defaults>
</compile_context>

<pallas_src>
import jax
import jax.numpy as jnp
from jax.experimental import pallas as pl
from jax.experimental.pallas import tpu as pltpu

_LANE = 128
_EPS = 1e-5


def _make_kernel(H, W, Cp, fuse_dy):
    K = 3 * Cp
    HW = H * W
    HWP = (H + 2) * W
    inv_hw = 1.0 / float(HW)

    def conv3x3(flat_cat, w_ref):
        # flat_cat: ((H+2)*W, 3Cp) bf16, rows = h_pad*W + w, lanes dx-major.
        if fuse_dy:
            # Single MXU dot with N=3Cp (fills the 256-wide MXU on v6e/v7x),
            # then sum the three dy contributions at sublane-aligned row
            # offsets 0, W, 2W and lane offsets 0, Cp, 2Cp.
            p = jnp.dot(flat_cat, w_ref[...], preferred_element_type=jnp.float32)
            return (p[0:HW, 0:Cp]
                    + p[W:HW + W, Cp:2 * Cp]
                    + p[2 * W:HW + 2 * W, 2 * Cp:3 * Cp])
        w = w_ref[...]
        acc = jnp.dot(flat_cat[0:HW], w[0], preferred_element_type=jnp.float32)
        acc = acc + jnp.dot(flat_cat[W:HW + W], w[1],
                            preferred_element_type=jnp.float32)
        acc = acc + jnp.dot(flat_cat[2 * W:HW + 2 * W], w[2],
                            preferred_element_type=jnp.float32)
        return acc                                             # (H*W, Cp) f32

    def instance_norm(y, g_ref, be_ref):
        # Two-pass stats in f32 (no E[x^2]-E[x]^2 cancellation); (y - m) is
        # reused for the normalization so the extra pass is ~free.
        m = jnp.sum(y, axis=0, keepdims=True) * inv_hw
        d = y - m
        var = jnp.sum(d * d, axis=0, keepdims=True) * inv_hw
        return d * (jax.lax.rsqrt(var + _EPS) * g_ref[...]) + be_ref[...]

    def kernel(cat1_ref, res_ref, w1_ref, g1_ref, be1_ref,
               w2_ref, g2_ref, be2_ref, o_ref, cat2_ref):
        # cat1_ref: (1, H+2, W, 3Cp) bf16  dx-packed reflect-padded input
        # res_ref : (1, H, W, Cp)    f32   residual interior
        # w*_ref  : (3Cp, 3Cp) bf16 (fused) or (3, 3Cp, Cp) bf16
        # g/be    : (1, Cp) f32
        # o_ref   : (1, H, W, Cp) f32
        # cat2_ref: (H+2, W, 3Cp) bf16 scratch (dx-packed conv2 patches)

        # ---- conv1 -> IN -> ReLU ------------------------------------------
        cat1 = cat1_ref[0].reshape(HWP, K)
        y1 = instance_norm(conv3x3(cat1, w1_ref), g1_ref, be1_ref)
        y1 = jnp.maximum(y1, 0.0).reshape(H, W, Cp).astype(jnp.bfloat16)

        # ---- write reflect-padded, dx-packed conv2 patches into scratch ----
        # dx = 1 block: plain copy of y1.
        cat2_ref[1:H + 1, :, Cp:2 * Cp] = y1
        # dx = 0 block: left-shifted columns + reflected left edge.
        cat2_ref[1:H + 1, 1:W, 0:Cp] = y1[:, 0:W - 1, :]
        cat2_ref[1:H + 1, 0:1, 0:Cp] = y1[:, 1:2, :]
        # dx = 2 block: right-shifted columns + reflected right edge.
        cat2_ref[1:H + 1, 0:W - 1, 2 * Cp:3 * Cp] = y1[:, 1:W, :]
        cat2_ref[1:H + 1, W - 1:W, 2 * Cp:3 * Cp] = y1[:, W - 2:W - 1, :]
        # Row reflections (whole (W, 3Cp) tile copies).
        cat2_ref[0:1, :, :] = cat2_ref[2:3, :, :]
        cat2_ref[H + 1:H + 2, :, :] = cat2_ref[H - 1:H, :, :]

        # ---- conv2 -> IN ----------------------------------------------------
        cat2 = cat2_ref[...].reshape(HWP, K)
        y2 = instance_norm(conv3x3(cat2, w2_ref), g2_ref, be2_ref)

        # ---- residual add (f32) + final ReLU --------------------------------
        res = res_ref[0].reshape(HW, Cp)
        out = jnp.maximum(y2 + res, 0.0)
        o_ref[0] = out.reshape(H, W, Cp).astype(o_ref.dtype)

    return kernel


def residual_block(x_nchw, params, *, fuse_dy=None):
    """fast_NST ResidualBlock forward.  x_nchw: (N, C, H, W); PyTorch params."""
    N, C, H, W = x_nchw.shape
    if H < 2 or W < 2:
        raise ValueError("ReflectionPad2d(1) requires H >= 2 and W >= 2")
    if W % 8 != 0:
        # TODO(synk): support W % 8 != 0 by padding W and masking the norm stats.
        raise ValueError("W must be a multiple of 8 (TPU sublane tile)")

    if fuse_dy is None:
        # 256-wide MXU (v6e / v7x / newer): fuse the dy taps along the matmul
        # output axis.  128-wide MXU (<= v5): keep three Cp-wide dots.
        try:
            kind = jax.devices()[0].device_kind.lower()
        except Exception:
            kind = ""
        fuse_dy = not any(v in kind for v in ("v2", "v3", "v4", "v5"))

    Cp = ((C + _LANE - 1) // _LANE) * _LANE          # lane-dense channel count
    K = 3 * Cp

    x = jnp.transpose(x_nchw, (0, 2, 3, 1)).astype(jnp.float32)   # NCHW -> NHWC
    if Cp != C:
        x = jnp.pad(x, ((0, 0), (0, 0), (0, 0), (0, Cp - C)))
    xp = jnp.pad(x, ((0, 0), (1, 1), (1, 1), (0, 0)), mode="reflect")
    # dx-packed conv1 patches built once here (bf16 MXU feed, no in-kernel
    # misaligned W-slices / concats): cat1[n,h,w, dx*Cp + c] = xp[n, h, w+dx, c]
    cat1 = jnp.concatenate(
        [xp[:, :, 0:W, :], xp[:, :, 1:W + 1, :], xp[:, :, 2:W + 2, :]],
        axis=-1).astype(jnp.bfloat16)                # (N, H+2, W, 3Cp)

    def prep_w(w_oihw):
        # OIHW -> (dy, dx, Cin, Cout), zero-pad channels, rows dx-major so the
        # lane-packed patches contract against (3Cp, Cout) per dy tap.
        w = jnp.transpose(w_oihw.astype(jnp.float32), (2, 3, 1, 0))
        w = jnp.pad(w, ((0, 0), (0, 0), (0, Cp - C), (0, Cp - C)))
        w = w.reshape(3, K, Cp)
        if fuse_dy:
            w = jnp.concatenate([w[0], w[1], w[2]], axis=-1)      # (3Cp, 3Cp)
        return w.astype(jnp.bfloat16)

    def prep_vec(v, fill):
        v = jnp.pad(v.astype(jnp.float32), (0, Cp - C), constant_values=fill)
        return v.reshape(1, Cp)

    w1, w2 = prep_w(params["w1"]), prep_w(params["w2"])
    # Conv biases are intentionally dropped: a per-channel constant added
    # before InstanceNorm is exactly cancelled by the mean subtraction.
    g1, g2 = prep_vec(params["g1"], 1.0), prep_vec(params["g2"], 1.0)   # pad gamma
    be1, be2 = prep_vec(params["be1"], 0.0), prep_vec(params["be2"], 0.0)  # with 1,
    # beta with 0 so padded channels stay exactly zero.

    # --- VMEM budget (per grid step; BlockSpec I/O already double-buffered) --
    f32b, bf16b = 4, 2
    HWP = (H + 2) * W
    vmem_est = (2 * HWP * K * bf16b              # cat1 input block (dbuf)
                + 2 * H * W * Cp * f32b          # residual block (dbuf)
                + 2 * H * W * Cp * f32b          # output block (dbuf)
                + 2 * 2 * 9 * Cp * Cp * bf16b    # both conv weights (dbuf)
                + HWP * K * bf16b                # cat2 scratch
                + HWP * K * f32b                 # fused conv product
                + 4 * H * W * Cp * f32b)         # conv / norm f32 temporaries
    try:
        vmem_cap = int(pltpu.get_tpu_info().vmem_capacity_bytes)
    except Exception:
        vmem_cap = 64 * 2 ** 20                  # conservative (v7x per-TC)
    vmem_limit = min(max(vmem_est + (8 << 20), 32 << 20), int(0.9 * vmem_cap))
    if vmem_est > vmem_limit:
        # TODO(synk): H-tile with a two-phase InstanceNorm so production
        # spatial sizes fit v7x's 64 MiB VMEM (see module docstring).
        raise ValueError(
            f"per-image working set ({vmem_est} B) exceeds the VMEM budget "
            f"({vmem_limit} B of {vmem_cap} B); H-tiling not implemented yet")

    cost = pl.CostEstimate(
        flops=2 * 2 * 9 * N * H * W * Cp * Cp,
        transcendentals=2 * N * Cp,
        bytes_accessed=int(cat1.size * bf16b + 2 * N * H * W * Cp * f32b
                           + 2 * int(w1.size) * bf16b))

    w_spec = (pl.BlockSpec((K, K), lambda n: (0, 0)) if fuse_dy
              else pl.BlockSpec((3, K, Cp), lambda n: (0, 0, 0)))
    v_spec = pl.BlockSpec((1, Cp), lambda n: (0, 0))

    out_nhwc = pl.pallas_call(
        _make_kernel(H, W, Cp, fuse_dy),
        out_shape=jax.ShapeDtypeStruct((N, H, W, Cp), jnp.float32),
        grid=(N,),
        in_specs=[
            pl.BlockSpec((1, H + 2, W, K), lambda n: (n, 0, 0, 0)),   # cat1
            pl.BlockSpec((1, H, W, Cp), lambda n: (n, 0, 0, 0)),      # residual
            w_spec, v_spec, v_spec,                                   # conv1/in1
            w_spec, v_spec, v_spec,                                   # conv2/in2
        ],
        out_specs=pl.BlockSpec((1, H, W, Cp), lambda n: (n, 0, 0, 0)),
        scratch_shapes=[pltpu.VMEM((H + 2, W, K), jnp.bfloat16)],
        compiler_params=pltpu.CompilerParams(
            dimension_semantics=("parallel",),
            vmem_limit_bytes=vmem_limit),
        cost_estimate=cost,
    )(cat1, x, w1, g1, be1, w2, g2, be2)

    return jnp.transpose(out_nhwc[..., :C], (0, 3, 1, 2))       # NHWC -> NCHW


def _reference(x_nchw, params):
    """Pure-JAX reference.  Conv operands are quantized to bf16 exactly like the
    kernel's MXU feeds (f32 accumulation, f32 norm/elementwise math), so the
    comparison isolates kernel bugs from expected mixed-precision rounding."""
    x = jnp.transpose(x_nchw, (0, 2, 3, 1)).astype(jnp.float32)
    C = x.shape[-1]

    def conv(y, w_oihw, b):
        yp = jnp.pad(y, ((0, 0), (1, 1), (1, 1), (0, 0)), mode="reflect")
        w = jnp.transpose(w_oihw, (2, 3, 1, 0))                  # OIHW -> HWIO
        out = jax.lax.conv_general_dilated(
            yp.astype(jnp.bfloat16), w.astype(jnp.bfloat16), (1, 1), "VALID",
            dimension_numbers=("NHWC", "HWIO", "NHWC"),
            preferred_element_type=jnp.float32)
        return out + b.reshape(1, 1, 1, C).astype(jnp.float32)

    def inorm(y, g, be):
        m = jnp.mean(y, axis=(1, 2), keepdims=True)
        v = jnp.mean((y - m) ** 2, axis=(1, 2), keepdims=True)
        return ((y - m) * jax.lax.rsqrt(v + _EPS) * g.reshape(1, 1, 1, C)
                + be.reshape(1, 1, 1, C))

    out = jax.nn.relu(inorm(conv(x, params["w1"], params["b1"]),
                            params["g1"], params["be1"]))
    out = inorm(conv(out, params["w2"], params["b2"]),
                params["g2"], params["be2"])
    out = jax.nn.relu(out + x)
    return jnp.transpose(out, (0, 3, 1, 2))


if __name__ == "__main__":
    N, C, H, W = 2, 4, 16, 16
    key = jax.random.PRNGKey(0)
    ks = jax.random.split(key, 9)

    x = jax.random.normal(ks[0], (N, C, H, W), dtype=jnp.float32)
    params = {
        # Conv2d weights in PyTorch OIHW layout, biases (C,)
        "w1": jax.random.normal(ks[1], (C, C, 3, 3), jnp.float32) * 0.2,
        "b1": jax.random.normal(ks[2], (C,), jnp.float32) * 0.1,
        "w2": jax.random.normal(ks[3], (C, C, 3, 3), jnp.float32) * 0.2,
        "b2": jax.random.normal(ks[4], (C,), jnp.float32) * 0.1,
        # InstanceNorm2d affine params (weight/bias)
        "g1": 1.0 + 0.1 * jax.random.normal(ks[5], (C,), jnp.float32),
        "be1": 0.1 * jax.random.normal(ks[6], (C,), jnp.float32),
        "g2": 1.0 + 0.1 * jax.random.normal(ks[7], (C,), jnp.float32),
        "be2": 0.1 * jax.random.normal(ks[8], (C,), jnp.float32),
    }

    out = jax.block_until_ready(residual_block(x, params))
    ref = jax.block_until_ready(_reference(x, params))

    assert out.shape == (N, C, H, W), out.shape
    max_err = float(jnp.max(jnp.abs(out - ref)))
    assert jnp.allclose(out, ref, rtol=1e-3, atol=1e-3), max_err
    print("KERNEL_OK")
</pallas_src>

<mosaic_0001>
module attributes {stable_mosaic.version = 11 : i64} {
  func.func @kernel(%arg0: i32, %arg1: memref<1x18x16x384xbf16, #tpu.memory_space<vmem>>, %arg2: memref<1x16x16x128xf32, #tpu.memory_space<vmem>>, %arg3: memref<384x384xbf16, #tpu.memory_space<vmem>>, %arg4: memref<1x128xf32, #tpu.memory_space<vmem>>, %arg5: memref<1x128xf32, #tpu.memory_space<vmem>>, %arg6: memref<384x384xbf16, #tpu.memory_space<vmem>>, %arg7: memref<1x128xf32, #tpu.memory_space<vmem>>, %arg8: memref<1x128xf32, #tpu.memory_space<vmem>>, %arg9: memref<1x16x16x128xf32, #tpu.memory_space<vmem>>, %arg10: memref<18x16x384xbf16, #tpu.memory_space<vmem>>) attributes {dimension_semantics = [#tpu.dimension_semantics<parallel>], iteration_bounds = array<i64: 2>, scalar_prefetch = 0 : i64, scratch_operands = 1 : i64, tpu.core_type = #tpu.core_type<tc>, window_params = [{transform_indices = @transform_0, window_bounds = array<i64: 1, 18, 16, 384>}, {transform_indices = @transform_1, window_bounds = array<i64: 1, 16, 16, 128>}, {pipeline_mode = #tpu.pipeline_mode<synchronous>, transform_indices = @transform_2, window_bounds = array<i64: 384, 384>}, {pipeline_mode = #tpu.pipeline_mode<synchronous>, transform_indices = @transform_3, window_bounds = array<i64: 1, 128>}, {pipeline_mode = #tpu.pipeline_mode<synchronous>, transform_indices = @transform_4, window_bounds = array<i64: 1, 128>}, {pipeline_mode = #tpu.pipeline_mode<synchronous>, transform_indices = @transform_5, window_bounds = array<i64: 384, 384>}, {pipeline_mode = #tpu.pipeline_mode<synchronous>, transform_indices = @transform_6, window_bounds = array<i64: 1, 128>}, {pipeline_mode = #tpu.pipeline_mode<synchronous>, transform_indices = @transform_7, window_bounds = array<i64: 1, 128>}, {transform_indices = @transform_8, window_bounds = array<i64: 1, 16, 16, 128>}]} {
    %c0 = arith.constant 0 : index
    %c0_0 = arith.constant 0 : index
    %c0_1 = arith.constant 0 : index
    %c0_2 = arith.constant 0 : index
    %0 = vector.load %arg1[%c0, %c0_0, %c0_1, %c0_2] : memref<1x18x16x384xbf16, #tpu.memory_space<vmem>>, vector<1x18x16x384xbf16>
    %1 = vector.shape_cast %0 : vector<1x18x16x384xbf16> to vector<18x16x384xbf16>
    %2 = vector.shape_cast %1 : vector<18x16x384xbf16> to vector<288x384xbf16>
    %c0_3 = arith.constant 0 : index
    %c0_4 = arith.constant 0 : index
    %3 = vector.load %arg3[%c0_3, %c0_4] : memref<384x384xbf16, #tpu.memory_space<vmem>>, vector<384x384xbf16>
    %cst = arith.constant dense<0.000000e+00> : vector<288x384xf32>
    %4 = tpu.matmul %2, %3, %cst {dimension_numbers = #tpu.dot_dimension_numbers<[1], [0], [0], [1], [0, 0, 1, 1], [], []>} : vector<288x384xbf16>, vector<384x384xbf16>, vector<288x384xf32> -> vector<288x384xf32>
    %5 = vector.extract_strided_slice %4 {offsets = [0, 0], sizes = [256, 128], strides = [1, 1]} : vector<288x384xf32> to vector<256x128xf32>
    %6 = vector.extract_strided_slice %4 {offsets = [16, 128], sizes = [256, 128], strides = [1, 1]} : vector<288x384xf32> to vector<256x128xf32>
    %7 = arith.addf %5, %6 : vector<256x128xf32>
    %8 = vector.extract_strided_slice %4 {offsets = [32, 256], sizes = [256, 128], strides = [1, 1]} : vector<288x384xf32> to vector<256x128xf32>
    %9 = arith.addf %7, %8 : vector<256x128xf32>
    %cst_5 = arith.constant dense<0.000000e+00> : vector<128xf32>
    %10 = vector.multi_reduction <add>, %9, %cst_5 [0] : vector<256x128xf32> to vector<128xf32>
    %11 = vector.shape_cast %10 : vector<128xf32> to vector<1x128xf32>
    %cst_6 = arith.constant 3.906250e-03 : f32
    %12 = vector.broadcast %cst_6 : f32 to vector<1x128xf32>
    %13 = arith.mulf %11, %12 : vector<1x128xf32>
    %14 = vector.broadcast %13 : vector<1x128xf32> to vector<256x128xf32>
    %15 = arith.subf %9, %14 : vector<256x128xf32>
    %16 = arith.mulf %15, %15 : vector<256x128xf32>
    %cst_7 = arith.constant dense<0.000000e+00> : vector<128xf32>
    %17 = vector.multi_reduction <add>, %16, %cst_7 [0] : vector<256x128xf32> to vector<128xf32>
    %18 = vector.shape_cast %17 : vector<128xf32> to vector<1x128xf32>
    %cst_8 = arith.constant 3.906250e-03 : f32
    %19 = vector.broadcast %cst_8 : f32 to vector<1x128xf32>
    %20 = arith.mulf %18, %19 : vector<1x128xf32>
    %cst_9 = arith.constant 9.99999974E-6 : f32
    %21 = vector.broadcast %cst_9 : f32 to vector<1x128xf32>
    %22 = arith.addf %20, %21 : vector<1x128xf32>
    %23 = math.rsqrt %22 : vector<1x128xf32>
    %c0_10 = arith.constant 0 : index
    %c0_11 = arith.constant 0 : index
    %24 = vector.load %arg4[%c0_10, %c0_11] : memref<1x128xf32, #tpu.memory_space<vmem>>, vector<1x128xf32>
    %25 = arith.mulf %23, %24 : vector<1x128xf32>
    %26 = vector.broadcast %25 : vector<1x128xf32> to vector<256x128xf32>
    %27 = arith.mulf %15, %26 : vector<256x128xf32>
    %c0_12 = arith.constant 0 : index
    %c0_13 = arith.constant 0 : index
    %28 = vector.load %arg5[%c0_12, %c0_13] : memref<1x128xf32, #tpu.memory_space<vmem>>, vector<1x128xf32>
    %29 = vector.broadcast %28 : vector<1x128xf32> to vector<256x128xf32>
    %30 = arith.addf %27, %29 : vector<256x128xf32>
    %cst_14 = arith.constant 0.000000e+00 : f32
    %31 = vector.broadcast %cst_14 : f32 to vector<256x128xf32>
    %32 = arith.maximumf %30, %31 : vector<256x128xf32>
    %33 = vector.shape_cast %32 : vector<256x128xf32> to vector<16x16x128xf32>
    %34 = arith.truncf %33 : vector<16x16x128xf32> to vector<16x16x128xbf16>
    %c1 = arith.constant 1 : index
    %c0_15 = arith.constant 0 : index
    %c128 = arith.constant 128 : index
    %35 = vector.load %arg10[%c1, %c0_15, %c128] : memref<18x16x384xbf16, #tpu.memory_space<vmem>>, vector<16x16x128xbf16>
    tpu.vector_store %arg10[%c1, %c0_15, %c128], %34 {strides = array<i32>} : memref<18x16x384xbf16, #tpu.memory_space<vmem>>, vector<16x16x128xbf16>,
    %36 = vector.extract_strided_slice %34 {offsets = [0, 0, 0], sizes = [16, 15, 128], strides = [1, 1, 1]} : vector<16x16x128xbf16> to vector<16x15x128xbf16>
    %c1_16 = arith.constant 1 : index
    %c1_17 = arith.constant 1 : index
    %c0_18 = arith.constant 0 : index
    %37 = vector.load %arg10[%c1_16, %c1_17, %c0_18] : memref<18x16x384xbf16, #tpu.memory_space<vmem>>, vector<16x15x128xbf16>
    tpu.vector_store %arg10[%c1_16, %c1_17, %c0_18], %36 {strides = array<i32>} : memref<18x16x384xbf16, #tpu.memory_space<vmem>>, vector<16x15x128xbf16>,
    %38 = vector.extract_strided_slice %34 {offsets = [0, 1, 0], sizes = [16, 1, 128], strides = [1, 1, 1]} : vector<16x16x128xbf16> to vector<16x1x128xbf16>
    %c1_19 = arith.constant 1 : index
    %c0_20 = arith.constant 0 : index
    %c0_21 = arith.constant 0 : index
    %39 = vector.load %arg10[%c1_19, %c0_20, %c0_21] : memref<18x16x384xbf16, #tpu.memory_space<vmem>>, vector<16x1x128xbf16>
    tpu.vector_store %arg10[%c1_19, %c0_20, %c0_21], %38 {strides = array<i32>} : memref<18x16x384xbf16, #tpu.memory_space<vmem>>, vector<16x1x128xbf16>,
    %40 = vector.extract_strided_slice %34 {offsets = [0, 1, 0], sizes = [16, 15, 128], strides = [1, 1, 1]} : vector<16x16x128xbf16> to vector<16x15x128xbf16>
    %c1_22 = arith.constant 1 : index
    %c0_23 = arith.constant 0 : index
    %c256 = arith.constant 256 : index
    %41 = vector.load %arg10[%c1_22, %c0_23, %c256] : memref<18x16x384xbf16, #tpu.memory_space<vmem>>, vector<16x15x128xbf16>
    tpu.vector_store %arg10[%c1_22, %c0_23, %c256], %40 {strides = array<i32>} : memref<18x16x384xbf16, #tpu.memory_space<vmem>>, vector<16x15x128xbf16>,
    %42 = vector.extract_strided_slice %34 {offsets = [0, 14, 0], sizes = [16, 1, 128], strides = [1, 1, 1]} : vector<16x16x128xbf16> to vector<16x1x128xbf16>
    %c1_24 = arith.constant 1 : index
    %c15 = arith.constant 15 : index
    %c256_25 = arith.constant 256 : index
    %43 = vector.load %arg10[%c1_24, %c15, %c256_25] : memref<18x16x384xbf16, #tpu.memory_space<vmem>>, vector<16x1x128xbf16>
    tpu.vector_store %arg10[%c1_24, %c15, %c256_25], %42 {strides = array<i32>} : memref<18x16x384xbf16, #tpu.memory_space<vmem>>, vector<16x1x128xbf16>,
    %c2 = arith.constant 2 : index
    %c0_26 = arith.constant 0 : index
    %c0_27 = arith.constant 0 : index
    %44 = vector.load %arg10[%c2, %c0_26, %c0_27] : memref<18x16x384xbf16, #tpu.memory_space<vmem>>, vector<1x16x384xbf16>
    %c0_28 = arith.constant 0 : index
    %c0_29 = arith.constant 0 : index
    %c0_30 = arith.constant 0 : index
    %45 = vector.load %arg10[%c0_28, %c0_29, %c0_30] : memref<18x16x384xbf16, #tpu.memory_space<vmem>>, vector<1x16x384xbf16>
    tpu.vector_store %arg10[%c0_28, %c0_29, %c0_30], %44 {strides = array<i32>} : memref<18x16x384xbf16, #tpu.memory_space<vmem>>, vector<1x16x384xbf16>,
    %c15_31 = arith.constant 15 : index
    %c0_32 = arith.constant 0 : index
    %c0_33 = arith.constant 0 : index
    %46 = vector.load %arg10[%c15_31, %c0_32, %c0_33] : memref<18x16x384xbf16, #tpu.memory_space<vmem>>, vector<1x16x384xbf16>
    %c17 = arith.constant 17 : index
    %c0_34 = arith.constant 0 : index
    %c0_35 = arith.constant 0 : index
    %47 = vector.load %arg10[%c17, %c0_34, %c0_35] : memref<18x16x384xbf16, #tpu.memory_space<vmem>>, vector<1x16x384xbf16>
    tpu.vector_store %arg10[%c17, %c0_34, %c0_35], %46 {strides = array<i32>} : memref<18x16x384xbf16, #tpu.memory_space<vmem>>, vector<1x16x384xbf16>,
    %c0_36 = arith.constant 0 : index
    %c0_37 = arith.constant 0 : index
    %c0_38 = arith.constant 0 : index
    %48 = vector.load %arg10[%c0_36, %c0_37, %c0_38] : memref<18x16x384xbf16, #tpu.memory_space<vmem>>, vector<18x16x384xbf16>
    %49 = vector.shape_cast %48 : vector<18x16x384xbf16> to vector<288x384xbf16>
    %c0_39 = arith.constant 0 : index
    %c0_40 = arith.constant 0 : index
    %50 = vector.load %arg6[%c0_39, %c0_40] : memref<384x384xbf16, #tpu.memory_space<vmem>>, vector<384x384xbf16>
    %cst_41 = arith.constant dense<0.000000e+00> : vector<288x384xf32>
    %51 = tpu.matmul %49, %50, %cst_41 {dimension_numbers = #tpu.dot_dimension_numbers<[1], [0], [0], [1], [0, 0, 1, 1], [], []>} : vector<288x384xbf16>, vector<384x384xbf16>, vector<288x384xf32> -> vector<288x384xf32>
    %52 = vector.extract_strided_slice %51 {offsets = [0, 0], sizes = [256, 128], strides = [1, 1]} : vector<288x384xf32> to vector<256x128xf32>
    %53 = vector.extract_strided_slice %51 {offsets = [16, 128], sizes = [256, 128], strides = [1, 1]} : vector<288x384xf32> to vector<256x128xf32>
    %54 = arith.addf %52, %53 : vector<256x128xf32>
    %55 = vector.extract_strided_slice %51 {offsets = [32, 256], sizes = [256, 128], strides = [1, 1]} : vector<288x384xf32> to vector<256x128xf32>
    %56 = arith.addf %54, %55 : vector<256x128xf32>
    %cst_42 = arith.constant dense<0.000000e+00> : vector<128xf32>
    %57 = vector.multi_reduction <add>, %56, %cst_42 [0] : vector<256x128xf32> to vector<128xf32>
    %58 = vector.shape_cast %57 : vector<128xf32> to vector<1x128xf32>
    %cst_43 = arith.constant 3.906250e-03 : f32
    %59 = vector.broadcast %cst_43 : f32 to vector<1x128xf32>
    %60 = arith.mulf %58, %59 : vector<1x128xf32>
    %61 = vector.broadcast %60 : vector<1x128xf32> to vector<256x128xf32>
    %62 = arith.subf %56, %61 : vector<256x128xf32>
    %63 = arith.mulf %62, %62 : vector<256x128xf32>
    %cst_44 = arith.constant dense<0.000000e+00> : vector<128xf32>
    %64 = vector.multi_reduction <add>, %63, %cst_44 [0] : vector<256x128xf32> to vector<128xf32>
    %65 = vector.shape_cast %64 : vector<128xf32> to vector<1x128xf32>
    %cst_45 = arith.constant 3.906250e-03 : f32
    %66 = vector.broadcast %cst_45 : f32 to vector<1x128xf32>
    %67 = arith.mulf %65, %66 : vector<1x128xf32>
    %cst_46 = arith.constant 9.99999974E-6 : f32
    %68 = vector.broadcast %cst_46 : f32 to vector<1x128xf32>
    %69 = arith.addf %67, %68 : vector<1x128xf32>
    %70 = math.rsqrt %69 : vector<1x128xf32>
    %c0_47 = arith.constant 0 : index
    %c0_48 = arith.constant 0 : index
    %71 = vector.load %arg7[%c0_47, %c0_48] : memref<1x128xf32, #tpu.memory_space<vmem>>, vector<1x128xf32>
    %72 = arith.mulf %70, %71 : vector<1x128xf32>
    %73 = vector.broadcast %72 : vector<1x128xf32> to vector<256x128xf32>
    %74 = arith.mulf %62, %73 : vector<256x128xf32>
    %c0_49 = arith.constant 0 : index
    %c0_50 = arith.constant 0 : index
    %75 = vector.load %arg8[%c0_49, %c0_50] : memref<1x128xf32, #tpu.memory_space<vmem>>, vector<1x128xf32>
    %76 = vector.broadcast %75 : vector<1x128xf32> to vector<256x128xf32>
    %77 = arith.addf %74, %76 : vector<256x128xf32>
    %c0_51 = arith.constant 0 : index
    %c0_52 = arith.constant 0 : index
    %c0_53 = arith.constant 0 : index
    %c0_54 = arith.constant 0 : index
    %78 = vector.load %arg2[%c0_51, %c0_52, %c0_53, %c0_54] : memref<1x16x16x128xf32, #tpu.memory_space<vmem>>, vector<1x16x16x128xf32>
    %79 = vector.shape_cast %78 : vector<1x16x16x128xf32> to vector<16x16x128xf32>
    %80 = vector.shape_cast %79 : vector<16x16x128xf32> to vector<256x128xf32>
    %81 = arith.addf %77, %80 : vector<256x128xf32>
    %cst_55 = arith.constant 0.000000e+00 : f32
    %82 = vector.broadcast %cst_55 : f32 to vector<256x128xf32>
    %83 = arith.maximumf %81, %82 : vector<256x128xf32>
    %84 = vector.shape_cast %83 : vector<256x128xf32> to vector<16x16x128xf32>
    %c0_56 = arith.constant 0 : index
    %c0_57 = arith.constant 0 : index
    %c0_58 = arith.constant 0 : index
    %c0_59 = arith.constant 0 : index
    %85 = vector.load %arg9[%c0_56, %c0_57, %c0_58, %c0_59] : memref<1x16x16x128xf32, #tpu.memory_space<vmem>>, vector<1x16x16x128xf32>
    %86 = vector.shape_cast %85 : vector<1x16x16x128xf32> to vector<16x16x128xf32>
    %87 = vector.shape_cast %84 : vector<16x16x128xf32> to vector<1x16x16x128xf32>
    tpu.vector_store %arg9[%c0_56, %c0_57, %c0_58, %c0_59], %87 {strides = array<i32>} : memref<1x16x16x128xf32, #tpu.memory_space<vmem>>, vector<1x16x16x128xf32>,
    return
  }
  func.func @transform_0(%arg0: i32) -> (i32, i32, i32, i32) {
    %c0_i32 = arith.constant 0 : i32
    %c0_i32_0 = arith.constant 0 : i32
    %c0_i32_1 = arith.constant 0 : i32
    %c0_i32_2 = arith.constant 0 : i32
    return %arg0, %c0_i32, %c0_i32_0, %c0_i32_1 : i32, i32, i32, i32
  }
  func.func @transform_1(%arg0: i32) -> (i32, i32, i32, i32) {
    %c0_i32 = arith.constant 0 : i32
    %c0_i32_0 = arith.constant 0 : i32
    %c0_i32_1 = arith.constant 0 : i32
    %c0_i32_2 = arith.constant 0 : i32
    return %arg0, %c0_i32, %c0_i32_0, %c0_i32_1 : i32, i32, i32, i32
  }
  func.func @transform_2(%arg0: i32) -> (i32, i32) {
    %c0_i32 = arith.constant 0 : i32
    %c0_i32_0 = arith.constant 0 : i32
    %c0_i32_1 = arith.constant 0 : i32
    return %c0_i32, %c0_i32_0 : i32, i32
  }
  func.func @transform_3(%arg0: i32) -> (i32, i32) {
    %c0_i32 = arith.constant 0 : i32
    %c0_i32_0 = arith.constant 0 : i32
    %c0_i32_1 = arith.constant 0 : i32
    return %c0_i32, %c0_i32_0 : i32, i32
  }
  func.func @transform_4(%arg0: i32) -> (i32, i32) {
    %c0_i32 = arith.constant 0 : i32
    %c0_i32_0 = arith.constant 0 : i32
    %c0_i32_1 = arith.constant 0 : i32
    return %c0_i32, %c0_i32_0 : i32, i32
  }
  func.func @transform_5(%arg0: i32) -> (i32, i32) {
    %c0_i32 = arith.constant 0 : i32
    %c0_i32_0 = arith.constant 0 : i32
    %c0_i32_1 = arith.constant 0 : i32
    return %c0_i32, %c0_i32_0 : i32, i32
  }
  func.func @transform_6(%arg0: i32) -> (i32, i32) {
    %c0_i32 = arith.constant 0 : i32
    %c0_i32_0 = arith.constant 0 : i32
    %c0_i32_1 = arith.constant 0 : i32
    return %c0_i32, %c0_i32_0 : i32, i32
  }
  func.func @transform_7(%arg0: i32) -> (i32, i32) {
    %c0_i32 = arith.constant 0 : i32
    %c0_i32_0 = arith.constant 0 : i32
    %c0_i32_1 = arith.constant 0 : i32
    return %c0_i32, %c0_i32_0 : i32, i32
  }
  func.func @transform_8(%arg0: i32) -> (i32, i32, i32, i32) {
    %c0_i32 = arith.constant 0 : i32
    %c0_i32_0 = arith.constant 0 : i32
    %c0_i32_1 = arith.constant 0 : i32
    %c0_i32_2 = arith.constant 0 : i32
    return %arg0, %c0_i32, %c0_i32_0, %c0_i32_1 : i32, i32, i32, i32
  }
}

</mosaic_0001>

<llo_original>
// kernel: tpu_custom_call.1
$region0: #{tpu_custom_call.1}
  #allocation0 [shape = 'u32[]', space=smem, size = 0x4, offset = 0x4, fixed_abs, tag = 'smem constant byte address 0x4 - core index']
  #allocation1 [shape = 'u32[144,128]{1,0:T(1,128)}', space=vmem, size = 0x12000, scoped, tag = 'internal scratch']
  #allocation2 [shape = 'bf16[18,16,384]{2,1,0:T(8,128)(2,1)}', space=vmem, size = 0x36000, scoped, tag = 'scratch operand']
  %s0 = inlined_call_operand.hbm [shape: bf16[2,18,16,384], index: 0, kind: input, shape index: {}]
  %s1 = inlined_call_operand.hbm [shape: f32[2,16,16,128], index: 1, kind: input, shape index: {}]
  %s2 = inlined_call_operand.hbm [shape: bf16[384,384], index: 2, kind: input, shape index: {}]
  %s3 = inlined_call_operand.vmem [shape: f32[1,128], index: 3, kind: input, shape index: {}]
  %s4 = inlined_call_operand.vmem [shape: f32[1,128], index: 4, kind: input, shape index: {}]
  %s5 = inlined_call_operand.hbm [shape: bf16[384,384], index: 5, kind: input, shape index: {}]
  %s6 = inlined_call_operand.vmem [shape: f32[1,128], index: 6, kind: input, shape index: {}]
  %s7 = inlined_call_operand.vmem [shape: f32[1,128], index: 7, kind: input, shape index: {}]
  %s8 = inlined_call_operand.hbm [shape: f32[2,16,16,128], index: 8, kind: output, shape index: {}]
  %s9 = sld [smem:[#allocation0]]
  $region81: #{tpu_custom_call.1} parent=0
    _
  %s11 = ssub.s32 1, %s9
  %s12 = scalar_select 0, %s11, %s9
  $region1: #{tpu_custom_call.1} parent=0
    #allocation3 [shape = 'u8[442368]{0}', space=vmem, size = 0x6c000, scoped, tag = 'input window, operand 0']
    #allocation4 [shape = 's32[2]{0}', space=sflag, size = 0x8, scoped, tag = 'scoped memory for tpu_custom_call.1']
    #allocation5 [shape = 's32[2]{0}', space=sflag, size = 0x8, scoped, tag = 'scoped memory for tpu_custom_call.1']
    #allocation6 [shape = 'u8[262144]{0}', space=vmem, size = 0x40000, scoped, tag = 'input window, operand 1']
    #allocation7 [shape = 's32[2]{0}', space=sflag, size = 0x8, scoped, tag = 'scoped memory for tpu_custom_call.1']
    #allocation8 [shape = 'u8[294912]{0}', space=vmem, size = 0x48000, scoped, tag = 'input window, operand 2, single buffered']
    #allocation9 [shape = 'u8[294912]{0}', space=vmem, size = 0x48000, scoped, tag = 'input window, operand 5, single buffered']
    #allocation10 [shape = 's32[1]{0}', space=sflag, size = 0x4, scoped, tag = 'scoped memory for tpu_custom_call.1']
    #allocation11 [shape = 'u8[262144]{0}', space=vmem, size = 0x40000, scoped, tag = 'output window, operand 0']
    %13 = vsyncpa [#allocation4], 0
    %s14 = scalar_lea.sflag [#allocation4], 1
    %15 = vsyncpa %s14, 0
    %16 = vsyncpa [#allocation7], 0
    %s17 = scalar_lea.sflag [#allocation7], 1
    %18 = vsyncpa %s17, 0
    %19 = vsyncpa [#allocation10], 0
    %20 = vsyncpa [#allocation5], 0
    %s21 = scalar_lea.sflag [#allocation5], 1
    %22 = vsyncpa %s21, 0
    loop: start=0, step=1, limit=4
    $region2: #{tpu_custom_call.1} parent=1 // loop_pre_header
      _
    $region3: #{tpu_custom_call.1} parent=1 // loop_header
      %s24 = sphi 0, %s28
      %p25 = scmp.ge.s32.totalorder %s24, 4
      %s34 = sphi 0, %s36
      %s37 = sphi 0, %s34
      %s38 = sphi 0, %s37
      %s54 = sphi 0, %s38
      %s60 = sphi 0, %s62
      %s63 = sphi 0, %s60
      %s64 = sphi 0, %s63
      %s80 = sphi 0, %s64
      %s84 = sphi 0, %s84
      %s86 = sphi 0, %s84
      %s87 = sphi 0, %s86
      %s101 = sphi 0, %s87
      %s105 = sphi 0, %s105
      %s107 = sphi 0, %s105
      %s108 = sphi 0, %s107
      %s122 = sphi 0, %s108
      %s126 = sphi 0, %s126
      %s128 = sphi 0, %s126
      %s129 = sphi 0, %s128
      %s143 = sphi 0, %s129
      %s147 = sphi 0, %s147
      %s149 = sphi 0, %s147
      %s150 = sphi 0, %s149
      %s164 = sphi 0, %s150
      %s168 = sphi 0, %s168
      %s170 = sphi 0, %s168
      %s171 = sphi 0, %s170
      %s185 = sphi 0, %s171
      %s189 = sphi 0, %s189
      %s191 = sphi 0, %s189
      %s192 = sphi 0, %s191
      %s206 = sphi 0, %s192
      %s212 = sphi 0, %s214
      %s215 = sphi 0, %s212
      %s216 = sphi 0, %s215
      %s232 = sphi 0, %s216
    $region4: #{tpu_custom_call.1} parent=1 // loop_header_branch
      %27 = sbr.rel (%p25) target = $region8
    $region5: #{tpu_custom_call.1} parent=1 // loop_body
      %s29 = ssub.s32 %s24, 1
      %s30 = ssub.s32 %s24, 2
      %s31 = sadd.s32 %s24, 1
      %s32 = ssub.s32 %s24, %s31
      %p33 = scmp.eq.s32.totalorder %s32, 0
      %s35 = sadd.s32 %s34, 1
      %s36 = scalar_select %p33, %s34, %s35
      %p39 = pneg %p33
      %p40 = scmp.eq.s32.totalorder %s24, 1
      %p41 = por %p39, %p40
      %p42 = scmp.ne.s32.totalorder %s34, %s37
      %p43 = scmp.eq.s32.totalorder %s24, 0
      %p44 = por %p42, %p43
      %p45 = scmp.ne.s32.totalorder %s34, %s37
      %p46 = scmp.eq.s32.totalorder %s29, 1
      %p47 = por %p45, %p46
      %p48 = scmp.ne.s32.totalorder %s37, %s38
      %p49 = scmp.eq.s32.totalorder %s29, 0
      %p50 = por %p48, %p49
      %p51 = scmp.ne.s32.totalorder %s37, %s38
      %p52 = scmp.eq.s32.totalorder %s30, 1
      %p53 = por %p51, %p52
      %p55 = scmp.ne.s32.totalorder %s38, %s54
      %p56 = scmp.eq.s32.totalorder %s30, 0
      %p57 = por %p55, %p56
      %s58 = ssub.s32 %s24, %s31
      %p59 = scmp.eq.s32.totalorder %s58, 0
      %s61 = sadd.s32 %s60, 1
      %s62 = scalar_select %p59, %s60, %s61
      %p65 = pneg %p59
      %p66 = scmp.eq.s32.totalorder %s24, 1
      %p67 = por %p65, %p66
      %p68 = scmp.ne.s32.totalorder %s60, %s63
      %p69 = scmp.eq.s32.totalorder %s24, 0
      %p70 = por %p68, %p69
      %p71 = scmp.ne.s32.totalorder %s60, %s63
      %p72 = scmp.eq.s32.totalorder %s29, 1
      %p73 = por %p71, %p72
      %p74 = scmp.ne.s32.totalorder %s63, %s64
      %p75 = scmp.eq.s32.totalorder %s29, 0
      %p76 = por %p74, %p75
      %p77 = scmp.ne.s32.totalorder %s63, %s64
      %p78 = scmp.eq.s32.totalorder %s30, 1
      %p79 = por %p77, %p78
      %p81 = scmp.ne.s32.totalorder %s64, %s80
      %p82 = scmp.eq.s32.totalorder %s30, 0
      %p83 = por %p81, %p82
      %s85 = sadd.s32 %s84, 1
      %p88 = scmp.eq.s32.totalorder %s24, 1
      %p89 = scmp.ne.s32.totalorder %s84, %s86
      %p90 = scmp.eq.s32.totalorder %s24, 0
      %p91 = por %p89, %p90
      %p92 = scmp.ne.s32.totalorder %s84, %s86
      %p93 = scmp.eq.s32.totalorder %s29, 1
      %p94 = por %p92, %p93
      %p95 = scmp.ne.s32.totalorder %s86, %s87
      %p96 = scmp.eq.s32.totalorder %s29, 0
      %p97 = por %p95, %p96
      %p98 = scmp.ne.s32.totalorder %s86, %s87
      %p99 = scmp.eq.s32.totalorder %s30, 1
      %p100 = por %p98, %p99
      %p102 = scmp.ne.s32.totalorder %s87, %s101
      %p103 = scmp.eq.s32.totalorder %s30, 0
      %p104 = por %p102, %p103
      %s106 = sadd.s32 %s105, 1
      %p109 = scmp.eq.s32.totalorder %s24, 1
      %p110 = scmp.ne.s32.totalorder %s105, %s107
      %p111 = scmp.eq.s32.totalorder %s24, 0
      %p112 = por %p110, %p111
      %p113 = scmp.ne.s32.totalorder %s105, %s107
      %p114 = scmp.eq.s32.totalorder %s29, 1
      %p115 = por %p113, %p114
      %p116 = scmp.ne.s32.totalorder %s107, %s108
      %p117 = scmp.eq.s32.totalorder %s29, 0
      %p118 = por %p116, %p117
      %p119 = scmp.ne.s32.totalorder %s107, %s108
      %p120 = scmp.eq.s32.totalorder %s30, 1
      %p121 = por %p119, %p120
      %p123 = scmp.ne.s32.totalorder %s108, %s122
      %p124 = scmp.eq.s32.totalorder %s30, 0
      %p125 = por %p123, %p124
      %s127 = sadd.s32 %s126, 1
      %p130 = scmp.eq.s32.totalorder %s24, 1
      %p131 = scmp.ne.s32.totalorder %s126, %s128
      %p132 = scmp.eq.s32.totalorder %s24, 0
      %p133 = por %p131, %p132
      %p134 = scmp.ne.s32.totalorder %s126, %s128
      %p135 = scmp.eq.s32.totalorder %s29, 1
      %p136 = por %p134, %p135
      %p137 = scmp.ne.s32.totalorder %s128, %s129
      %p138 = scmp.eq.s32.totalorder %s29, 0
      %p139 = por %p137, %p138
      %p140 = scmp.ne.s32.totalorder %s128, %s129
      %p141 = scmp.eq.s32.totalorder %s30, 1
      %p142 = por %p140, %p141
      %p144 = scmp.ne.s32.totalorder %s129, %s143
      %p145 = scmp.eq.s32.totalorder %s30, 0
      %p146 = por %p144, %p145
      %s148 = sadd.s32 %s147, 1
      %p151 = scmp.eq.s32.totalorder %s24, 1
      %p152 = scmp.ne.s32.totalorder %s147, %s149
      %p153 = scmp.eq.s32.totalorder %s24, 0
      %p154 = por %p152, %p153
      %p155 = scmp.ne.s32.totalorder %s147, %s149
      %p156 = scmp.eq.s32.totalorder %s29, 1
      %p157 = por %p155, %p156
      %p158 = scmp.ne.s32.totalorder %s149, %s150
      %p159 = scmp.eq.s32.totalorder %s29, 0
      %p160 = por %p158, %p159
      %p161 = scmp.ne.s32.totalorder %s149, %s150
      %p162 = scmp.eq.s32.totalorder %s30, 1
      %p163 = por %p161, %p162
      %p165 = scmp.ne.s32.totalorder %s150, %s164
      %p166 = scmp.eq.s32.totalorder %s30, 0
      %p167 = por %p165, %p166
      %s169 = sadd.s32 %s168, 1
      %p172 = scmp.eq.s32.totalorder %s24, 1
      %p173 = scmp.ne.s32.totalorder %s168, %s170
      %p174 = scmp.eq.s32.totalorder %s24, 0
      %p175 = por %p173, %p174
      %p176 = scmp.ne.s32.totalorder %s168, %s170
      %p177 = scmp.eq.s32.totalorder %s29, 1
      %p178 = por %p176, %p177
      %p179 = scmp.ne.s32.totalorder %s170, %s171
      %p180 = scmp.eq.s32.totalorder %s29, 0
      %p181 = por %p179, %p180
      %p182 = scmp.ne.s32.totalorder %s170, %s171
      %p183 = scmp.eq.s32.totalorder %s30, 1
      %p184 = por %p182, %p183
      %p186 = scmp.ne.s32.totalorder %s171, %s185
      %p187 = scmp.eq.s32.totalorder %s30, 0
      %p188 = por %p186, %p187
      %s190 = sadd.s32 %s189, 1
      %p193 = scmp.eq.s32.totalorder %s24, 1
      %p194 = scmp.ne.s32.totalorder %s189, %s191
      %p195 = scmp.eq.s32.totalorder %s24, 0
      %p196 = por %p194, %p195
      %p197 = scmp.ne.s32.totalorder %s189, %s191
      %p198 = scmp.eq.s32.totalorder %s29, 1
      %p199 = por %p197, %p198
      %p200 = scmp.ne.s32.totalorder %s191, %s192
      %p201 = scmp.eq.s32.totalorder %s29, 0
      %p202 = por %p200, %p201
      %p203 = scmp.ne.s32.totalorder %s191, %s192
      %p204 = scmp.eq.s32.totalorder %s30, 1
      %p205 = por %p203, %p204
      %p207 = scmp.ne.s32.totalorder %s192, %s206
      %p208 = scmp.eq.s32.totalorder %s30, 0
      %p209 = por %p207, %p208
      %s210 = ssub.s32 %s24, %s31
      %p211 = scmp.eq.s32.totalorder %s210, 0
      %s213 = sadd.s32 %s212, 1
      %s214 = scalar_select %p211, %s212, %s213
      %p217 = pneg %p211
      %p218 = scmp.eq.s32.totalorder %s24, 1
      %p219 = por %p217, %p218
      %p220 = scmp.ne.s32.totalorder %s212, %s215
      %p221 = scmp.eq.s32.totalorder %s24, 0
      %p222 = por %p220, %p221
      %p223 = scmp.ne.s32.totalorder %s212, %s215
      %p224 = scmp.eq.s32.totalorder %s29, 1
      %p225 = por %p223, %p224
      %p226 = scmp.ne.s32.totalorder %s215, %s216
      %p227 = scmp.eq.s32.totalorder %s29, 0
      %p228 = por %p226, %p227
      %p229 = scmp.ne.s32.totalorder %s215, %s216
      %p230 = scmp.eq.s32.totalorder %s30, 1
      %p231 = por %p229, %p230
      %p233 = scmp.ne.s32.totalorder %s216, %s232
      %p234 = scmp.eq.s32.totalorder %s30, 0
      %p235 = por %p233, %p234
      %p236 = scmp.le.s32.totalorder 1, %s24
      %p237 = scmp.lt.s32.totalorder %s24, 3
      %p238 = pnand %p236, %p237
      %p239 = pneg %p238
      // Predicated region
      $region9: #{tpu_custom_call.1} parent=5 // pred_check
        _
      $region10: #{tpu_custom_call.1} parent=5 // pred_check_branch
        %241 = sbr.rel (%p238) target = $region12
      $region11: #{tpu_custom_call.1} parent=5 // pred_region
        %s242 = ssub.s32 %s24, 1
        // Predicated region
        $region13: #{tpu_custom_call.1} parent=11 // pred_check
          %p243 = pneg %p97
        $region14: #{tpu_custom_call.1} parent=11 // pred_check_branch
          %245 = sbr.rel (%p243) target = $region16
        $region15: #{tpu_custom_call.1} parent=11 // pred_region
          %s247 = ssub.s32 9216, 9216
          %248 = vsyncadd [#allocation7], %s247
          %s249 = sshll.u32 [#allocation8], 4
          %s250 = int_to_ptr.vmem [resolvable:$true] %s249
          %255 = dma.hbm_to_vmem [thread:$0]  %s2, 9216, %s250, [#allocation7], 192, 192, 12
        $region16: #{tpu_custom_call.1} parent=11 // pred_fallthru
          _
        // Predicated region
        $region17: #{tpu_custom_call.1} parent=11 // pred_check
          %p256 = pneg %p118
        $region18: #{tpu_custom_call.1} parent=11 // pred_check_branch
          %258 = sbr.rel (%p256) target = $region20
        $region19: #{tpu_custom_call.1} parent=11 // pred_region
          _
        $region20: #{tpu_custom_call.1} parent=11 // pred_fallthru
          _
        // Predicated region
        $region21: #{tpu_custom_call.1} parent=11 // pred_check
          %p259 = pneg %p139
        $region22: #{tpu_custom_call.1} parent=11 // pred_check_branch
          %261 = sbr.rel (%p259) target = $region24
        $region23: #{tpu_custom_call.1} parent=11 // pred_region
          _
        $region24: #{tpu_custom_call.1} parent=11 // pred_fallthru
          _
        // Predicated region
        $region25: #{tpu_custom_call.1} parent=11 // pred_check
          %p262 = pneg %p160
        $region26: #{tpu_custom_call.1} parent=11 // pred_check_branch
          %264 = sbr.rel (%p262) target = $region28
        $region27: #{tpu_custom_call.1} parent=11 // pred_region
          %s266 = ssub.s32 9216, 9216
          %267 = vsyncadd [#allocation10], %s266
          %s268 = sshll.u32 [#allocation9], 4
          %s269 = int_to_ptr.vmem [resolvable:$true] %s268
          %274 = dma.hbm_to_vmem [thread:$0]  %s5, 9216, %s269, [#allocation10], 192, 192, 12
        $region28: #{tpu_custom_call.1} parent=11 // pred_fallthru
          _
        // Predicated region
        $region29: #{tpu_custom_call.1} parent=11 // pred_check
          %p275 = pneg %p181
        $region30: #{tpu_custom_call.1} parent=11 // pred_check_branch
          %277 = sbr.rel (%p275) target = $region32
        $region31: #{tpu_custom_call.1} parent=11 // pred_region
          _
        $region32: #{tpu_custom_call.1} parent=11 // pred_fallthru
          _
        // Predicated region
        $region33: #{tpu_custom_call.1} parent=11 // pred_check
          %p278 = pneg %p202
        $region34: #{tpu_custom_call.1} parent=11 // pred_check_branch
          %280 = sbr.rel (%p278) target = $region36
        $region35: #{tpu_custom_call.1} parent=11 // pred_region
          _
        $region36: #{tpu_custom_call.1} parent=11 // pred_fallthru
          _
      $region12: #{tpu_custom_call.1} parent=5 // pred_fallthru
        _
      %p281 = scmp.lt.s32.totalorder %s24, 2
      // Predicated region
      $region37: #{tpu_custom_call.1} parent=5 // pred_check
        %p282 = pneg %p281
      $region38: #{tpu_custom_call.1} parent=5 // pred_check_branch
        %284 = sbr.rel (%p282) target = $region40
      $region39: #{tpu_custom_call.1} parent=5 // pred_region
        // Predicated region
        $region41: #{tpu_custom_call.1} parent=39 // pred_check
          %p285 = pneg %p44
        $region42: #{tpu_custom_call.1} parent=39 // pred_check_branch
          %287 = sbr.rel (%p285) target = $region44
        $region43: #{tpu_custom_call.1} parent=39 // pred_region
          %s288 = sand.u32 %s34, 1
          %s289 = scalar_lea.sflag [#allocation4], %s288
          %s290 = sand.u32 %s34, 1
          %s291 = smul.addr %s290, 432
          %s292 = scalar_lea.vmem [#allocation3], %s291
          %s294 = ssub.s32 6912, 6912
          %295 = vsyncadd %s289, %s294
          %s296 = smul.addr %s24, 108
          %s297 = smul.addr %s296, 64
          %s298 = scalar_lea.hbm %s0, %s297
          %s299 = sshll.u32 %s292, 4
          %s300 = int_to_ptr.vmem [resolvable:$true] %s299
          %305 = dma.hbm_to_vmem [thread:$0]  %s298, 6912, %s300, %s289, 192, 192, 12
        $region44: #{tpu_custom_call.1} parent=39 // pred_fallthru
          _
        // Predicated region
        $region45: #{tpu_custom_call.1} parent=39 // pred_check
          %p306 = pneg %p70
        $region46: #{tpu_custom_call.1} parent=39 // pred_check_branch
          %308 = sbr.rel (%p306) target = $region48
        $region47: #{tpu_custom_call.1} parent=39 // pred_region
          %s309 = sand.u32 %s24, 1
          %s310 = scalar_lea.sflag [#allocation7], %s309
          %s311 = sand.u32 %s60, 1
          %s312 = smul.addr %s311, 256
          %s313 = scalar_lea.vmem [#allocation6], %s312
          %s315 = ssub.s32 4096, 4096
          %316 = vsyncadd %s310, %s315
          %s317 = smul.addr %s24, 32
          %s318 = smul.addr %s317, 128
          %s319 = scalar_lea.hbm %s1, %s318
          %s320 = sshll.u32 %s313, 4
          %s321 = int_to_ptr.vmem [resolvable:$true] %s320
          %326 = dma.hbm_to_vmem [thread:$0]  %s319, 4096, %s321, %s310, 128, 128, 8
        $region48: #{tpu_custom_call.1} parent=39 // pred_fallthru
          _
      $region40: #{tpu_custom_call.1} parent=5 // pred_fallthru
        _
      %p327 = scmp.le.s32.totalorder 1, %s24
      %p328 = scmp.lt.s32.totalorder %s24, 3
      %p329 = pnand %p327, %p328
      %p330 = pneg %p329
      // Predicated region
      $region49: #{tpu_custom_call.1} parent=5 // pred_check
        _
      $region50: #{tpu_custom_call.1} parent=5 // pred_check_branch
        %332 = sbr.rel (%p329) target = $region52
      $region51: #{tpu_custom_call.1} parent=5 // pred_region
        %s333 = ssub.s32 %s24, 1
        %s334 = sand.u32 %s37, 1
        %s335 = scalar_lea.sflag [#allocation4], %s334
        %s336 = sand.u32 %s37, 1
        %s337 = smul.addr %s336, 432
        %s338 = scalar_lea.vmem [#allocation3], %s337
        // Predicated region
        $region53: #{tpu_custom_call.1} parent=51 // pred_check
          %p339 = pneg %p50
        $region54: #{tpu_custom_call.1} parent=51 // pred_check_branch
          %341 = sbr.rel (%p339) target = $region56
        $region55: #{tpu_custom_call.1} parent=51 // pred_region
          %342 = dma.done %s335, 6912
        $region56: #{tpu_custom_call.1} parent=51 // pred_fallthru
          _
        %s343 = sand.u32 %s29, 1
        %s344 = scalar_lea.sflag [#allocation7], %s343
        %s345 = sand.u32 %s63, 1
        %s346 = smul.addr %s345, 256
        %s347 = scalar_lea.vmem [#allocation6], %s346
        // Predicated region
        $region57: #{tpu_custom_call.1} parent=51 // pred_check
          %p348 = pneg %p76
        $region58: #{tpu_custom_call.1} parent=51 // pred_check_branch
          %350 = sbr.rel (%p348) target = $region60
        $region59: #{tpu_custom_call.1} parent=51 // pred_region
          %351 = dma.done %s344, 4096
        $region60: #{tpu_custom_call.1} parent=51 // pred_fallthru
          _
        // Predicated region
        $region61: #{tpu_custom_call.1} parent=51 // pred_check
          %p352 = pneg %p97
        $region62: #{tpu_custom_call.1} parent=51 // pred_check_branch
          %354 = sbr.rel (%p352) target = $region64
        $region63: #{tpu_custom_call.1} parent=51 // pred_region
          %355 = dma.done [#allocation7], 9216
        $region64: #{tpu_custom_call.1} parent=51 // pred_fallthru
          _
        // Predicated region
        $region65: #{tpu_custom_call.1} parent=51 // pred_check
          %p356 = pneg %p160
        $region66: #{tpu_custom_call.1} parent=51 // pred_check_branch
          %358 = sbr.rel (%p356) target = $region68
        $region67: #{tpu_custom_call.1} parent=51 // pred_region
          %359 = dma.done [#allocation10], 9216
        $region68: #{tpu_custom_call.1} parent=51 // pred_fallthru
          _
        %s360 = sand.u32 %s37, 1
        %s361 = scalar_lea.sflag [#allocation4], %s360
        %s362 = sand.u32 %s37, 1
        %s363 = smul.addr %s362, 432
        %s364 = scalar_lea.vmem [#allocation3], %s363
        %p365 = pneg %p50
        %p366 = pneg %p47
        %s367 = sand.u32 %s29, 1
        %s368 = scalar_lea.sflag [#allocation7], %s367
        %s369 = sand.u32 %s63, 1
        %s370 = smul.addr %s369, 256
        %s371 = scalar_lea.vmem [#allocation6], %s370
        %p372 = pneg %p76
        %p373 = pneg %p73
        %p374 = pneg %p97
        %p375 = pneg %p94
        %p376 = pneg %p118
        %p377 = pneg %p115
        %p378 = pneg %p139
        %p379 = pneg %p136
        %p380 = pneg %p160
        %p381 = pneg %p157
        %p382 = pneg %p181
        %p383 = pneg %p178
        %p384 = pneg %p202
        %p385 = pneg %p199
        %p386 = pneg %p228
        %p387 = pneg %p225
        %s388 = sand.u32 %s215, 1
        %s389 = scalar_lea.sflag [#allocation5], %s388
        %s390 = sand.u32 %s215, 1
        %s391 = smul.addr %s390, 256
        %s392 = scalar_lea.vmem [#allocation11], %s391
        %v394 = vld [vmem:[%s338] sm:$0xff]
        %v395 = vld [vmem:[%s338 + $0x8] sm:$0xf]
        %v396 = vld [vmem:[%s338 + $0xc] sm:$0xff]
        %v397 = vld [vmem:[%s338 + $0x14] sm:$0xf]
        %v398 = vld [vmem:[%s338 + $0x18] sm:$0xff]
        %v399 = vld [vmem:[%s338 + $0x20] sm:$0xf]
        %v400 = vld [vmem:[%s338 + $0x24] sm:$0xff]
        %v401 = vld [vmem:[%s338 + $0x2c] sm:$0xf]
        %v402 = vld [vmem:[%s338 + $0x30] sm:$0xff]
        %v403 = vld [vmem:[%s338 + $0x38] sm:$0xf]
        %v404 = vld [vmem:[%s338 + $0x3c] sm:$0xff]
        %v405 = vld [vmem:[%s338 + $0x44] sm:$0xf]
        %v406 = vld [vmem:[%s338 + $0x48] sm:$0xff]
        %v407 = vld [vmem:[%s338 + $0x50] sm:$0xf]
        %v408 = vld [vmem:[%s338 + $0x54] sm:$0xff]
        %v409 = vld [vmem:[%s338 + $0x5c] sm:$0xf]
        %v410 = vld [vmem:[%s338 + $0x60] sm:$0xff]
        %v411 = vld [vmem:[%s338 + $0x68] sm:$0xf]
        %v412 = vld [vmem:[%s338 + $0x6c] sm:$0xff]
        %v413 = vld [vmem:[%s338 + $0x74] sm:$0xf]
        %v414 = vld [vmem:[%s338 + $0x78] sm:$0xff]
        %v415 = vld [vmem:[%s338 + $0x80] sm:$0xf]
        %v416 = vld [vmem:[%s338 + $0x84] sm:$0xff]
        %v417 = vld [vmem:[%s338 + $0x8c] sm:$0xf]
        %v418 = vld [vmem:[%s338 + $0x90] sm:$0xff]
        %v419 = vld [vmem:[%s338 + $0x98] sm:$0xf]
        %v420 = vld [vmem:[%s338 + $0x9c] sm:$0xff]
        %v421 = vld [vmem:[%s338 + $0xa4] sm:$0xf]
        %v422 = vld [vmem:[%s338 + $0xa8] sm:$0xff]
        %v423 = vld [vmem:[%s338 + $0xb0] sm:$0xf]
        %v424 = vld [vmem:[%s338 + $0xb4] sm:$0xff]
        %v425 = vld [vmem:[%s338 + $0xbc] sm:$0xf]
        %v426 = vld [vmem:[%s338 + $0xc0] sm:$0xff]
        %v427 = vld [vmem:[%s338 + $0xc8] sm:$0xf]
        %v428 = vld [vmem:[%s338 + $0xcc] sm:$0xff]
        %v429 = vld [vmem:[%s338 + $0xd4] sm:$0xf]
        %v430 = vld [vmem:[%s338 + $0xd8] sm:$0xff]
        %v431 = vld [vmem:[%s338 + $0xe0] sm:$0xf]
        %v432 = vld [vmem:[%s338 + $0xe4] sm:$0xff]
        %v433 = vld [vmem:[%s338 + $0xec] sm:$0xf]
        %v434 = vld [vmem:[%s338 + $0xf0] sm:$0xff]
        %v435 = vld [vmem:[%s338 + $0xf8] sm:$0xf]
        %v436 = vld [vmem:[%s338 + $0xfc] sm:$0xff]
        %v437 = vld [vmem:[%s338 + $0x104] sm:$0xf]
        %v438 = vld [vmem:[%s338 + $0x108] sm:$0xff]
        %v439 = vld [vmem:[%s338 + $0x110] sm:$0xf]
        %v440 = vld [vmem:[%s338 + $0x114] sm:$0xff]
        %v441 = vld [vmem:[%s338 + $0x11c] sm:$0xf]
        %v442 = vld [vmem:[%s338 + $0x120] sm:$0xff]
        %v443 = vld [vmem:[%s338 + $0x128] sm:$0xf]
        %v444 = vld [vmem:[%s338 + $0x12c] sm:$0xff]
        %v445 = vld [vmem:[%s338 + $0x134] sm:$0xf]
        %v446 = vld [vmem:[%s338 + $0x138] sm:$0xff]
        %v447 = vld [vmem:[%s338 + $0x140] sm:$0xf]
        %v448 = vld [vmem:[%s338 + $0x144] sm:$0xff]
        %v449 = vld [vmem:[%s338 + $0x14c] sm:$0xf]
        %v450 = vld [vmem:[%s338 + $0x150] sm:$0xff]
        %v451 = vld [vmem:[%s338 + $0x158] sm:$0xf]
        %v452 = vld [vmem:[%s338 + $0x15c] sm:$0xff]
        %v453 = vld [vmem:[%s338 + $0x164] sm:$0xf]
        %v454 = vld [vmem:[%s338 + $0x168] sm:$0xff]
        %v455 = vld [vmem:[%s338 + $0x170] sm:$0xf]
        %v456 = vld [vmem:[%s338 + $0x174] sm:$0xff]
        %v457 = vld [vmem:[%s338 + $0x17c] sm:$0xf]
        %v458 = vld [vmem:[%s338 + $0x180] sm:$0xff]
        %v459 = vld [vmem:[%s338 + $0x188] sm:$0xf]
        %v460 = vld [vmem:[%s338 + $0x18c] sm:$0xff]
        %v461 = vld [vmem:[%s338 + $0x194] sm:$0xf]
        %v462 = vld [vmem:[%s338 + $0x198] sm:$0xff]
        %v463 = vld [vmem:[%s338 + $0x1a0] sm:$0xf]
        %v464 = vld [vmem:[%s338 + $0x1a4] sm:$0xff]
        %v465 = vld [vmem:[%s338 + $0x1ac] sm:$0xf]
        %v466 = vld [vmem:[#allocation8] sm:$0xff]
        %v467 = vld [vmem:[#allocation8 + $0x8] sm:$0xf]
        %v468 = vld [vmem:[#allocation8 + $0xc] sm:$0xff]
        %v469 = vld [vmem:[#allocation8 + $0x14] sm:$0xf]
        %v470 = vld [vmem:[#allocation8 + $0x18] sm:$0xff]
        %v471 = vld [vmem:[#allocation8 + $0x20] sm:$0xf]
        %v472 = vld [vmem:[#allocation8 + $0x24] sm:$0xff]
        %v473 = vld [vmem:[#allocation8 + $0x2c] sm:$0xf]
        %v474 = vld [vmem:[#allocation8 + $0x30] sm:$0xff]
        %v475 = vld [vmem:[#allocation8 + $0x38] sm:$0xf]
        %v476 = vld [vmem:[#allocation8 + $0x3c] sm:$0xff]
        %v477 = vld [vmem:[#allocation8 + $0x44] sm:$0xf]
        %v478 = vld [vmem:[#allocation8 + $0x48] sm:$0xff]
        %v479 = vld [vmem:[#allocation8 + $0x50] sm:$0xf]
        %v480 = vld [vmem:[#allocation8 + $0x54] sm:$0xff]
        %v481 = vld [vmem:[#allocation8 + $0x5c] sm:$0xf]
        %v482 = vld [vmem:[#allocation8 + $0x60] sm:$0xff]
        %v483 = vld [vmem:[#allocation8 + $0x68] sm:$0xf]
        %v484 = vld [vmem:[#allocation8 + $0x6c] sm:$0xff]
        %v485 = vld [vmem:[#allocation8 + $0x74] sm:$0xf]
        %v486 = vld [vmem:[#allocation8 + $0x78] sm:$0xff]
        %v487 = vld [vmem:[#allocation8 + $0x80] sm:$0xf]
        %v488 = vld [vmem:[#allocation8 + $0x84] sm:$0xff]
        %v489 = vld [vmem:[#allocation8 + $0x8c] sm:$0xf]
        %v490 = vld [vmem:[#allocation8 + $0x90] sm:$0xff]
        %v491 = vld [vmem:[#allocation8 + $0x98] sm:$0xf]
        %v492 = vld [vmem:[#allocation8 + $0x9c] sm:$0xff]
        %v493 = vld [vmem:[#allocation8 + $0xa4] sm:$0xf]
        %v494 = vld [vmem:[#allocation8 + $0xa8] sm:$0xff]
        %v495 = vld [vmem:[#allocation8 + $0xb0] sm:$0xf]
        %v496 = vld [vmem:[#allocation8 + $0xb4] sm:$0xff]
        %v497 = vld [vmem:[#allocation8 + $0xbc] sm:$0xf]
        %v498 = vld [vmem:[#allocation8 + $0xc0] sm:$0xff]
        %v499 = vld [vmem:[#allocation8 + $0xc8] sm:$0xf]
        %v500 = vld [vmem:[#allocation8 + $0xcc] sm:$0xff]
        %v501 = vld [vmem:[#allocation8 + $0xd4] sm:$0xf]
        %v502 = vld [vmem:[#allocation8 + $0xd8] sm:$0xff]
        %v503 = vld [vmem:[#allocation8 + $0xe0] sm:$0xf]
        %v504 = vld [vmem:[#allocation8 + $0xe4] sm:$0xff]
        %v505 = vld [vmem:[#allocation8 + $0xec] sm:$0xf]
        %v506 = vld [vmem:[#allocation8 + $0xf0] sm:$0xff]
        %v507 = vld [vmem:[#allocation8 + $0xf8] sm:$0xf]
        %v508 = vld [vmem:[#allocation8 + $0xfc] sm:$0xff]
        %v509 = vld [vmem:[#allocation8 + $0x104] sm:$0xf]
        %v510 = vld [vmem:[#allocation8 + $0x108] sm:$0xff]
        %v511 = vld [vmem:[#allocation8 + $0x110] sm:$0xf]
        %v512 = vld [vmem:[#allocation8 + $0x114] sm:$0xff]
        %v513 = vld [vmem:[#allocation8 + $0x11c] sm:$0xf]
        %v514 = vld [vmem:[#allocation8 + $0x120] sm:$0xff]
        %v515 = vld [vmem:[#allocation8 + $0x128] sm:$0xf]
        %v516 = vld [vmem:[#allocation8 + $0x12c] sm:$0xff]
        %v517 = vld [vmem:[#allocation8 + $0x134] sm:$0xf]
        %v518 = vld [vmem:[#allocation8 + $0x138] sm:$0xff]
        %v519 = vld [vmem:[#allocation8 + $0x140] sm:$0xf]
        %v520 = vld [vmem:[#allocation8 + $0x144] sm:$0xff]
        %v521 = vld [vmem:[#allocation8 + $0x14c] sm:$0xf]
        %v522 = vld [vmem:[#allocation8 + $0x150] sm:$0xff]
        %v523 = vld [vmem:[#allocation8 + $0x158] sm:$0xf]
        %v524 = vld [vmem:[#allocation8 + $0x15c] sm:$0xff]
        %v525 = vld [vmem:[#allocation8 + $0x164] sm:$0xf]
        %v526 = vld [vmem:[#allocation8 + $0x168] sm:$0xff]
        %v527 = vld [vmem:[#allocation8 + $0x170] sm:$0xf]
        %v528 = vld [vmem:[#allocation8 + $0x174] sm:$0xff]
        %v529 = vld [vmem:[#allocation8 + $0x17c] sm:$0xf]
        %v530 = vld [vmem:[#allocation8 + $0x180] sm:$0xff]
        %v531 = vld [vmem:[#allocation8 + $0x188] sm:$0xf]
        %v532 = vld [vmem:[#allocation8 + $0x18c] sm:$0xff]
        %v533 = vld [vmem:[#allocation8 + $0x194] sm:$0xf]
        %v534 = vld [vmem:[#allocation8 + $0x198] sm:$0xff]
        %v535 = vld [vmem:[#allocation8 + $0x1a0] sm:$0xf]
        %v536 = vld [vmem:[#allocation8 + $0x1a4] sm:$0xff]
        %v537 = vld [vmem:[#allocation8 + $0x1ac] sm:$0xf]
        %v538 = vld [vmem:[#allocation8 + $0x1b0] sm:$0xff]
        %v539 = vld [vmem:[#allocation8 + $0x1b8] sm:$0xf]
        %v540 = vld [vmem:[#allocation8 + $0x1bc] sm:$0xff]
        %v541 = vld [vmem:[#allocation8 + $0x1c4] sm:$0xf]
        %v542 = vld [vmem:[#allocation8 + $0x1c8] sm:$0xff]
        %v543 = vld [vmem:[#allocation8 + $0x1d0] sm:$0xf]
        %v544 = vld [vmem:[#allocation8 + $0x1d4] sm:$0xff]
        %v545 = vld [vmem:[#allocation8 + $0x1dc] sm:$0xf]
        %v546 = vld [vmem:[#allocation8 + $0x1e0] sm:$0xff]
        %v547 = vld [vmem:[#allocation8 + $0x1e8] sm:$0xf]
        %v548 = vld [vmem:[#allocation8 + $0x1ec] sm:$0xff]
        %v549 = vld [vmem:[#allocation8 + $0x1f4] sm:$0xf]
        %v550 = vld [vmem:[#allocation8 + $0x1f8] sm:$0xff]
        %v551 = vld [vmem:[#allocation8 + $0x200] sm:$0xf]
        %v552 = vld [vmem:[#allocation8 + $0x204] sm:$0xff]
        %v553 = vld [vmem:[#allocation8 + $0x20c] sm:$0xf]
        %v554 = vld [vmem:[#allocation8 + $0x210] sm:$0xff]
        %v555 = vld [vmem:[#allocation8 + $0x218] sm:$0xf]
        %v556 = vld [vmem:[#allocation8 + $0x21c] sm:$0xff]
        %v557 = vld [vmem:[#allocation8 + $0x224] sm:$0xf]
        %v558 = vld [vmem:[#allocation8 + $0x228] sm:$0xff]
        %v559 = vld [vmem:[#allocation8 + $0x230] sm:$0xf]
        %v560 = vld [vmem:[#allocation8 + $0x234] sm:$0xff]
        %v561 = vld [vmem:[#allocation8 + $0x23c] sm:$0xf]
        %v634 = vunpack.c.l.b16 %v394
        %v635 = vunpack.c.h.b16 %v394
        %v636 = vunpack.c.l.b16 %v395
        %v637 = vunpack.c.l.b16 %v396
        %v638 = vunpack.c.h.b16 %v396
        %v639 = vunpack.c.l.b16 %v397
        %v640 = vunpack.c.l.b16 %v398
        %v641 = vunpack.c.h.b16 %v398
        %v642 = vunpack.c.l.b16 %v399
        %v643 = vunpack.c.l.b16 %v400
        %v644 = vunpack.c.h.b16 %v400
        %v645 = vunpack.c.l.b16 %v401
        %v646 = vunpack.c.l.b16 %v402
        %v647 = vunpack.c.h.b16 %v402
        %v648 = vunpack.c.l.b16 %v403
        %v649 = vunpack.c.l.b16 %v404
        %v650 = vunpack.c.h.b16 %v404
        %v651 = vunpack.c.l.b16 %v405
        %v652 = vunpack.c.l.b16 %v406
        %v653 = vunpack.c.h.b16 %v406
        %v654 = vunpack.c.l.b16 %v407
        %v655 = vunpack.c.l.b16 %v408
        %v656 = vunpack.c.h.b16 %v408
        %v657 = vunpack.c.l.b16 %v409
        %v658 = vunpack.c.l.b16 %v410
        %v659 = vunpack.c.h.b16 %v410
        %v660 = vunpack.c.l.b16 %v411
        %v661 = vunpack.c.l.b16 %v412
        %v662 = vunpack.c.h.b16 %v412
        %v663 = vunpack.c.l.b16 %v413
        %v664 = vunpack.c.l.b16 %v414
        %v665 = vunpack.c.h.b16 %v414
        %v666 = vunpack.c.l.b16 %v415
        %v667 = vunpack.c.l.b16 %v416
        %v668 = vunpack.c.h.b16 %v416
        %v669 = vunpack.c.l.b16 %v417
        %v670 = vunpack.c.l.b16 %v418
        %v671 = vunpack.c.h.b16 %v418
        %v672 = vunpack.c.l.b16 %v419
        %v673 = vunpack.c.l.b16 %v420
        %v674 = vunpack.c.h.b16 %v420
        %v675 = vunpack.c.l.b16 %v421
        %v676 = vunpack.c.l.b16 %v422
        %v677 = vunpack.c.h.b16 %v422
        %v678 = vunpack.c.l.b16 %v423
        %v679 = vunpack.c.l.b16 %v424
        %v680 = vunpack.c.h.b16 %v424
        %v681 = vunpack.c.l.b16 %v425
        %v682 = vunpack.c.l.b16 %v426
        %v683 = vunpack.c.h.b16 %v426
        %v684 = vunpack.c.l.b16 %v427
        %v685 = vunpack.c.l.b16 %v428
        %v686 = vunpack.c.h.b16 %v428
        %v687 = vunpack.c.l.b16 %v429
        %v688 = vunpack.c.l.b16 %v430
        %v689 = vunpack.c.h.b16 %v430
        %v690 = vunpack.c.l.b16 %v431
        %v691 = vunpack.c.l.b16 %v432
        %v692 = vunpack.c.h.b16 %v432
        %v693 = vunpack.c.l.b16 %v433
        %v694 = vunpack.c.l.b16 %v434
        %v695 = vunpack.c.h.b16 %v434
        %v696 = vunpack.c.l.b16 %v435
        %v697 = vunpack.c.l.b16 %v436
        %v698 = vunpack.c.h.b16 %v436
        %v699 = vunpack.c.l.b16 %v437
        %v700 = vunpack.c.l.b16 %v438
        %v701 = vunpack.c.h.b16 %v438
        %v702 = vunpack.c.l.b16 %v439
        %v703 = vunpack.c.l.b16 %v440
        %v704 = vunpack.c.h.b16 %v440
        %v705 = vunpack.c.l.b16 %v441
        %v706 = vunpack.c.l.b16 %v442
        %v707 = vunpack.c.h.b16 %v442
        %v708 = vunpack.c.l.b16 %v443
        %v709 = vunpack.c.l.b16 %v444
        %v710 = vunpack.c.h.b16 %v444
        %v711 = vunpack.c.l.b16 %v445
        %v712 = vunpack.c.l.b16 %v446
        %v713 = vunpack.c.h.b16 %v446
        %v714 = vunpack.c.l.b16 %v447
        %v715 = vunpack.c.l.b16 %v448
        %v716 = vunpack.c.h.b16 %v448
        %v717 = vunpack.c.l.b16 %v449
        %v718 = vunpack.c.l.b16 %v450
        %v719 = vunpack.c.h.b16 %v450
        %v720 = vunpack.c.l.b16 %v451
        %v721 = vunpack.c.l.b16 %v452
        %v722 = vunpack.c.h.b16 %v452
        %v723 = vunpack.c.l.b16 %v453
        %v724 = vunpack.c.l.b16 %v454
        %v725 = vunpack.c.h.b16 %v454
        %v726 = vunpack.c.l.b16 %v455
        %v727 = vunpack.c.l.b16 %v456
        %v728 = vunpack.c.h.b16 %v456
        %v729 = vunpack.c.l.b16 %v457
        %v730 = vunpack.c.l.b16 %v458
        %v731 = vunpack.c.h.b16 %v458
        %v732 = vunpack.c.l.b16 %v459
        %v733 = vunpack.c.l.b16 %v460
        %v734 = vunpack.c.h.b16 %v460
        %v735 = vunpack.c.l.b16 %v461
        %v736 = vunpack.c.l.b16 %v462
        %v737 = vunpack.c.h.b16 %v462
        %v738 = vunpack.c.l.b16 %v463
        %v739 = vunpack.c.l.b16 %v464
        %v740 = vunpack.c.h.b16 %v464
        %v741 = vunpack.c.l.b16 %v465
        %v742 = vpack.c.b16 %v637, %v634
        %v743 = vpack.c.b16 %v638, %v635
        %v744 = vpack.c.b16 %v639, %v636
        %v745 = vpack.c.b16 %v643, %v640
        %v746 = vpack.c.b16 %v644, %v641
        %v747 = vpack.c.b16 %v645, %v642
        %v748 = vpack.c.b16 %v649, %v646
        %v749 = vpack.c.b16 %v650, %v647
        %v750 = vpack.c.b16 %v651, %v648
        %v751 = vpack.c.b16 %v655, %v652
        %v752 = vpack.c.b16 %v656, %v653
        %v753 = vpack.c.b16 %v657, %v654
        %v754 = vpack.c.b16 %v661, %v658
        %v755 = vpack.c.b16 %v662, %v659
        %v756 = vpack.c.b16 %v663, %v660
        %v757 = vpack.c.b16 %v667, %v664
        %v758 = vpack.c.b16 %v668, %v665
        %v759 = vpack.c.b16 %v669, %v666
        %v760 = vpack.c.b16 %v673, %v670
        %v761 = vpack.c.b16 %v674, %v671
        %v762 = vpack.c.b16 %v675, %v672
        %v763 = vpack.c.b16 %v679, %v676
        %v764 = vpack.c.b16 %v680, %v677
        %v765 = vpack.c.b16 %v681, %v678
        %v766 = vpack.c.b16 %v685, %v682
        %v767 = vpack.c.b16 %v686, %v683
        %v768 = vpack.c.b16 %v687, %v684
        %v769 = vpack.c.b16 %v691, %v688
        %v770 = vpack.c.b16 %v692, %v689
        %v771 = vpack.c.b16 %v693, %v690
        %v772 = vpack.c.b16 %v697, %v694
        %v773 = vpack.c.b16 %v698, %v695
        %v774 = vpack.c.b16 %v699, %v696
        %v775 = vpack.c.b16 %v703, %v700
        %v776 = vpack.c.b16 %v704, %v701
        %v777 = vpack.c.b16 %v705, %v702
        %v778 = vpack.c.b16 %v709, %v706
        %v779 = vpack.c.b16 %v710, %v707
        %v780 = vpack.c.b16 %v711, %v708
        %v781 = vpack.c.b16 %v715, %v712
        %v782 = vpack.c.b16 %v716, %v713
        %v783 = vpack.c.b16 %v717, %v714
        %v784 = vpack.c.b16 %v721, %v718
        %v785 = vpack.c.b16 %v722, %v719
        %v786 = vpack.c.b16 %v723, %v720
        %v787 = vpack.c.b16 %v727, %v724
        %v788 = vpack.c.b16 %v728, %v725
        %v789 = vpack.c.b16 %v729, %v726
        %v790 = vpack.c.b16 %v733, %v730
        %v791 = vpack.c.b16 %v734, %v731
        %v792 = vpack.c.b16 %v735, %v732
        %v793 = vpack.c.b16 %v739, %v736
        %v794 = vpack.c.b16 %v740, %v737
        %v795 = vpack.c.b16 %v741, %v738
        %v946 = vunpack.c.l.b16 %v466
        %v947 = vunpack.c.h.b16 %v466
        %v948 = vunpack.c.l.b16 %v467
        %v949 = vunpack.c.l.b16 %v468
        %v950 = vunpack.c.h.b16 %v468
        %v951 = vunpack.c.l.b16 %v469
        %v952 = vunpack.c.l.b16 %v470
        %v953 = vunpack.c.h.b16 %v470
        %v954 = vunpack.c.l.b16 %v471
        %v955 = vunpack.c.l.b16 %v472
        %v956 = vunpack.c.h.b16 %v472
        %v957 = vunpack.c.l.b16 %v473
        %v958 = vunpack.c.l.b16 %v474
        %v959 = vunpack.c.h.b16 %v474
        %v960 = vunpack.c.l.b16 %v475
        %v961 = vunpack.c.l.b16 %v476
        %v962 = vunpack.c.h.b16 %v476
        %v963 = vunpack.c.l.b16 %v477
        %v964 = vunpack.c.l.b16 %v478
        %v965 = vunpack.c.h.b16 %v478
        %v966 = vunpack.c.l.b16 %v479
        %v967 = vunpack.c.l.b16 %v480
        %v968 = vunpack.c.h.b16 %v480
        %v969 = vunpack.c.l.b16 %v481
        %v970 = vunpack.c.l.b16 %v482
        %v971 = vunpack.c.h.b16 %v482
        %v972 = vunpack.c.l.b16 %v483
        %v973 = vunpack.c.l.b16 %v484
        %v974 = vunpack.c.h.b16 %v484
        %v975 = vunpack.c.l.b16 %v485
        %v976 = vunpack.c.l.b16 %v486
        %v977 = vunpack.c.h.b16 %v486
        %v978 = vunpack.c.l.b16 %v487
        %v979 = vunpack.c.l.b16 %v488
        %v980 = vunpack.c.h.b16 %v488
        %v981 = vunpack.c.l.b16 %v489
        %v982 = vunpack.c.l.b16 %v490
        %v983 = vunpack.c.h.b16 %v490
        %v984 = vunpack.c.l.b16 %v491
        %v985 = vunpack.c.l.b16 %v492
        %v986 = vunpack.c.h.b16 %v492
        %v987 = vunpack.c.l.b16 %v493
        %v988 = vunpack.c.l.b16 %v494
        %v989 = vunpack.c.h.b16 %v494
        %v990 = vunpack.c.l.b16 %v495
        %v991 = vunpack.c.l.b16 %v496
        %v992 = vunpack.c.h.b16 %v496
        %v993 = vunpack.c.l.b16 %v497
        %v994 = vunpack.c.l.b16 %v498
        %v995 = vunpack.c.h.b16 %v498
        %v996 = vunpack.c.l.b16 %v499
        %v997 = vunpack.c.l.b16 %v500
        %v998 = vunpack.c.h.b16 %v500
        %v999 = vunpack.c.l.b16 %v501
        %v1000 = vunpack.c.l.b16 %v502
        %v1001 = vunpack.c.h.b16 %v502
        %v1002 = vunpack.c.l.b16 %v503
        %v1003 = vunpack.c.l.b16 %v504
        %v1004 = vunpack.c.h.b16 %v504
        %v1005 = vunpack.c.l.b16 %v505
        %v1006 = vunpack.c.l.b16 %v506
        %v1007 = vunpack.c.h.b16 %v506
        %v1008 = vunpack.c.l.b16 %v507
        %v1009 = vunpack.c.l.b16 %v508
        %v1010 = vunpack.c.h.b16 %v508
        %v1011 = vunpack.c.l.b16 %v509
        %v1012 = vunpack.c.l.b16 %v510
        %v1013 = vunpack.c.h.b16 %v510
        %v1014 = vunpack.c.l.b16 %v511
        %v1015 = vunpack.c.l.b16 %v512
        %v1016 = vunpack.c.h.b16 %v512
        %v1017 = vunpack.c.l.b16 %v513
        %v1018 = vunpack.c.l.b16 %v514
        %v1019 = vunpack.c.h.b16 %v514
        %v1020 = vunpack.c.l.b16 %v515
        %v1021 = vunpack.c.l.b16 %v516
        %v1022 = vunpack.c.h.b16 %v516
        %v1023 = vunpack.c.l.b16 %v517
        %v1024 = vunpack.c.l.b16 %v518
        %v1025 = vunpack.c.h.b16 %v518
        %v1026 = vunpack.c.l.b16 %v519
        %v1027 = vunpack.c.l.b16 %v520
        %v1028 = vunpack.c.h.b16 %v520
        %v1029 = vunpack.c.l.b16 %v521
        %v1030 = vunpack.c.l.b16 %v522
        %v1031 = vunpack.c.h.b16 %v522
        %v1032 = vunpack.c.l.b16 %v523
        %v1033 = vunpack.c.l.b16 %v524
        %v1034 = vunpack.c.h.b16 %v524
        %v1035 = vunpack.c.l.b16 %v525
        %v1036 = vunpack.c.l.b16 %v526
        %v1037 = vunpack.c.h.b16 %v526
        %v1038 = vunpack.c.l.b16 %v527
        %v1039 = vunpack.c.l.b16 %v528
        %v1040 = vunpack.c.h.b16 %v528
        %v1041 = vunpack.c.l.b16 %v529
        %v1042 = vunpack.c.l.b16 %v530
        %v1043 = vunpack.c.h.b16 %v530
        %v1044 = vunpack.c.l.b16 %v531
        %v1045 = vunpack.c.l.b16 %v532
        %v1046 = vunpack.c.h.b16 %v532
        %v1047 = vunpack.c.l.b16 %v533
        %v1048 = vunpack.c.l.b16 %v534
        %v1049 = vunpack.c.h.b16 %v534
        %v1050 = vunpack.c.l.b16 %v535
        %v1051 = vunpack.c.l.b16 %v536
        %v1052 = vunpack.c.h.b16 %v536
        %v1053 = vunpack.c.l.b16 %v537
        %v1054 = vunpack.c.l.b16 %v538
        %v1055 = vunpack.c.h.b16 %v538
        %v1056 = vunpack.c.l.b16 %v539
        %v1057 = vunpack.c.l.b16 %v540
        %v1058 = vunpack.c.h.b16 %v540
        %v1059 = vunpack.c.l.b16 %v541
        %v1060 = vunpack.c.l.b16 %v542
        %v1061 = vunpack.c.h.b16 %v542
        %v1062 = vunpack.c.l.b16 %v543
        %v1063 = vunpack.c.l.b16 %v544
        %v1064 = vunpack.c.h.b16 %v544
        %v1065 = vunpack.c.l.b16 %v545
        %v1066 = vunpack.c.l.b16 %v546
        %v1067 = vunpack.c.h.b16 %v546
        %v1068 = vunpack.c.l.b16 %v547
        %v1069 = vunpack.c.l.b16 %v548
        %v1070 = vunpack.c.h.b16 %v548
        %v1071 = vunpack.c.l.b16 %v549
        %v1072 = vunpack.c.l.b16 %v550
        %v1073 = vunpack.c.h.b16 %v550
        %v1074 = vunpack.c.l.b16 %v551
        %v1075 = vunpack.c.l.b16 %v552
        %v1076 = vunpack.c.h.b16 %v552
        %v1077 = vunpack.c.l.b16 %v553
        %v1078 = vunpack.c.l.b16 %v554
        %v1079 = vunpack.c.h.b16 %v554
        %v1080 = vunpack.c.l.b16 %v555
        %v1081 = vunpack.c.l.b16 %v556
        %v1082 = vunpack.c.h.b16 %v556
        %v1083 = vunpack.c.l.b16 %v557
        %v1084 = vunpack.c.l.b16 %v558
        %v1085 = vunpack.c.h.b16 %v558
        %v1086 = vunpack.c.l.b16 %v559
        %v1087 = vunpack.c.l.b16 %v560
        %v1088 = vunpack.c.h.b16 %v560
        %v1089 = vunpack.c.l.b16 %v561
        %v1090 = vpack.c.b16 %v949, %v946
        %v1091 = vpack.c.b16 %v950, %v947
        %v1092 = vpack.c.b16 %v951, %v948
        %v1093 = vpack.c.b16 %v955, %v952
        %v1094 = vpack.c.b16 %v956, %v953
        %v1095 = vpack.c.b16 %v957, %v954
        %v1096 = vpack.c.b16 %v961, %v958
        %v1097 = vpack.c.b16 %v962, %v959
        %v1098 = vpack.c.b16 %v963, %v960
        %v1099 = vpack.c.b16 %v967, %v964
        %v1100 = vpack.c.b16 %v968, %v965
        %v1101 = vpack.c.b16 %v969, %v966
        %v1102 = vpack.c.b16 %v973, %v970
        %v1103 = vpack.c.b16 %v974, %v971
        %v1104 = vpack.c.b16 %v975, %v972
        %v1105 = vpack.c.b16 %v979, %v976
        %v1106 = vpack.c.b16 %v980, %v977
        %v1107 = vpack.c.b16 %v981, %v978
        %v1108 = vpack.c.b16 %v985, %v982
        %v1109 = vpack.c.b16 %v986, %v983
        %v1110 = vpack.c.b16 %v987, %v984
        %v1111 = vpack.c.b16 %v991, %v988
        %v1112 = vpack.c.b16 %v992, %v989
        %v1113 = vpack.c.b16 %v993, %v990
        %v1114 = vpack.c.b16 %v997, %v994
        %v1115 = vpack.c.b16 %v998, %v995
        %v1116 = vpack.c.b16 %v999, %v996
        %v1117 = vpack.c.b16 %v1003, %v1000
        %v1118 = vpack.c.b16 %v1004, %v1001
        %v1119 = vpack.c.b16 %v1005, %v1002
        %v1120 = vpack.c.b16 %v1009, %v1006
        %v1121 = vpack.c.b16 %v1010, %v1007
        %v1122 = vpack.c.b16 %v1011, %v1008
        %v1123 = vpack.c.b16 %v1015, %v1012
        %v1124 = vpack.c.b16 %v1016, %v1013
        %v1125 = vpack.c.b16 %v1017, %v1014
        %v1126 = vpack.c.b16 %v1021, %v1018
        %v1127 = vpack.c.b16 %v1022, %v1019
        %v1128 = vpack.c.b16 %v1023, %v1020
        %v1129 = vpack.c.b16 %v1027, %v1024
        %v1130 = vpack.c.b16 %v1028, %v1025
        %v1131 = vpack.c.b16 %v1029, %v1026
        %v1132 = vpack.c.b16 %v1033, %v1030
        %v1133 = vpack.c.b16 %v1034, %v1031
        %v1134 = vpack.c.b16 %v1035, %v1032
        %v1135 = vpack.c.b16 %v1039, %v1036
        %v1136 = vpack.c.b16 %v1040, %v1037
        %v1137 = vpack.c.b16 %v1041, %v1038
        %v1138 = vpack.c.b16 %v1045, %v1042
        %v1139 = vpack.c.b16 %v1046, %v1043
        %v1140 = vpack.c.b16 %v1047, %v1044
        %v1141 = vpack.c.b16 %v1051, %v1048
        %v1142 = vpack.c.b16 %v1052, %v1049
        %v1143 = vpack.c.b16 %v1053, %v1050
        %v1144 = vpack.c.b16 %v1057, %v1054
        %v1145 = vpack.c.b16 %v1058, %v1055
        %v1146 = vpack.c.b16 %v1059, %v1056
        %v1147 = vpack.c.b16 %v1063, %v1060
        %v1148 = vpack.c.b16 %v1064, %v1061
        %v1149 = vpack.c.b16 %v1065, %v1062
        %v1150 = vpack.c.b16 %v1069, %v1066
        %v1151 = vpack.c.b16 %v1070, %v1067
        %v1152 = vpack.c.b16 %v1071, %v1068
        %v1153 = vpack.c.b16 %v1075, %v1072
        %v1154 = vpack.c.b16 %v1076, %v1073
        %v1155 = vpack.c.b16 %v1077, %v1074
        %v1156 = vpack.c.b16 %v1081, %v1078
        %v1157 = vpack.c.b16 %v1082, %v1079
        %v1158 = vpack.c.b16 %v1083, %v1080
        %v1159 = vpack.c.b16 %v1087, %v1084
        %v1160 = vpack.c.b16 %v1088, %v1085
        %v1161 = vpack.c.b16 %v1089, %v1086
        %1234 = vmatprep.subr.bf16.mxu0 %v1112
        %1235 = vmatpush1.bf16.msra.mxu0 %v1111
        %1236 = vmatprep.subr.bf16.mxu0 %v1109
        %1237 = vmatpush1.bf16.msra.mxu0 %v1108
        %1238 = vmatprep.subr.bf16.mxu0 %v1106
        %1239 = vmatpush1.bf16.msra.mxu0 %v1105
        %1240 = vmatprep.subr.bf16.mxu0 %v1103
        %1241 = vmatpush1.bf16.msra.mxu0 %v1102
        %1242 = vmatprep.subr.bf16.mxu0 %v1100
        %1243 = vmatpush1.bf16.msra.mxu0 %v1099
        %1244 = vmatprep.subr.bf16.mxu0 %v1097
        %1245 = vmatpush1.bf16.msra.mxu0 %v1096
        %1246 = vmatprep.subr.bf16.mxu0 %v1094
        %1247 = vmatpush1.bf16.msra.mxu0 %v1093
        %1248 = vmatprep.subr.bf16.mxu0 %v1091
        %1249 = vmatpush1.bf16.msra.mxu0 %v1090
        %1250 = vmatprep.subr.bf16.mxu0 %v1136
        %1251 = vmatpush2.bf16.msra.mxu0 %v1135
        %1252 = vmatprep.subr.bf16.mxu0 %v1133
        %1253 = vmatpush2.bf16.msra.mxu0 %v1132
        %1254 = vmatprep.subr.bf16.mxu0 %v1130
        %1255 = vmatpush2.bf16.msra.mxu0 %v1129
        %1256 = vmatprep.subr.bf16.mxu0 %v1127
        %1257 = vmatpush2.bf16.msra.mxu0 %v1126
        %1258 = vmatprep.subr.bf16.mxu0 %v1124
        %1259 = vmatpush2.bf16.msra.mxu0 %v1123
        %1260 = vmatprep.subr.bf16.mxu0 %v1121
        %1261 = vmatpush2.bf16.msra.mxu0 %v1120
        %1262 = vmatprep.subr.bf16.mxu0 %v1118
        %1263 = vmatpush2.bf16.msra.mxu0 %v1117
        %1264 = vmatprep.subr.bf16.mxu0 %v1115
        %1265 = vmatpush2.bf16.msra.mxu0 %v1114
        %1266 = vmatprep.mubr.bf16.mxu0 %v743
        %1267 = vmatmul.mubr.bf16.gmra.mxu0 %v742
        %v1268 = vpop.f32.mrf.mxu0
        %v1269 = vadd.f32 0.0, %v1268
        %v1270 = vpop.f32.mrf.mxu0
        %v1271 = vpop.f32.mrf.mxu0
        %v1272 = vadd.f32 0.0, %v1271
        %v1273 = vpop.f32.mrf.mxu0
        %1274 = vmatprep.mubr.bf16.mxu0 %v746
        %1275 = vmatmul.mubr.bf16.gmra.mxu0 %v745
        %v1276 = vpop.f32.mrf.mxu0
        %v1277 = vadd.f32 0.0, %v1276
        %v1278 = vpop.f32.mrf.mxu0
        %v1279 = vadd.f32 0.0, %v1278
        %v1280 = vpop.f32.mrf.mxu0
        %v1281 = vadd.f32 0.0, %v1280
        %v1282 = vpop.f32.mrf.mxu0
        %v1283 = vadd.f32 0.0, %v1282
        %1284 = vmatprep.mubr.bf16.mxu0 %v749
        %1285 = vmatmul.mubr.bf16.gmra.mxu0 %v748
        %v1286 = vpop.f32.mrf.mxu0
        %v1287 = vadd.f32 0.0, %v1286
        %v1288 = vpop.f32.mrf.mxu0
        %v1289 = vadd.f32 0.0, %v1288
        %v1290 = vpop.f32.mrf.mxu0
        %v1291 = vadd.f32 0.0, %v1290
        %v1292 = vpop.f32.mrf.mxu0
        %v1293 = vadd.f32 0.0, %v1292
        %1294 = vmatprep.mubr.bf16.mxu0 %v752
        %1295 = vmatmul.mubr.bf16.gmra.mxu0 %v751
        %v1296 = vpop.f32.mrf.mxu0
        %v1297 = vadd.f32 0.0, %v1296
        %v1298 = vpop.f32.mrf.mxu0
        %v1299 = vadd.f32 0.0, %v1298
        %v1300 = vpop.f32.mrf.mxu0
        %v1301 = vadd.f32 0.0, %v1300
        %v1302 = vpop.f32.mrf.mxu0
        %v1303 = vadd.f32 0.0, %v1302
        %1304 = vmatprep.mubr.bf16.mxu0 %v755
        %1305 = vmatmul.mubr.bf16.gmra.mxu0 %v754
        %v1306 = vpop.f32.mrf.mxu0
        %v1307 = vadd.f32 0.0, %v1306
        %v1308 = vpop.f32.mrf.mxu0
        %v1309 = vadd.f32 0.0, %v1308
        %v1310 = vpop.f32.mrf.mxu0
        %v1311 = vadd.f32 0.0, %v1310
        %v1312 = vpop.f32.mrf.mxu0
        %v1313 = vadd.f32 0.0, %v1312
        %1314 = vmatprep.mubr.bf16.mxu0 %v758
        %1315 = vmatmul.mubr.bf16.gmra.mxu0 %v757
        %v1316 = vpop.f32.mrf.mxu0
        %v1317 = vadd.f32 0.0, %v1316
        %v1318 = vpop.f32.mrf.mxu0
        %v1319 = vadd.f32 0.0, %v1318
        %v1320 = vpop.f32.mrf.mxu0
        %v1321 = vadd.f32 0.0, %v1320
        %v1322 = vpop.f32.mrf.mxu0
        %v1323 = vadd.f32 0.0, %v1322
        %1324 = vmatprep.mubr.bf16.mxu0 %v761
        %1325 = vmatmul.mubr.bf16.gmra.mxu0 %v760
        %v1326 = vpop.f32.mrf.mxu0
        %v1327 = vadd.f32 0.0, %v1326
        %v1328 = vpop.f32.mrf.mxu0
        %v1329 = vadd.f32 0.0, %v1328
        %v1330 = vpop.f32.mrf.mxu0
        %v1331 = vadd.f32 0.0, %v1330
        %v1332 = vpop.f32.mrf.mxu0
        %v1333 = vadd.f32 0.0, %v1332
        %1334 = vmatprep.mubr.bf16.mxu0 %v764
        %1335 = vmatmul.mubr.bf16.gmra.mxu0 %v763
        %v1336 = vpop.f32.mrf.mxu0
        %v1337 = vadd.f32 0.0, %v1336
        %v1338 = vpop.f32.mrf.mxu0
        %v1339 = vadd.f32 0.0, %v1338
        %v1340 = vpop.f32.mrf.mxu0
        %v1341 = vadd.f32 0.0, %v1340
        %v1342 = vpop.f32.mrf.mxu0
        %v1343 = vadd.f32 0.0, %v1342
        %1344 = vmatprep.mubr.bf16.mxu0 %v767
        %1345 = vmatmul.mubr.bf16.gmra.mxu0 %v766
        %v1346 = vpop.f32.mrf.mxu0
        %v1347 = vadd.f32 0.0, %v1346
        %v1348 = vpop.f32.mrf.mxu0
        %v1349 = vadd.f32 0.0, %v1348
        %v1350 = vpop.f32.mrf.mxu0
        %v1351 = vadd.f32 0.0, %v1350
        %v1352 = vpop.f32.mrf.mxu0
        %v1353 = vadd.f32 0.0, %v1352
        %1354 = vmatprep.mubr.bf16.mxu0 %v770
        %1355 = vmatmul.mubr.bf16.gmra.mxu0 %v769
        %v1356 = vpop.f32.mrf.mxu0
        %v1357 = vadd.f32 0.0, %v1356
        %v1358 = vpop.f32.mrf.mxu0
        %v1359 = vadd.f32 0.0, %v1358
        %v1360 = vpop.f32.mrf.mxu0
        %v1361 = vadd.f32 0.0, %v1360
        %v1362 = vpop.f32.mrf.mxu0
        %v1363 = vadd.f32 0.0, %v1362
        %1364 = vmatprep.mubr.bf16.mxu0 %v773
        %1365 = vmatmul.mubr.bf16.gmra.mxu0 %v772
        %v1366 = vpop.f32.mrf.mxu0
        %v1367 = vadd.f32 0.0, %v1366
        %v1368 = vpop.f32.mrf.mxu0
        %v1369 = vadd.f32 0.0, %v1368
        %v1370 = vpop.f32.mrf.mxu0
        %v1371 = vadd.f32 0.0, %v1370
        %v1372 = vpop.f32.mrf.mxu0
        %v1373 = vadd.f32 0.0, %v1372
        %1374 = vmatprep.mubr.bf16.mxu0 %v776
        %1375 = vmatmul.mubr.bf16.gmra.mxu0 %v775
        %v1376 = vpop.f32.mrf.mxu0
        %v1377 = vadd.f32 0.0, %v1376
        %v1378 = vpop.f32.mrf.mxu0
        %v1379 = vadd.f32 0.0, %v1378
        %v1380 = vpop.f32.mrf.mxu0
        %v1381 = vadd.f32 0.0, %v1380
        %v1382 = vpop.f32.mrf.mxu0
        %v1383 = vadd.f32 0.0, %v1382
        %1384 = vmatprep.mubr.bf16.mxu0 %v779
        %1385 = vmatmul.mubr.bf16.gmra.mxu0 %v778
        %v1386 = vpop.f32.mrf.mxu0
        %v1387 = vadd.f32 0.0, %v1386
        %v1388 = vpop.f32.mrf.mxu0
        %v1389 = vadd.f32 0.0, %v1388
        %v1390 = vpop.f32.mrf.mxu0
        %v1391 = vadd.f32 0.0, %v1390
        %v1392 = vpop.f32.mrf.mxu0
        %v1393 = vadd.f32 0.0, %v1392
        %1394 = vmatprep.mubr.bf16.mxu0 %v782
        %1395 = vmatmul.mubr.bf16.gmra.mxu0 %v781
        %v1396 = vpop.f32.mrf.mxu0
        %v1397 = vadd.f32 0.0, %v1396
        %v1398 = vpop.f32.mrf.mxu0
        %v1399 = vadd.f32 0.0, %v1398
        %v1400 = vpop.f32.mrf.mxu0
        %v1401 = vadd.f32 0.0, %v1400
        %v1402 = vpop.f32.mrf.mxu0
        %v1403 = vadd.f32 0.0, %v1402
        %1404 = vmatprep.mubr.bf16.mxu0 %v785
        %1405 = vmatmul.mubr.bf16.gmra.mxu0 %v784
        %v1406 = vpop.f32.mrf.mxu0
        %v1407 = vadd.f32 0.0, %v1406
        %v1408 = vpop.f32.mrf.mxu0
        %v1409 = vadd.f32 0.0, %v1408
        %v1410 = vpop.f32.mrf.mxu0
        %v1411 = vadd.f32 0.0, %v1410
        %v1412 = vpop.f32.mrf.mxu0
        %v1413 = vadd.f32 0.0, %v1412
        %1414 = vmatprep.mubr.bf16.mxu0 %v788
        %1415 = vmatmul.mubr.bf16.gmra.mxu0 %v787
        %v1416 = vpop.f32.mrf.mxu0
        %v1417 = vadd.f32 0.0, %v1416
        %v1418 = vpop.f32.mrf.mxu0
        %v1419 = vadd.f32 0.0, %v1418
        %v1420 = vpop.f32.mrf.mxu0
        %v1421 = vadd.f32 0.0, %v1420
        %v1422 = vpop.f32.mrf.mxu0
        %v1423 = vadd.f32 0.0, %v1422
        %1424 = vmatprep.mubr.bf16.mxu0 %v791
        %1425 = vmatmul.mubr.bf16.gmra.mxu0 %v790
        %v1426 = vpop.f32.mrf.mxu0
        %v1427 = vpop.f32.mrf.mxu0
        %v1428 = vadd.f32 0.0, %v1427
        %v1429 = vpop.f32.mrf.mxu0
        %v1430 = vpop.f32.mrf.mxu0
        %v1431 = vadd.f32 0.0, %v1430
        %1432 = vmatprep.mubr.bf16.mxu0 %v794
        %1433 = vmatmul.mubr.bf16.gmra.mxu0 %v793
        %v1434 = vpop.f32.mrf.mxu0
        %v1435 = vpop.f32.mrf.mxu0
        %v1436 = vpop.f32.mrf.mxu0
        %v1437 = vpop.f32.mrf.mxu0
        %1438 = vdwg.mxu0
        %1439 = vmatprep.subr.bf16.mxu0 %v1160
        %1440 = vmatpush1.bf16.msra.mxu0 %v1159
        %1441 = vmatprep.subr.bf16.mxu0 %v1157
        %1442 = vmatpush1.bf16.msra.mxu0 %v1156
        %1443 = vmatprep.subr.bf16.mxu0 %v1154
        %1444 = vmatpush1.bf16.msra.mxu0 %v1153
        %1445 = vmatprep.subr.bf16.mxu0 %v1151
        %1446 = vmatpush1.bf16.msra.mxu0 %v1150
        %1447 = vmatprep.subr.bf16.mxu0 %v1148
        %1448 = vmatpush1.bf16.msra.mxu0 %v1147
        %1449 = vmatprep.subr.bf16.mxu0 %v1145
        %1450 = vmatpush1.bf16.msra.mxu0 %v1144
        %1451 = vmatprep.subr.bf16.mxu0 %v1142
        %1452 = vmatpush1.bf16.msra.mxu0 %v1141
        %1453 = vmatprep.subr.bf16.mxu0 %v1139
        %1454 = vmatpush1.bf16.msra.mxu0 %v1138
        %1455 = vmatprep.subr.bf16.mxu0 0
        %1456 = vmatpush2.bf16.msra.mxu0 0
        %1457 = vmatprep.subr.bf16.mxu0 0
        %1458 = vmatpush2.bf16.msra.mxu0 0
        %1459 = vmatprep.subr.bf16.mxu0 0
        %1460 = vmatpush2.bf16.msra.mxu0 0
        %1461 = vmatprep.subr.bf16.mxu0 0
        %1462 = vmatpush2.bf16.msra.mxu0 0
        %1463 = vmatprep.subr.bf16.mxu0 0
        %1464 = vmatpush2.bf16.msra.mxu0 0
        %1465 = vmatprep.subr.bf16.mxu0 0
        %1466 = vmatpush2.bf16.msra.mxu0 0
        %1467 = vmatprep.subr.bf16.mxu0 0
        %1468 = vmatpush2.bf16.msra.mxu0 0
        %1469 = vmatprep.subr.bf16.mxu0 0
        %1470 = vmatpush2.bf16.msra.mxu0 0
        %1471 = vmatprep.mubr.bf16.mxu0 0
        %1472 = vmatmul.mubr.bf16.gmra.mxu0 %v744
        %v1473 = vpop.f32.mrf.mxu0
        %v1474 = vadd.f32 %v1269, %v1473
        %v1475 = vpop.f32.mrf.mxu0
        %v1476 = vpop.f32.mrf.mxu0
        %v1477 = vadd.f32 %v1272, %v1476
        %v1478 = vpop.f32.mrf.mxu0
        %1479 = vmatprep.mubr.bf16.mxu0 0
        %1480 = vmatmul.mubr.bf16.gmra.mxu0 %v747
        %v1481 = vpop.f32.mrf.mxu0
        %v1482 = vadd.f32 %v1277, %v1481
        %v1483 = vpop.f32.mrf.mxu0
        %v1484 = vadd.f32 %v1279, %v1483
        %v1485 = vpop.f32.mrf.mxu0
        %v1486 = vadd.f32 %v1281, %v1485
        %v1487 = vpop.f32.mrf.mxu0
        %v1488 = vadd.f32 %v1283, %v1487
        %1489 = vmatprep.mubr.bf16.mxu0 0
        %1490 = vmatmul.mubr.bf16.gmra.mxu0 %v750
        %v1491 = vpop.f32.mrf.mxu0
        %v1492 = vadd.f32 %v1287, %v1491
        %v1493 = vpop.f32.mrf.mxu0
        %v1494 = vadd.f32 %v1289, %v1493
        %v1495 = vpop.f32.mrf.mxu0
        %v1496 = vadd.f32 %v1291, %v1495
        %v1497 = vpop.f32.mrf.mxu0
        %v1498 = vadd.f32 %v1293, %v1497
        %1499 = vmatprep.mubr.bf16.mxu0 0
        %1500 = vmatmul.mubr.bf16.gmra.mxu0 %v753
        %v1501 = vpop.f32.mrf.mxu0
        %v1502 = vadd.f32 %v1297, %v1501
        %v1503 = vpop.f32.mrf.mxu0
        %v1504 = vadd.f32 %v1299, %v1503
        %v1505 = vpop.f32.mrf.mxu0
        %v1506 = vadd.f32 %v1301, %v1505
        %v1507 = vpop.f32.mrf.mxu0
        %v1508 = vadd.f32 %v1303, %v1507
        %1509 = vmatprep.mubr.bf16.mxu0 0
        %1510 = vmatmul.mubr.bf16.gmra.mxu0 %v756
        %v1511 = vpop.f32.mrf.mxu0
        %v1512 = vadd.f32 %v1307, %v1511
        %v1513 = vpop.f32.mrf.mxu0
        %v1514 = vadd.f32 %v1309, %v1513
        %v1515 = vpop.f32.mrf.mxu0
        %v1516 = vadd.f32 %v1311, %v1515
        %v1517 = vpop.f32.mrf.mxu0
        %v1518 = vadd.f32 %v1313, %v1517
        %1519 = vmatprep.mubr.bf16.mxu0 0
        %1520 = vmatmul.mubr.bf16.gmra.mxu0 %v759
        %v1521 = vpop.f32.mrf.mxu0
        %v1522 = vadd.f32 %v1317, %v1521
        %v1523 = vpop.f32.mrf.mxu0
        %v1524 = vadd.f32 %v1319, %v1523
        %v1525 = vpop.f32.mrf.mxu0
        %v1526 = vadd.f32 %v1321, %v1525
        %v1527 = vpop.f32.mrf.mxu0
        %v1528 = vadd.f32 %v1323, %v1527
        %1529 = vmatprep.mubr.bf16.mxu0 0
        %1530 = vmatmul.mubr.bf16.gmra.mxu0 %v762
        %v1531 = vpop.f32.mrf.mxu0
        %v1532 = vadd.f32 %v1327, %v1531
        %v1533 = vpop.f32.mrf.mxu0
        %v1534 = vadd.f32 %v1329, %v1533
        %v1535 = vpop.f32.mrf.mxu0
        %v1536 = vadd.f32 %v1331, %v1535
        %v1537 = vpop.f32.mrf.mxu0
        %v1538 = vadd.f32 %v1333, %v1537
        %1539 = vmatprep.mubr.bf16.mxu0 0
        %1540 = vmatmul.mubr.bf16.gmra.mxu0 %v765
        %v1541 = vpop.f32.mrf.mxu0
        %v1542 = vadd.f32 %v1337, %v1541
        %v1543 = vpop.f32.mrf.mxu0
        %v1544 = vadd.f32 %v1339, %v1543
        %v1545 = vpop.f32.mrf.mxu0
        %v1546 = vadd.f32 %v1341, %v1545
        %v1547 = vpop.f32.mrf.mxu0
        %v1548 = vadd.f32 %v1343, %v1547
        %1549 = vmatprep.mubr.bf16.mxu0 0
        %1550 = vmatmul.mubr.bf16.gmra.mxu0 %v768
        %v1551 = vpop.f32.mrf.mxu0
        %v1552 = vadd.f32 %v1347, %v1551
        %v1553 = vpop.f32.mrf.mxu0
        %v1554 = vadd.f32 %v1349, %v1553
        %v1555 = vpop.f32.mrf.mxu0
        %v1556 = vadd.f32 %v1351, %v1555
        %v1557 = vpop.f32.mrf.mxu0
        %v1558 = vadd.f32 %v1353, %v1557
        %1559 = vmatprep.mubr.bf16.mxu0 0
        %1560 = vmatmul.mubr.bf16.gmra.mxu0 %v771
        %v1561 = vpop.f32.mrf.mxu0
        %v1562 = vadd.f32 %v1357, %v1561
        %v1563 = vpop.f32.mrf.mxu0
        %v1564 = vadd.f32 %v1359, %v1563
        %v1565 = vpop.f32.mrf.mxu0
        %v1566 = vadd.f32 %v1361, %v1565
        %v1567 = vpop.f32.mrf.mxu0
        %v1568 = vadd.f32 %v1363, %v1567
        %1569 = vmatprep.mubr.bf16.mxu0 0
        %1570 = vmatmul.mubr.bf16.gmra.mxu0 %v774
        %v1571 = vpop.f32.mrf.mxu0
        %v1572 = vadd.f32 %v1367, %v1571
        %v1573 = vpop.f32.mrf.mxu0
        %v1574 = vadd.f32 %v1369, %v1573
        %v1575 = vpop.f32.mrf.mxu0
        %v1576 = vadd.f32 %v1371, %v1575
        %v1577 = vpop.f32.mrf.mxu0
        %v1578 = vadd.f32 %v1373, %v1577
        %1579 = vmatprep.mubr.bf16.mxu0 0
        %1580 = vmatmul.mubr.bf16.gmra.mxu0 %v777
        %v1581 = vpop.f32.mrf.mxu0
        %v1582 = vadd.f32 %v1377, %v1581
        %v1583 = vpop.f32.mrf.mxu0
        %v1584 = vadd.f32 %v1379, %v1583
        %v1585 = vpop.f32.mrf.mxu0
        %v1586 = vadd.f32 %v1381, %v1585
        %v1587 = vpop.f32.mrf.mxu0
        %v1588 = vadd.f32 %v1383, %v1587
        %1589 = vmatprep.mubr.bf16.mxu0 0
        %1590 = vmatmul.mubr.bf16.gmra.mxu0 %v780
        %v1591 = vpop.f32.mrf.mxu0
        %v1592 = vadd.f32 %v1387, %v1591
        %v1593 = vpop.f32.mrf.mxu0
        %v1594 = vadd.f32 %v1389, %v1593
        %v1595 = vpop.f32.mrf.mxu0
        %v1596 = vadd.f32 %v1391, %v1595
        %v1597 = vpop.f32.mrf.mxu0
        %v1598 = vadd.f32 %v1393, %v1597
        %1599 = vmatprep.mubr.bf16.mxu0 0
        %1600 = vmatmul.mubr.bf16.gmra.mxu0 %v783
        %v1601 = vpop.f32.mrf.mxu0
        %v1602 = vadd.f32 %v1397, %v1601
        %v1603 = vpop.f32.mrf.mxu0
        %v1604 = vadd.f32 %v1399, %v1603
        %v1605 = vpop.f32.mrf.mxu0
        %v1606 = vadd.f32 %v1401, %v1605
        %v1607 = vpop.f32.mrf.mxu0
        %v1608 = vadd.f32 %v1403, %v1607
        %1609 = vmatprep.mubr.bf16.mxu0 0
        %1610 = vmatmul.mubr.bf16.gmra.mxu0 %v786
        %v1611 = vpop.f32.mrf.mxu0
        %v1612 = vadd.f32 %v1407, %v1611
        %v1613 = vpop.f32.mrf.mxu0
        %v1614 = vadd.f32 %v1409, %v1613
        %v1615 = vpop.f32.mrf.mxu0
        %v1616 = vadd.f32 %v1411, %v1615
        %v1617 = vpop.f32.mrf.mxu0
        %v1618 = vadd.f32 %v1413, %v1617
        %1619 = vmatprep.mubr.bf16.mxu0 0
        %1620 = vmatmul.mubr.bf16.gmra.mxu0 %v789
        %v1621 = vpop.f32.mrf.mxu0
        %v1622 = vadd.f32 %v1417, %v1621
        %v1623 = vpop.f32.mrf.mxu0
        %v1624 = vadd.f32 %v1419, %v1623
        %v1625 = vpop.f32.mrf.mxu0
        %v1626 = vadd.f32 %v1421, %v1625
        %v1627 = vpop.f32.mrf.mxu0
        %v1628 = vadd.f32 %v1423, %v1627
        %1629 = vmatprep.mubr.bf16.mxu0 0
        %1630 = vmatmul.mubr.bf16.gmra.mxu0 %v792
        %v1631 = vpop.f32.mrf.mxu0
        %v1632 = vpop.f32.mrf.mxu0
        %v1633 = vadd.f32 %v1428, %v1632
        %v1634 = vpop.f32.mrf.mxu0
        %v1635 = vpop.f32.mrf.mxu0
        %v1636 = vadd.f32 %v1431, %v1635
        %1637 = vmatprep.mubr.bf16.mxu0 0
        %1638 = vmatmul.mubr.bf16.gmra.mxu0 %v795
        %v1639 = vpop.f32.mrf.mxu0
        %v1640 = vpop.f32.mrf.mxu0
        %v1641 = vpop.f32.mrf.mxu0
        %v1642 = vpop.f32.mrf.mxu0
        %1643 = vdwg.mxu0
        %1644 = vmatprep.subr.bf16.mxu0 0
        %1645 = vmatpush1.bf16.msra.mxu0 %v1113
        %1646 = vmatprep.subr.bf16.mxu0 0
        %1647 = vmatpush1.bf16.msra.mxu0 %v1110
        %1648 = vmatprep.subr.bf16.mxu0 0
        %1649 = vmatpush1.bf16.msra.mxu0 %v1107
        %1650 = vmatprep.subr.bf16.mxu0 0
        %1651 = vmatpush1.bf16.msra.mxu0 %v1104
        %1652 = vmatprep.subr.bf16.mxu0 0
        %1653 = vmatpush1.bf16.msra.mxu0 %v1101
        %1654 = vmatprep.subr.bf16.mxu0 0
        %1655 = vmatpush1.bf16.msra.mxu0 %v1098
        %1656 = vmatprep.subr.bf16.mxu0 0
        %1657 = vmatpush1.bf16.msra.mxu0 %v1095
        %1658 = vmatprep.subr.bf16.mxu0 0
        %1659 = vmatpush1.bf16.msra.mxu0 %v1092
        %1660 = vmatprep.subr.bf16.mxu0 0
        %1661 = vmatpush2.bf16.msra.mxu0 %v1137
        %1662 = vmatprep.subr.bf16.mxu0 0
        %1663 = vmatpush2.bf16.msra.mxu0 %v1134
        %1664 = vmatprep.subr.bf16.mxu0 0
        %1665 = vmatpush2.bf16.msra.mxu0 %v1131
        %1666 = vmatprep.subr.bf16.mxu0 0
        %1667 = vmatpush2.bf16.msra.mxu0 %v1128
        %1668 = vmatprep.subr.bf16.mxu0 0
        %1669 = vmatpush2.bf16.msra.mxu0 %v1125
        %1670 = vmatprep.subr.bf16.mxu0 0
        %1671 = vmatpush2.bf16.msra.mxu0 %v1122
        %1672 = vmatprep.subr.bf16.mxu0 0
        %1673 = vmatpush2.bf16.msra.mxu0 %v1119
        %1674 = vmatprep.subr.bf16.mxu0 0
        %1675 = vmatpush2.bf16.msra.mxu0 %v1116
        %1676 = vmatprep.mubr.bf16.mxu0 %v743
        %1677 = vmatmul.mubr.bf16.gmra.mxu0 %v742
        %v1678 = vpop.f32.mrf.mxu0
        %v1679 = vpop.f32.mrf.mxu0
        %v1680 = vpop.f32.mrf.mxu0
        %v1681 = vpop.f32.mrf.mxu0
        %1682 = vmatprep.mubr.bf16.mxu0 %v746
        %1683 = vmatmul.mubr.bf16.gmra.mxu0 %v745
        %v1684 = vpop.f32.mrf.mxu0
        %v1685 = vpop.f32.mrf.mxu0
        %v1686 = vpop.f32.mrf.mxu0
        %v1687 = vpop.f32.mrf.mxu0
        %1688 = vmatprep.mubr.bf16.mxu0 %v749
        %1689 = vmatmul.mubr.bf16.gmra.mxu0 %v748
        %v1690 = vpop.f32.mrf.mxu0
        %v1691 = vadd.f32 0.0, %v1690
        %v1692 = vpop.f32.mrf.mxu0
        %v1693 = vpop.f32.mrf.mxu0
        %v1694 = vadd.f32 0.0, %v1693
        %v1695 = vpop.f32.mrf.mxu0
        %1696 = vmatprep.mubr.bf16.mxu0 %v752
        %1697 = vmatmul.mubr.bf16.gmra.mxu0 %v751
        %v1698 = vpop.f32.mrf.mxu0
        %v1699 = vadd.f32 0.0, %v1698
        %v1700 = vpop.f32.mrf.mxu0
        %v1701 = vpop.f32.mrf.mxu0
        %v1702 = vadd.f32 0.0, %v1701
        %v1703 = vpop.f32.mrf.mxu0
        %1704 = vmatprep.mubr.bf16.mxu0 %v755
        %1705 = vmatmul.mubr.bf16.gmra.mxu0 %v754
        %v1706 = vpop.f32.mrf.mxu0
        %v1707 = vadd.f32 0.0, %v1706
        %v1708 = vpop.f32.mrf.mxu0
        %v1709 = vpop.f32.mrf.mxu0
        %v1710 = vadd.f32 0.0, %v1709
        %v1711 = vpop.f32.mrf.mxu0
        %1712 = vmatprep.mubr.bf16.mxu0 %v758
        %1713 = vmatmul.mubr.bf16.gmra.mxu0 %v757
        %v1714 = vpop.f32.mrf.mxu0
        %v1715 = vadd.f32 0.0, %v1714
        %v1716 = vpop.f32.mrf.mxu0
        %v1717 = vpop.f32.mrf.mxu0
        %v1718 = vadd.f32 0.0, %v1717
        %v1719 = vpop.f32.mrf.mxu0
        %1720 = vmatprep.mubr.bf16.mxu0 %v761
        %1721 = vmatmul.mubr.bf16.gmra.mxu0 %v760
        %v1722 = vpop.f32.mrf.mxu0
        %v1723 = vadd.f32 0.0, %v1722
        %v1724 = vpop.f32.mrf.mxu0
        %v1725 = vpop.f32.mrf.mxu0
        %v1726 = vadd.f32 0.0, %v1725
        %v1727 = vpop.f32.mrf.mxu0
        %1728 = vmatprep.mubr.bf16.mxu0 %v764
        %1729 = vmatmul.mubr.bf16.gmra.mxu0 %v763
        %v1730 = vpop.f32.mrf.mxu0
        %v1731 = vadd.f32 0.0, %v1730
        %v1732 = vpop.f32.mrf.mxu0
        %v1733 = vpop.f32.mrf.mxu0
        %v1734 = vadd.f32 0.0, %v1733
        %v1735 = vpop.f32.mrf.mxu0
        %1736 = vmatprep.mubr.bf16.mxu0 %v767
        %1737 = vmatmul.mubr.bf16.gmra.mxu0 %v766
        %v1738 = vpop.f32.mrf.mxu0
        %v1739 = vadd.f32 0.0, %v1738
        %v1740 = vpop.f32.mrf.mxu0
        %v1741 = vpop.f32.mrf.mxu0
        %v1742 = vadd.f32 0.0, %v1741
        %v1743 = vpop.f32.mrf.mxu0
        %1744 = vmatprep.mubr.bf16.mxu0 %v770
        %1745 = vmatmul.mubr.bf16.gmra.mxu0 %v769
        %v1746 = vpop.f32.mrf.mxu0
        %v1747 = vadd.f32 0.0, %v1746
        %v1748 = vpop.f32.mrf.mxu0
        %v1749 = vpop.f32.mrf.mxu0
        %v1750 = vadd.f32 0.0, %v1749
        %v1751 = vpop.f32.mrf.mxu0
        %1752 = vmatprep.mubr.bf16.mxu0 %v773
        %1753 = vmatmul.mubr.bf16.gmra.mxu0 %v772
        %v1754 = vpop.f32.mrf.mxu0
        %v1755 = vadd.f32 0.0, %v1754
        %v1756 = vpop.f32.mrf.mxu0
        %v1757 = vpop.f32.mrf.mxu0
        %v1758 = vadd.f32 0.0, %v1757
        %v1759 = vpop.f32.mrf.mxu0
        %1760 = vmatprep.mubr.bf16.mxu0 %v776
        %1761 = vmatmul.mubr.bf16.gmra.mxu0 %v775
        %v1762 = vpop.f32.mrf.mxu0
        %v1763 = vadd.f32 0.0, %v1762
        %v1764 = vpop.f32.mrf.mxu0
        %v1765 = vpop.f32.mrf.mxu0
        %v1766 = vadd.f32 0.0, %v1765
        %v1767 = vpop.f32.mrf.mxu0
        %1768 = vmatprep.mubr.bf16.mxu0 %v779
        %1769 = vmatmul.mubr.bf16.gmra.mxu0 %v778
        %v1770 = vpop.f32.mrf.mxu0
        %v1771 = vadd.f32 0.0, %v1770
        %v1772 = vpop.f32.mrf.mxu0
        %v1773 = vpop.f32.mrf.mxu0
        %v1774 = vadd.f32 0.0, %v1773
        %v1775 = vpop.f32.mrf.mxu0
        %1776 = vmatprep.mubr.bf16.mxu0 %v782
        %1777 = vmatmul.mubr.bf16.gmra.mxu0 %v781
        %v1778 = vpop.f32.mrf.mxu0
        %v1779 = vadd.f32 0.0, %v1778
        %v1780 = vpop.f32.mrf.mxu0
        %v1781 = vpop.f32.mrf.mxu0
        %v1782 = vadd.f32 0.0, %v1781
        %v1783 = vpop.f32.mrf.mxu0
        %1784 = vmatprep.mubr.bf16.mxu0 %v785
        %1785 = vmatmul.mubr.bf16.gmra.mxu0 %v784
        %v1786 = vpop.f32.mrf.mxu0
        %v1787 = vadd.f32 0.0, %v1786
        %v1788 = vpop.f32.mrf.mxu0
        %v1789 = vpop.f32.mrf.mxu0
        %v1790 = vadd.f32 0.0, %v1789
        %v1791 = vpop.f32.mrf.mxu0
        %1792 = vmatprep.mubr.bf16.mxu0 %v788
        %1793 = vmatmul.mubr.bf16.gmra.mxu0 %v787
        %v1794 = vpop.f32.mrf.mxu0
        %v1795 = vadd.f32 0.0, %v1794
        %v1796 = vpop.f32.mrf.mxu0
        %v1797 = vpop.f32.mrf.mxu0
        %v1798 = vadd.f32 0.0, %v1797
        %v1799 = vpop.f32.mrf.mxu0
        %1800 = vmatprep.mubr.bf16.mxu0 %v791
        %1801 = vmatmul.mubr.bf16.gmra.mxu0 %v790
        %v1802 = vpop.f32.mrf.mxu0
        %v1803 = vadd.f32 0.0, %v1802
        %v1804 = vpop.f32.mrf.mxu0
        %v1805 = vpop.f32.mrf.mxu0
        %v1806 = vadd.f32 0.0, %v1805
        %v1807 = vpop.f32.mrf.mxu0
        %1808 = vmatprep.mubr.bf16.mxu0 %v794
        %1809 = vmatmul.mubr.bf16.gmra.mxu0 %v793
        %v1810 = vpop.f32.mrf.mxu0
        %v1811 = vadd.f32 0.0, %v1810
        %v1812 = vpop.f32.mrf.mxu0
        %v1813 = vpop.f32.mrf.mxu0
        %v1814 = vadd.f32 0.0, %v1813
        %v1815 = vpop.f32.mrf.mxu0
        %1816 = vdwg.mxu0
        %1817 = vmatprep.subr.bf16.mxu0 0
        %1818 = vmatpush1.bf16.msra.mxu0 %v1161
        %1819 = vmatprep.subr.bf16.mxu0 0
        %1820 = vmatpush1.bf16.msra.mxu0 %v1158
        %1821 = vmatprep.subr.bf16.mxu0 0
        %1822 = vmatpush1.bf16.msra.mxu0 %v1155
        %1823 = vmatprep.subr.bf16.mxu0 0
        %1824 = vmatpush1.bf16.msra.mxu0 %v1152
        %1825 = vmatprep.subr.bf16.mxu0 0
        %1826 = vmatpush1.bf16.msra.mxu0 %v1149
        %1827 = vmatprep.subr.bf16.mxu0 0
        %1828 = vmatpush1.bf16.msra.mxu0 %v1146
        %1829 = vmatprep.subr.bf16.mxu0 0
        %1830 = vmatpush1.bf16.msra.mxu0 %v1143
        %1831 = vmatprep.subr.bf16.mxu0 0
        %1832 = vmatpush1.bf16.msra.mxu0 %v1140
        %1833 = vmatprep.subr.bf16.mxu0 0
        %1834 = vmatpush2.bf16.msra.mxu0 0
        %1835 = vmatprep.subr.bf16.mxu0 0
        %1836 = vmatpush2.bf16.msra.mxu0 0
        %1837 = vmatprep.subr.bf16.mxu0 0
        %1838 = vmatpush2.bf16.msra.mxu0 0
        %1839 = vmatprep.subr.bf16.mxu0 0
        %1840 = vmatpush2.bf16.msra.mxu0 0
        %1841 = vmatprep.subr.bf16.mxu0 0
        %1842 = vmatpush2.bf16.msra.mxu0 0
        %1843 = vmatprep.subr.bf16.mxu0 0
        %1844 = vmatpush2.bf16.msra.mxu0 0
        %1845 = vmatprep.subr.bf16.mxu0 0
        %1846 = vmatpush2.bf16.msra.mxu0 0
        %1847 = vmatprep.subr.bf16.mxu0 0
        %1848 = vmatpush2.bf16.msra.mxu0 0
        %1849 = vmatprep.mubr.bf16.mxu0 0
        %1850 = vmatmul.mubr.bf16.gmra.mxu0 %v744
        %v1851 = vpop.f32.mrf.mxu0
        %v1852 = vpop.f32.mrf.mxu0
        %v1853 = vpop.f32.mrf.mxu0
        %v1854 = vpop.f32.mrf.mxu0
        %1855 = vmatprep.mubr.bf16.mxu0 0
        %1856 = vmatmul.mubr.bf16.gmra.mxu0 %v747
        %v1857 = vpop.f32.mrf.mxu0
        %v1858 = vpop.f32.mrf.mxu0
        %v1859 = vpop.f32.mrf.mxu0
        %v1860 = vpop.f32.mrf.mxu0
        %1861 = vmatprep.mubr.bf16.mxu0 0
        %1862 = vmatmul.mubr.bf16.gmra.mxu0 %v750
        %v1863 = vpop.f32.mrf.mxu0
        %v1864 = vadd.f32 %v1691, %v1863
        %v1865 = vpop.f32.mrf.mxu0
        %v1866 = vpop.f32.mrf.mxu0
        %v1867 = vadd.f32 %v1694, %v1866
        %v1868 = vpop.f32.mrf.mxu0
        %1869 = vmatprep.mubr.bf16.mxu0 0
        %1870 = vmatmul.mubr.bf16.gmra.mxu0 %v753
        %v1871 = vpop.f32.mrf.mxu0
        %v1872 = vadd.f32 %v1699, %v1871
        %v1873 = vpop.f32.mrf.mxu0
        %v1874 = vpop.f32.mrf.mxu0
        %v1875 = vadd.f32 %v1702, %v1874
        %v1876 = vpop.f32.mrf.mxu0
        %1877 = vmatprep.mubr.bf16.mxu0 0
        %1878 = vmatmul.mubr.bf16.gmra.mxu0 %v756
        %v1879 = vpop.f32.mrf.mxu0
        %v1880 = vadd.f32 %v1707, %v1879
        %v1881 = vpop.f32.mrf.mxu0
        %v1882 = vpop.f32.mrf.mxu0
        %v1883 = vadd.f32 %v1710, %v1882
        %v1884 = vpop.f32.mrf.mxu0
        %1885 = vmatprep.mubr.bf16.mxu0 0
        %1886 = vmatmul.mubr.bf16.gmra.mxu0 %v759
        %v1887 = vpop.f32.mrf.mxu0
        %v1888 = vadd.f32 %v1715, %v1887
        %v1889 = vpop.f32.mrf.mxu0
        %v1890 = vpop.f32.mrf.mxu0
        %v1891 = vadd.f32 %v1718, %v1890
        %v1892 = vpop.f32.mrf.mxu0
        %1893 = vmatprep.mubr.bf16.mxu0 0
        %1894 = vmatmul.mubr.bf16.gmra.mxu0 %v762
        %v1895 = vpop.f32.mrf.mxu0
        %v1896 = vadd.f32 %v1723, %v1895
        %v1897 = vpop.f32.mrf.mxu0
        %v1898 = vpop.f32.mrf.mxu0
        %v1899 = vadd.f32 %v1726, %v1898
        %v1900 = vpop.f32.mrf.mxu0
        %1901 = vmatprep.mubr.bf16.mxu0 0
        %1902 = vmatmul.mubr.bf16.gmra.mxu0 %v765
        %v1903 = vpop.f32.mrf.mxu0
        %v1904 = vadd.f32 %v1731, %v1903
        %v1905 = vpop.f32.mrf.mxu0
        %v1906 = vpop.f32.mrf.mxu0
        %v1907 = vadd.f32 %v1734, %v1906
        %v1908 = vpop.f32.mrf.mxu0
        %1909 = vmatprep.mubr.bf16.mxu0 0
        %1910 = vmatmul.mubr.bf16.gmra.mxu0 %v768
        %v1911 = vpop.f32.mrf.mxu0
        %v1912 = vadd.f32 %v1739, %v1911
        %v1913 = vpop.f32.mrf.mxu0
        %v1914 = vpop.f32.mrf.mxu0
        %v1915 = vadd.f32 %v1742, %v1914
        %v1916 = vpop.f32.mrf.mxu0
        %1917 = vmatprep.mubr.bf16.mxu0 0
        %1918 = vmatmul.mubr.bf16.gmra.mxu0 %v771
        %v1919 = vpop.f32.mrf.mxu0
        %v1920 = vadd.f32 %v1747, %v1919
        %v1921 = vpop.f32.mrf.mxu0
        %v1922 = vpop.f32.mrf.mxu0
        %v1923 = vadd.f32 %v1750, %v1922
        %v1924 = vpop.f32.mrf.mxu0
        %1925 = vmatprep.mubr.bf16.mxu0 0
        %1926 = vmatmul.mubr.bf16.gmra.mxu0 %v774
        %v1927 = vpop.f32.mrf.mxu0
        %v1928 = vadd.f32 %v1755, %v1927
        %v1929 = vpop.f32.mrf.mxu0
        %v1930 = vpop.f32.mrf.mxu0
        %v1931 = vadd.f32 %v1758, %v1930
        %v1932 = vpop.f32.mrf.mxu0
        %1933 = vmatprep.mubr.bf16.mxu0 0
        %1934 = vmatmul.mubr.bf16.gmra.mxu0 %v777
        %v1935 = vpop.f32.mrf.mxu0
        %v1936 = vadd.f32 %v1763, %v1935
        %v1937 = vpop.f32.mrf.mxu0
        %v1938 = vpop.f32.mrf.mxu0
        %v1939 = vadd.f32 %v1766, %v1938
        %v1940 = vpop.f32.mrf.mxu0
        %1941 = vmatprep.mubr.bf16.mxu0 0
        %1942 = vmatmul.mubr.bf16.gmra.mxu0 %v780
        %v1943 = vpop.f32.mrf.mxu0
        %v1944 = vadd.f32 %v1771, %v1943
        %v1945 = vpop.f32.mrf.mxu0
        %v1946 = vpop.f32.mrf.mxu0
        %v1947 = vadd.f32 %v1774, %v1946
        %v1948 = vpop.f32.mrf.mxu0
        %1949 = vmatprep.mubr.bf16.mxu0 0
        %1950 = vmatmul.mubr.bf16.gmra.mxu0 %v783
        %v1951 = vpop.f32.mrf.mxu0
        %v1952 = vadd.f32 %v1779, %v1951
        %v1953 = vpop.f32.mrf.mxu0
        %v1954 = vpop.f32.mrf.mxu0
        %v1955 = vadd.f32 %v1782, %v1954
        %v1956 = vpop.f32.mrf.mxu0
        %1957 = vmatprep.mubr.bf16.mxu0 0
        %1958 = vmatmul.mubr.bf16.gmra.mxu0 %v786
        %v1959 = vpop.f32.mrf.mxu0
        %v1960 = vadd.f32 %v1787, %v1959
        %v1961 = vpop.f32.mrf.mxu0
        %v1962 = vpop.f32.mrf.mxu0
        %v1963 = vadd.f32 %v1790, %v1962
        %v1964 = vpop.f32.mrf.mxu0
        %1965 = vmatprep.mubr.bf16.mxu0 0
        %1966 = vmatmul.mubr.bf16.gmra.mxu0 %v789
        %v1967 = vpop.f32.mrf.mxu0
        %v1968 = vadd.f32 %v1795, %v1967
        %v1969 = vpop.f32.mrf.mxu0
        %v1970 = vpop.f32.mrf.mxu0
        %v1971 = vadd.f32 %v1798, %v1970
        %v1972 = vpop.f32.mrf.mxu0
        %1973 = vmatprep.mubr.bf16.mxu0 0
        %1974 = vmatmul.mubr.bf16.gmra.mxu0 %v792
        %v1975 = vpop.f32.mrf.mxu0
        %v1976 = vadd.f32 %v1803, %v1975
        %v1977 = vpop.f32.mrf.mxu0
        %v1978 = vpop.f32.mrf.mxu0
        %v1979 = vadd.f32 %v1806, %v1978
        %v1980 = vpop.f32.mrf.mxu0
        %1981 = vmatprep.mubr.bf16.mxu0 0
        %1982 = vmatmul.mubr.bf16.gmra.mxu0 %v795
        %v1983 = vpop.f32.mrf.mxu0
        %v1984 = vadd.f32 %v1811, %v1983
        %v1985 = vpop.f32.mrf.mxu0
        %v1986 = vpop.f32.mrf.mxu0
        %v1987 = vadd.f32 %v1814, %v1986
        %v1988 = vpop.f32.mrf.mxu0
        %1989 = vdwg.mxu0
        %v1990 = vadd.f32 %v1474, %v1484
        %v1991 = vadd.f32 %v1477, %v1488
        %v1992 = vadd.f32 %v1482, %v1494
        %v1993 = vadd.f32 %v1486, %v1498
        %v1994 = vadd.f32 %v1492, %v1504
        %v1995 = vadd.f32 %v1496, %v1508
        %v1996 = vadd.f32 %v1502, %v1514
        %v1997 = vadd.f32 %v1506, %v1518
        %v1998 = vadd.f32 %v1512, %v1524
        %v1999 = vadd.f32 %v1516, %v1528
        %v2000 = vadd.f32 %v1522, %v1534
        %v2001 = vadd.f32 %v1526, %v1538
        %v2002 = vadd.f32 %v1532, %v1544
        %v2003 = vadd.f32 %v1536, %v1548
        %v2004 = vadd.f32 %v1542, %v1554
        %v2005 = vadd.f32 %v1546, %v1558
        %v2006 = vadd.f32 %v1552, %v1564
        %v2007 = vadd.f32 %v1556, %v1568
        %v2008 = vadd.f32 %v1562, %v1574
        %v2009 = vadd.f32 %v1566, %v1578
        %v2010 = vadd.f32 %v1572, %v1584
        %v2011 = vadd.f32 %v1576, %v1588
        %v2012 = vadd.f32 %v1582, %v1594
        %v2013 = vadd.f32 %v1586, %v1598
        %v2014 = vadd.f32 %v1592, %v1604
        %v2015 = vadd.f32 %v1596, %v1608
        %v2016 = vadd.f32 %v1602, %v1614
        %v2017 = vadd.f32 %v1606, %v1618
        %v2018 = vadd.f32 %v1612, %v1624
        %v2019 = vadd.f32 %v1616, %v1628
        %v2020 = vadd.f32 %v1622, %v1633
        %v2021 = vadd.f32 %v1626, %v1636
        %v2022 = vadd.f32 %v1990, %v1864
        %v2023 = vadd.f32 %v1991, %v1867
        %v2024 = vadd.f32 %v1992, %v1872
        %v2025 = vadd.f32 %v1993, %v1875
        %v2026 = vadd.f32 %v1994, %v1880
        %v2027 = vadd.f32 %v1995, %v1883
        %v2028 = vadd.f32 %v1996, %v1888
        %v2029 = vadd.f32 %v1997, %v1891
        %v2030 = vadd.f32 %v1998, %v1896
        %v2031 = vadd.f32 %v1999, %v1899
        %v2032 = vadd.f32 %v2000, %v1904
        %v2033 = vadd.f32 %v2001, %v1907
        %v2034 = vadd.f32 %v2002, %v1912
        %v2035 = vadd.f32 %v2003, %v1915
        %v2036 = vadd.f32 %v2004, %v1920
        %v2037 = vadd.f32 %v2005, %v1923
        %v2038 = vadd.f32 %v2006, %v1928
        %v2039 = vadd.f32 %v2007, %v1931
        %v2040 = vadd.f32 %v2008, %v1936
        %v2041 = vadd.f32 %v2009, %v1939
        %v2042 = vadd.f32 %v2010, %v1944
        %v2043 = vadd.f32 %v2011, %v1947
        %v2044 = vadd.f32 %v2012, %v1952
        %v2045 = vadd.f32 %v2013, %v1955
        %v2046 = vadd.f32 %v2014, %v1960
        %v2047 = vadd.f32 %v2015, %v1963
        %v2048 = vadd.f32 %v2016, %v1968
        %v2049 = vadd.f32 %v2017, %v1971
        %v2050 = vadd.f32 %v2018, %v1976
        %v2051 = vadd.f32 %v2019, %v1979
        %v2052 = vadd.f32 %v2020, %v1984
        %v2053 = vadd.f32 %v2021, %v1987
        %v2054 = vadd.f32 %v2022, %v2023
        %v2055 = vadd.f32 %v2054, %v2024
        %v2056 = vadd.f32 %v2055, %v2025
        %v2057 = vadd.f32 %v2056, %v2026
        %v2058 = vadd.f32 %v2057, %v2027
        %v2059 = vadd.f32 %v2058, %v2028
        %v2060 = vadd.f32 %v2059, %v2029
        %v2061 = vadd.f32 %v2060, %v2030
        %v2062 = vadd.f32 %v2061, %v2031
        %v2063 = vadd.f32 %v2062, %v2032
        %v2064 = vadd.f32 %v2063, %v2033
        %v2065 = vadd.f32 %v2064, %v2034
        %v2066 = vadd.f32 %v2065, %v2035
        %v2067 = vadd.f32 %v2066, %v2036
        %v2068 = vadd.f32 %v2067, %v2037
        %v2069 = vadd.f32 %v2068, %v2038
        %v2070 = vadd.f32 %v2069, %v2039
        %v2071 = vadd.f32 %v2070, %v2040
        %v2072 = vadd.f32 %v2071, %v2041
        %v2073 = vadd.f32 %v2072, %v2042
        %v2074 = vadd.f32 %v2073, %v2043
        %v2075 = vadd.f32 %v2074, %v2044
        %v2076 = vadd.f32 %v2075, %v2045
        %v2077 = vadd.f32 %v2076, %v2046
        %v2078 = vadd.f32 %v2077, %v2047
        %v2079 = vadd.f32 %v2078, %v2048
        %v2080 = vadd.f32 %v2079, %v2049
        %v2081 = vadd.f32 %v2080, %v2050
        %v2082 = vadd.f32 %v2081, %v2051
        %v2083 = vadd.f32 %v2082, %v2052
        %v2084 = vadd.f32 %v2083, %v2053
        %v2085 = vrot.slane %v2084, 4
        %v2086 = vadd.f32 %v2084, %v2085
        %v2087 = vrot.slane %v2086, 2
        %v2088 = vadd.f32 %v2086, %v2087
        %v2089 = vrot.slane %v2088, 1
        %v2090 = vadd.f32 %v2088, %v2089
        %v2091 = vmul.f32 %v2090, 0.00390625
        %v2092 = vsub.f32 %v2022, %v2091
        %v2093 = vsub.f32 %v2023, %v2091
        %v2094 = vsub.f32 %v2024, %v2091
        %v2095 = vsub.f32 %v2025, %v2091
        %v2096 = vsub.f32 %v2026, %v2091
        %v2097 = vsub.f32 %v2027, %v2091
        %v2098 = vsub.f32 %v2028, %v2091
        %v2099 = vsub.f32 %v2029, %v2091
        %v2100 = vsub.f32 %v2030, %v2091
        %v2101 = vsub.f32 %v2031, %v2091
        %v2102 = vsub.f32 %v2032, %v2091
        %v2103 = vsub.f32 %v2033, %v2091
        %v2104 = vsub.f32 %v2034, %v2091
        %v2105 = vsub.f32 %v2035, %v2091
        %v2106 = vsub.f32 %v2036, %v2091
        %v2107 = vsub.f32 %v2037, %v2091
        %v2108 = vsub.f32 %v2038, %v2091
        %v2109 = vsub.f32 %v2039, %v2091
        %v2110 = vsub.f32 %v2040, %v2091
        %v2111 = vsub.f32 %v2041, %v2091
        %v2112 = vsub.f32 %v2042, %v2091
        %v2113 = vsub.f32 %v2043, %v2091
        %v2114 = vsub.f32 %v2044, %v2091
        %v2115 = vsub.f32 %v2045, %v2091
        %v2116 = vsub.f32 %v2046, %v2091
        %v2117 = vsub.f32 %v2047, %v2091
        %v2118 = vsub.f32 %v2048, %v2091
        %v2119 = vsub.f32 %v2049, %v2091
        %v2120 = vsub.f32 %v2050, %v2091
        %v2121 = vsub.f32 %v2051, %v2091
        %v2122 = vsub.f32 %v2052, %v2091
        %v2123 = vsub.f32 %v2053, %v2091
        %v2124 = vmul.f32 %v2092, %v2092
        %v2125 = vmul.f32 %v2093, %v2093
        %v2126 = vmul.f32 %v2094, %v2094
        %v2127 = vmul.f32 %v2095, %v2095
        %v2128 = vmul.f32 %v2096, %v2096
        %v2129 = vmul.f32 %v2097, %v2097
        %v2130 = vmul.f32 %v2098, %v2098
        %v2131 = vmul.f32 %v2099, %v2099
        %v2132 = vmul.f32 %v2100, %v2100
        %v2133 = vmul.f32 %v2101, %v2101
        %v2134 = vmul.f32 %v2102, %v2102
        %v2135 = vmul.f32 %v2103, %v2103
        %v2136 = vmul.f32 %v2104, %v2104
        %v2137 = vmul.f32 %v2105, %v2105
        %v2138 = vmul.f32 %v2106, %v2106
        %v2139 = vmul.f32 %v2107, %v2107
        %v2140 = vmul.f32 %v2108, %v2108
        %v2141 = vmul.f32 %v2109, %v2109
        %v2142 = vmul.f32 %v2110, %v2110
        %v2143 = vmul.f32 %v2111, %v2111
        %v2144 = vmul.f32 %v2112, %v2112
        %v2145 = vmul.f32 %v2113, %v2113
        %v2146 = vmul.f32 %v2114, %v2114
        %v2147 = vmul.f32 %v2115, %v2115
        %v2148 = vmul.f32 %v2116, %v2116
        %v2149 = vmul.f32 %v2117, %v2117
        %v2150 = vmul.f32 %v2118, %v2118
        %v2151 = vmul.f32 %v2119, %v2119
        %v2152 = vmul.f32 %v2120, %v2120
        %v2153 = vmul.f32 %v2121, %v2121
        %v2154 = vmul.f32 %v2122, %v2122
        %v2155 = vmul.f32 %v2123, %v2123
        %v2156 = vadd.f32 %v2124, %v2125
        %v2157 = vadd.f32 %v2156, %v2126
        %v2158 = vadd.f32 %v2157, %v2127
        %v2159 = vadd.f32 %v2158, %v2128
        %v2160 = vadd.f32 %v2159, %v2129
        %v2161 = vadd.f32 %v2160, %v2130
        %v2162 = vadd.f32 %v2161, %v2131
        %v2163 = vadd.f32 %v2162, %v2132
        %v2164 = vadd.f32 %v2163, %v2133
        %v2165 = vadd.f32 %v2164, %v2134
        %v2166 = vadd.f32 %v2165, %v2135
        %v2167 = vadd.f32 %v2166, %v2136
        %v2168 = vadd.f32 %v2167, %v2137
        %v2169 = vadd.f32 %v2168, %v2138
        %v2170 = vadd.f32 %v2169, %v2139
        %v2171 = vadd.f32 %v2170, %v2140
        %v2172 = vadd.f32 %v2171, %v2141
        %v2173 = vadd.f32 %v2172, %v2142
        %v2174 = vadd.f32 %v2173, %v2143
        %v2175 = vadd.f32 %v2174, %v2144
        %v2176 = vadd.f32 %v2175, %v2145
        %v2177 = vadd.f32 %v2176, %v2146
        %v2178 = vadd.f32 %v2177, %v2147
        %v2179 = vadd.f32 %v2178, %v2148
        %v2180 = vadd.f32 %v2179, %v2149
        %v2181 = vadd.f32 %v2180, %v2150
        %v2182 = vadd.f32 %v2181, %v2151
        %v2183 = vadd.f32 %v2182, %v2152
        %v2184 = vadd.f32 %v2183, %v2153
        %v2185 = vadd.f32 %v2184, %v2154
        %v2186 = vadd.f32 %v2185, %v2155
        %v2187 = vrot.slane %v2186, 4
        %v2188 = vadd.f32 %v2186, %v2187
        %v2189 = vrot.slane %v2188, 2
        %v2190 = vadd.f32 %v2188, %v2189
        %v2191 = vrot.slane %v2190, 1
        %v2192 = vadd.f32 %v2190, %v2191
        %v2193 = vmul.f32 %v2192, 0.00390625
        %v2194 = vadd.f32 %v2193, 1e-05
        %v2195 = vrsqrt.pop %v2194
        %v2196 = vld [vmem:[%s3] sm:$0x1]
        %v2197 = vmul.f32 %v2195, %v2196
        %v2198 = vlaneseq
        %v2199 = vshrl.u32 %v2198, 7
        %v2200 = vsub.s32 0, %v2199
        %v2201 = vrot.slane %v2197, %v2200
        %v2202 = vmul.f32 %v2092, %v2201
        %v2203 = vmul.f32 %v2093, %v2201
        %v2204 = vmul.f32 %v2094, %v2201
        %v2205 = vmul.f32 %v2095, %v2201
        %v2206 = vmul.f32 %v2096, %v2201
        %v2207 = vmul.f32 %v2097, %v2201
        %v2208 = vmul.f32 %v2098, %v2201
        %v2209 = vmul.f32 %v2099, %v2201
        %v2210 = vmul.f32 %v2100, %v2201
        %v2211 = vmul.f32 %v2101, %v2201
        %v2212 = vmul.f32 %v2102, %v2201
        %v2213 = vmul.f32 %v2103, %v2201
        %v2214 = vmul.f32 %v2104, %v2201
        %v2215 = vmul.f32 %v2105, %v2201
        %v2216 = vmul.f32 %v2106, %v2201
        %v2217 = vmul.f32 %v2107, %v2201
        %v2218 = vmul.f32 %v2108, %v2201
        %v2219 = vmul.f32 %v2109, %v2201
        %v2220 = vmul.f32 %v2110, %v2201
        %v2221 = vmul.f32 %v2111, %v2201
        %v2222 = vmul.f32 %v2112, %v2201
        %v2223 = vmul.f32 %v2113, %v2201
        %v2224 = vmul.f32 %v2114, %v2201
        %v2225 = vmul.f32 %v2115, %v2201
        %v2226 = vmul.f32 %v2116, %v2201
        %v2227 = vmul.f32 %v2117, %v2201
        %v2228 = vmul.f32 %v2118, %v2201
        %v2229 = vmul.f32 %v2119, %v2201
        %v2230 = vmul.f32 %v2120, %v2201
        %v2231 = vmul.f32 %v2121, %v2201
        %v2232 = vmul.f32 %v2122, %v2201
        %v2233 = vmul.f32 %v2123, %v2201
        %v2234 = vld [vmem:[%s4] sm:$0x1]
        %v2236 = vlaneseq
        %v2237 = vshrl.u32 %v2236, 7
        %v2238 = vsub.s32 0, %v2237
        %v2239 = vrot.slane %v2234, %v2238
        %v2241 = vadd.f32 %v2202, %v2239
        %v2242 = vadd.f32 %v2203, %v2239
        %v2243 = vadd.f32 %v2204, %v2239
        %v2244 = vadd.f32 %v2205, %v2239
        %v2245 = vadd.f32 %v2206, %v2239
        %v2246 = vadd.f32 %v2207, %v2239
        %v2247 = vadd.f32 %v2208, %v2239
        %v2248 = vadd.f32 %v2209, %v2239
        %v2249 = vadd.f32 %v2210, %v2239
        %v2250 = vadd.f32 %v2211, %v2239
        %v2251 = vadd.f32 %v2212, %v2239
        %v2252 = vadd.f32 %v2213, %v2239
        %v2253 = vadd.f32 %v2214, %v2239
        %v2254 = vadd.f32 %v2215, %v2239
        %v2255 = vadd.f32 %v2216, %v2239
        %v2256 = vadd.f32 %v2217, %v2239
        %v2257 = vadd.f32 %v2218, %v2239
        %v2258 = vadd.f32 %v2219, %v2239
        %v2259 = vadd.f32 %v2220, %v2239
        %v2260 = vadd.f32 %v2221, %v2239
        %v2261 = vadd.f32 %v2222, %v2239
        %v2262 = vadd.f32 %v2223, %v2239
        %v2263 = vadd.f32 %v2224, %v2239
        %v2264 = vadd.f32 %v2225, %v2239
        %v2265 = vadd.f32 %v2226, %v2239
        %v2266 = vadd.f32 %v2227, %v2239
        %v2267 = vadd.f32 %v2228, %v2239
        %v2268 = vadd.f32 %v2229, %v2239
        %v2269 = vadd.f32 %v2230, %v2239
        %v2270 = vadd.f32 %v2231, %v2239
        %v2271 = vadd.f32 %v2232, %v2239
        %v2272 = vadd.f32 %v2233, %v2239
        %v2273 = vmax.f32 %v2241, 0.0
        %v2274 = vmax.f32 %v2242, 0.0
        %v2275 = vmax.f32 %v2243, 0.0
        %v2276 = vmax.f32 %v2244, 0.0
        %v2277 = vmax.f32 %v2245, 0.0
        %v2278 = vmax.f32 %v2246, 0.0
        %v2279 = vmax.f32 %v2247, 0.0
        %v2280 = vmax.f32 %v2248, 0.0
        %v2281 = vmax.f32 %v2249, 0.0
        %v2282 = vmax.f32 %v2250, 0.0
        %v2283 = vmax.f32 %v2251, 0.0
        %v2284 = vmax.f32 %v2252, 0.0
        %v2285 = vmax.f32 %v2253, 0.0
        %v2286 = vmax.f32 %v2254, 0.0
        %v2287 = vmax.f32 %v2255, 0.0
        %v2288 = vmax.f32 %v2256, 0.0
        %v2289 = vmax.f32 %v2257, 0.0
        %v2290 = vmax.f32 %v2258, 0.0
        %v2291 = vmax.f32 %v2259, 0.0
        %v2292 = vmax.f32 %v2260, 0.0
        %v2293 = vmax.f32 %v2261, 0.0
        %v2294 = vmax.f32 %v2262, 0.0
        %v2295 = vmax.f32 %v2263, 0.0
        %v2296 = vmax.f32 %v2264, 0.0
        %v2297 = vmax.f32 %v2265, 0.0
        %v2298 = vmax.f32 %v2266, 0.0
        %v2299 = vmax.f32 %v2267, 0.0
        %v2300 = vmax.f32 %v2268, 0.0
        %v2301 = vmax.f32 %v2269, 0.0
        %v2302 = vmax.f32 %v2270, 0.0
        %v2303 = vmax.f32 %v2271, 0.0
        %v2304 = vmax.f32 %v2272, 0.0
        %v2305 = vpack.c.bf16 %v2274, %v2273
        %v2306 = vpack.c.bf16 %v2276, %v2275
        %v2307 = vpack.c.bf16 %v2278, %v2277
        %v2308 = vpack.c.bf16 %v2280, %v2279
        %v2309 = vpack.c.bf16 %v2282, %v2281
        %v2310 = vpack.c.bf16 %v2284, %v2283
        %v2311 = vpack.c.bf16 %v2286, %v2285
        %v2312 = vpack.c.bf16 %v2288, %v2287
        %v2313 = vpack.c.bf16 %v2290, %v2289
        %v2314 = vpack.c.bf16 %v2292, %v2291
        %v2315 = vpack.c.bf16 %v2294, %v2293
        %v2316 = vpack.c.bf16 %v2296, %v2295
        %v2317 = vpack.c.bf16 %v2298, %v2297
        %v2318 = vpack.c.bf16 %v2300, %v2299
        %v2319 = vpack.c.bf16 %v2302, %v2301
        %v2320 = vpack.c.bf16 %v2304, %v2303
        %v2337 = vunpack.c.l.b16 %v2305
        %v2338 = vunpack.c.h.b16 %v2305
        %v2339 = vunpack.c.l.b16 %v2306
        %v2340 = vunpack.c.h.b16 %v2306
        %v2341 = vunpack.c.l.b16 %v2307
        %v2342 = vunpack.c.h.b16 %v2307
        %v2343 = vunpack.c.l.b16 %v2308
        %v2344 = vunpack.c.h.b16 %v2308
        %v2345 = vunpack.c.l.b16 %v2309
        %v2346 = vunpack.c.h.b16 %v2309
        %v2347 = vunpack.c.l.b16 %v2310
        %v2348 = vunpack.c.h.b16 %v2310
        %v2349 = vunpack.c.l.b16 %v2311
        %v2350 = vunpack.c.h.b16 %v2311
        %v2351 = vunpack.c.l.b16 %v2312
        %v2352 = vunpack.c.h.b16 %v2312
        %v2353 = vunpack.c.l.b16 %v2313
        %v2354 = vunpack.c.h.b16 %v2313
        %v2355 = vunpack.c.l.b16 %v2314
        %v2356 = vunpack.c.h.b16 %v2314
        %v2357 = vunpack.c.l.b16 %v2315
        %v2358 = vunpack.c.h.b16 %v2315
        %v2359 = vunpack.c.l.b16 %v2316
        %v2360 = vunpack.c.h.b16 %v2316
        %v2361 = vunpack.c.l.b16 %v2317
        %v2362 = vunpack.c.h.b16 %v2317
        %v2363 = vunpack.c.l.b16 %v2318
        %v2364 = vunpack.c.h.b16 %v2318
        %v2365 = vunpack.c.l.b16 %v2319
        %v2366 = vunpack.c.h.b16 %v2319
        %v2367 = vunpack.c.l.b16 %v2320
        %v2368 = vunpack.c.h.b16 %v2320
        %v2369 = vpack.c.b16 %v2337, %v2337
        %v2370 = vpack.c.b16 %v2338, %v2338
        %v2371 = vpack.c.b16 %v2339, %v2339
        %v2372 = vpack.c.b16 %v2340, %v2340
        %v2373 = vpack.c.b16 %v2341, %v2341
        %v2374 = vpack.c.b16 %v2342, %v2342
        %v2375 = vpack.c.b16 %v2343, %v2343
        %v2376 = vpack.c.b16 %v2344, %v2344
        %v2377 = vpack.c.b16 %v2345, %v2345
        %v2378 = vpack.c.b16 %v2346, %v2346
        %v2379 = vpack.c.b16 %v2347, %v2347
        %v2380 = vpack.c.b16 %v2348, %v2348
        %v2381 = vpack.c.b16 %v2349, %v2349
        %v2382 = vpack.c.b16 %v2350, %v2350
        %v2383 = vpack.c.b16 %v2351, %v2351
        %v2384 = vpack.c.b16 %v2352, %v2352
        %v2385 = vpack.c.b16 %v2353, %v2353
        %v2386 = vpack.c.b16 %v2354, %v2354
        %v2387 = vpack.c.b16 %v2355, %v2355
        %v2388 = vpack.c.b16 %v2356, %v2356
        %v2389 = vpack.c.b16 %v2357, %v2357
        %v2390 = vpack.c.b16 %v2358, %v2358
        %v2391 = vpack.c.b16 %v2359, %v2359
        %v2392 = vpack.c.b16 %v2360, %v2360
        %v2393 = vpack.c.b16 %v2361, %v2361
        %v2394 = vpack.c.b16 %v2362, %v2362
        %v2395 = vpack.c.b16 %v2363, %v2363
        %v2396 = vpack.c.b16 %v2364, %v2364
        %v2397 = vpack.c.b16 %v2365, %v2365
        %v2398 = vpack.c.b16 %v2366, %v2366
        %v2399 = vpack.c.b16 %v2367, %v2367
        %v2400 = vpack.c.b16 %v2368, %v2368
        %s2433 = scalar_lea.vmem [#allocation2], 24
        %2434 = vst [vmem:[%s2433 + $0x4] sm:$0xf] %v2369
        %2435 = vst [vmem:[%s2433 + $0x10] sm:$0xf] %v2370
        %2436 = vst [vmem:[%s2433 + $0x1c] sm:$0xf] %v2371
        %2437 = vst [vmem:[%s2433 + $0x28] sm:$0xf] %v2372
        %2438 = vst [vmem:[%s2433 + $0x34] sm:$0xf] %v2373
        %2439 = vst [vmem:[%s2433 + $0x40] sm:$0xf] %v2374
        %2440 = vst [vmem:[%s2433 + $0x4c] sm:$0xf] %v2375
        %2441 = vst [vmem:[%s2433 + $0x58] sm:$0xf] %v2376
        %2442 = vst [vmem:[%s2433 + $0x64] sm:$0xf] %v2377
        %2443 = vst [vmem:[%s2433 + $0x70] sm:$0xf] %v2378
        %2444 = vst [vmem:[%s2433 + $0x7c] sm:$0xf] %v2379
        %2445 = vst [vmem:[%s2433 + $0x88] sm:$0xf] %v2380
        %2446 = vst [vmem:[%s2433 + $0x94] sm:$0xf] %v2381
        %2447 = vst [vmem:[%s2433 + $0xa0] sm:$0xf] %v2382
        %2448 = vst [vmem:[%s2433 + $0xac] sm:$0xf] %v2383
        %2449 = vst [vmem:[%s2433 + $0xb8] sm:$0xf] %v2384
        %2450 = vst [vmem:[%s2433 + $0xc4] sm:$0xf] %v2385
        %2451 = vst [vmem:[%s2433 + $0xd0] sm:$0xf] %v2386
        %2452 = vst [vmem:[%s2433 + $0xdc] sm:$0xf] %v2387
        %2453 = vst [vmem:[%s2433 + $0xe8] sm:$0xf] %v2388
        %2454 = vst [vmem:[%s2433 + $0xf4] sm:$0xf] %v2389
        %2455 = vst [vmem:[%s2433 + $0x100] sm:$0xf] %v2390
        %2456 = vst [vmem:[%s2433 + $0x10c] sm:$0xf] %v2391
        %2457 = vst [vmem:[%s2433 + $0x118] sm:$0xf] %v2392
        %2458 = vst [vmem:[%s2433 + $0x124] sm:$0xf] %v2393
        %2459 = vst [vmem:[%s2433 + $0x130] sm:$0xf] %v2394
        %2460 = vst [vmem:[%s2433 + $0x13c] sm:$0xf] %v2395
        %2461 = vst [vmem:[%s2433 + $0x148] sm:$0xf] %v2396
        %2462 = vst [vmem:[%s2433 + $0x154] sm:$0xf] %v2397
        %2463 = vst [vmem:[%s2433 + $0x160] sm:$0xf] %v2398
        %2464 = vst [vmem:[%s2433 + $0x16c] sm:$0xf] %v2399
        %2465 = vst [vmem:[%s2433 + $0x178] sm:$0xf] %v2400
        %vm2466 = vsmask.f32 256
        %vm2467 = vsmask.f32 4368
        %vm2468 = vmor %vm2466, %vm2467
        %v2470 = vshrl.u32 %v2369, 16
        %v2472 = vrot.slane %v2470, 7
        %v2473 = vshll.u32 %v2369, 16
        %v2475 = vor.u32 %v2472, %v2473
        %v2476 = vrot.slane %v2472, 4
        %v2478 = vshrl.u32 %v2370, 16
        %v2480 = vrot.slane %v2478, 7
        %v2481 = vshll.u32 %v2370, 16
        %v2483 = vor.u32 %v2480, %v2481
        %v2484 = vsel %vm2468, %v2476, %v2483
        %v2486 = vshrl.u32 %v2371, 16
        %v2488 = vrot.slane %v2486, 7
        %v2489 = vshll.u32 %v2371, 16
        %v2491 = vor.u32 %v2488, %v2489
        %v2492 = vrot.slane %v2488, 4
        %v2494 = vshrl.u32 %v2372, 16
        %v2496 = vrot.slane %v2494, 7
        %v2497 = vshll.u32 %v2372, 16
        %v2499 = vor.u32 %v2496, %v2497
        %v2500 = vsel %vm2468, %v2492, %v2499
        %v2502 = vshrl.u32 %v2373, 16
        %v2504 = vrot.slane %v2502, 7
        %v2505 = vshll.u32 %v2373, 16
        %v2507 = vor.u32 %v2504, %v2505
        %v2508 = vrot.slane %v2504, 4
        %v2510 = vshrl.u32 %v2374, 16
        %v2512 = vrot.slane %v2510, 7
        %v2513 = vshll.u32 %v2374, 16
        %v2515 = vor.u32 %v2512, %v2513
        %v2516 = vsel %vm2468, %v2508, %v2515
        %v2518 = vshrl.u32 %v2375, 16
        %v2520 = vrot.slane %v2518, 7
        %v2521 = vshll.u32 %v2375, 16
        %v2523 = vor.u32 %v2520, %v2521
        %v2524 = vrot.slane %v2520, 4
        %v2526 = vshrl.u32 %v2376, 16
        %v2528 = vrot.slane %v2526, 7
        %v2529 = vshll.u32 %v2376, 16
        %v2531 = vor.u32 %v2528, %v2529
        %v2532 = vsel %vm2468, %v2524, %v2531
        %v2534 = vshrl.u32 %v2377, 16
        %v2536 = vrot.slane %v2534, 7
        %v2537 = vshll.u32 %v2377, 16
        %v2539 = vor.u32 %v2536, %v2537
        %v2540 = vrot.slane %v2536, 4
        %v2542 = vshrl.u32 %v2378, 16
        %v2544 = vrot.slane %v2542, 7
        %v2545 = vshll.u32 %v2378, 16
        %v2547 = vor.u32 %v2544, %v2545
        %v2548 = vsel %vm2468, %v2540, %v2547
        %v2550 = vshrl.u32 %v2379, 16
        %v2552 = vrot.slane %v2550, 7
        %v2553 = vshll.u32 %v2379, 16
        %v2555 = vor.u32 %v2552, %v2553
        %v2556 = vrot.slane %v2552, 4
        %v2558 = vshrl.u32 %v2380, 16
        %v2560 = vrot.slane %v2558, 7
        %v2561 = vshll.u32 %v2380, 16
        %v2563 = vor.u32 %v2560, %v2561
        %v2564 = vsel %vm2468, %v2556, %v2563
        %v2566 = vshrl.u32 %v2381, 16
        %v2568 = vrot.slane %v2566, 7
        %v2569 = vshll.u32 %v2381, 16
        %v2571 = vor.u32 %v2568, %v2569
        %v2572 = vrot.slane %v2568, 4
        %v2574 = vshrl.u32 %v2382, 16
        %v2576 = vrot.slane %v2574, 7
        %v2577 = vshll.u32 %v2382, 16
        %v2579 = vor.u32 %v2576, %v2577
        %v2580 = vsel %vm2468, %v2572, %v2579
        %v2582 = vshrl.u32 %v2383, 16
        %v2584 = vrot.slane %v2582, 7
        %v2585 = vshll.u32 %v2383, 16
        %v2587 = vor.u32 %v2584, %v2585
        %v2588 = vrot.slane %v2584, 4
        %v2590 = vshrl.u32 %v2384, 16
        %v2592 = vrot.slane %v2590, 7
        %v2593 = vshll.u32 %v2384, 16
        %v2595 = vor.u32 %v2592, %v2593
        %v2596 = vsel %vm2468, %v2588, %v2595
        %v2598 = vshrl.u32 %v2385, 16
        %v2600 = vrot.slane %v2598, 7
        %v2601 = vshll.u32 %v2385, 16
        %v2603 = vor.u32 %v2600, %v2601
        %v2604 = vrot.slane %v2600, 4
        %v2606 = vshrl.u32 %v2386, 16
        %v2608 = vrot.slane %v2606, 7
        %v2609 = vshll.u32 %v2386, 16
        %v2611 = vor.u32 %v2608, %v2609
        %v2612 = vsel %vm2468, %v2604, %v2611
        %v2614 = vshrl.u32 %v2387, 16
        %v2616 = vrot.slane %v2614, 7
        %v2617 = vshll.u32 %v2387, 16
        %v2619 = vor.u32 %v2616, %v2617
        %v2620 = vrot.slane %v2616, 4
        %v2622 = vshrl.u32 %v2388, 16
        %v2624 = vrot.slane %v2622, 7
        %v2625 = vshll.u32 %v2388, 16
        %v2627 = vor.u32 %v2624, %v2625
        %v2628 = vsel %vm2468, %v2620, %v2627
        %v2630 = vshrl.u32 %v2389, 16
        %v2632 = vrot.slane %v2630, 7
        %v2633 = vshll.u32 %v2389, 16
        %v2635 = vor.u32 %v2632, %v2633
        %v2636 = vrot.slane %v2632, 4
        %v2638 = vshrl.u32 %v2390, 16
        %v2640 = vrot.slane %v2638, 7
        %v2641 = vshll.u32 %v2390, 16
        %v2643 = vor.u32 %v2640, %v2641
        %v2644 = vsel %vm2468, %v2636, %v2643
        %v2646 = vshrl.u32 %v2391, 16
        %v2648 = vrot.slane %v2646, 7
        %v2649 = vshll.u32 %v2391, 16
        %v2651 = vor.u32 %v2648, %v2649
        %v2652 = vrot.slane %v2648, 4
        %v2654 = vshrl.u32 %v2392, 16
        %v2656 = vrot.slane %v2654, 7
        %v2657 = vshll.u32 %v2392, 16
        %v2659 = vor.u32 %v2656, %v2657
        %v2660 = vsel %vm2468, %v2652, %v2659
        %v2662 = vshrl.u32 %v2393, 16
        %v2664 = vrot.slane %v2662, 7
        %v2665 = vshll.u32 %v2393, 16
        %v2667 = vor.u32 %v2664, %v2665
        %v2668 = vrot.slane %v2664, 4
        %v2670 = vshrl.u32 %v2394, 16
        %v2672 = vrot.slane %v2670, 7
        %v2673 = vshll.u32 %v2394, 16
        %v2675 = vor.u32 %v2672, %v2673
        %v2676 = vsel %vm2468, %v2668, %v2675
        %v2678 = vshrl.u32 %v2395, 16
        %v2680 = vrot.slane %v2678, 7
        %v2681 = vshll.u32 %v2395, 16
        %v2683 = vor.u32 %v2680, %v2681
        %v2684 = vrot.slane %v2680, 4
        %v2686 = vshrl.u32 %v2396, 16
        %v2688 = vrot.slane %v2686, 7
        %v2689 = vshll.u32 %v2396, 16
        %v2691 = vor.u32 %v2688, %v2689
        %v2692 = vsel %vm2468, %v2684, %v2691
        %v2694 = vshrl.u32 %v2397, 16
        %v2696 = vrot.slane %v2694, 7
        %v2697 = vshll.u32 %v2397, 16
        %v2699 = vor.u32 %v2696, %v2697
        %v2700 = vrot.slane %v2696, 4
        %v2702 = vshrl.u32 %v2398, 16
        %v2704 = vrot.slane %v2702, 7
        %v2705 = vshll.u32 %v2398, 16
        %v2707 = vor.u32 %v2704, %v2705
        %v2708 = vsel %vm2468, %v2700, %v2707
        %v2710 = vshrl.u32 %v2399, 16
        %v2712 = vrot.slane %v2710, 7
        %v2713 = vshll.u32 %v2399, 16
        %v2715 = vor.u32 %v2712, %v2713
        %v2716 = vrot.slane %v2712, 4
        %v2718 = vshrl.u32 %v2400, 16
        %v2720 = vrot.slane %v2718, 7
        %v2721 = vshll.u32 %v2400, 16
        %v2723 = vor.u32 %v2720, %v2721
        %v2724 = vsel %vm2468, %v2716, %v2723
        %vm2757 = vcmask 1043456
        %vm2758 = vsmask.f32 7938
        %vm2759 = vmand %vm2757, %vm2758
        %v2760 = vld [vmem:[%s2433] sm:$0xf]
        %v2761 = vsel %vm2759, %v2475, %v2760
        %2762 = vst [vmem:[%s2433] sm:$0xf] %v2761
        %2763 = vst [vmem:[%s2433 + $0xc] sm:$0xf] %v2484
        %v2764 = vld [vmem:[%s2433 + $0x18] sm:$0xf]
        %v2765 = vsel %vm2759, %v2491, %v2764
        %2766 = vst [vmem:[%s2433 + $0x18] sm:$0xf] %v2765
        %2767 = vst [vmem:[%s2433 + $0x24] sm:$0xf] %v2500
        %v2768 = vld [vmem:[%s2433 + $0x30] sm:$0xf]
        %v2769 = vsel %vm2759, %v2507, %v2768
        %2770 = vst [vmem:[%s2433 + $0x30] sm:$0xf] %v2769
        %2771 = vst [vmem:[%s2433 + $0x3c] sm:$0xf] %v2516
        %v2772 = vld [vmem:[%s2433 + $0x48] sm:$0xf]
        %v2773 = vsel %vm2759, %v2523, %v2772
        %2774 = vst [vmem:[%s2433 + $0x48] sm:$0xf] %v2773
        %2775 = vst [vmem:[%s2433 + $0x54] sm:$0xf] %v2532
        %v2776 = vld [vmem:[%s2433 + $0x60] sm:$0xf]
        %v2777 = vsel %vm2759, %v2539, %v2776
        %2778 = vst [vmem:[%s2433 + $0x60] sm:$0xf] %v2777
        %2779 = vst [vmem:[%s2433 + $0x6c] sm:$0xf] %v2548
        %v2780 = vld [vmem:[%s2433 + $0x78] sm:$0xf]
        %v2781 = vsel %vm2759, %v2555, %v2780
        %2782 = vst [vmem:[%s2433 + $0x78] sm:$0xf] %v2781
        %2783 = vst [vmem:[%s2433 + $0x84] sm:$0xf] %v2564
        %v2784 = vld [vmem:[%s2433 + $0x90] sm:$0xf]
        %v2785 = vsel %vm2759, %v2571, %v2784
        %2786 = vst [vmem:[%s2433 + $0x90] sm:$0xf] %v2785
        %2787 = vst [vmem:[%s2433 + $0x9c] sm:$0xf] %v2580
        %v2788 = vld [vmem:[%s2433 + $0xa8] sm:$0xf]
        %v2789 = vsel %vm2759, %v2587, %v2788
        %2790 = vst [vmem:[%s2433 + $0xa8] sm:$0xf] %v2789
        %2791 = vst [vmem:[%s2433 + $0xb4] sm:$0xf] %v2596
        %v2792 = vld [vmem:[%s2433 + $0xc0] sm:$0xf]
        %v2793 = vsel %vm2759, %v2603, %v2792
        %2794 = vst [vmem:[%s2433 + $0xc0] sm:$0xf] %v2793
        %2795 = vst [vmem:[%s2433 + $0xcc] sm:$0xf] %v2612
        %v2796 = vld [vmem:[%s2433 + $0xd8] sm:$0xf]
        %v2797 = vsel %vm2759, %v2619, %v2796
        %2798 = vst [vmem:[%s2433 + $0xd8] sm:$0xf] %v2797
        %2799 = vst [vmem:[%s2433 + $0xe4] sm:$0xf] %v2628
        %v2800 = vld [vmem:[%s2433 + $0xf0] sm:$0xf]
        %v2801 = vsel %vm2759, %v2635, %v2800
        %2802 = vst [vmem:[%s2433 + $0xf0] sm:$0xf] %v2801
        %2803 = vst [vmem:[%s2433 + $0xfc] sm:$0xf] %v2644
        %v2804 = vld [vmem:[%s2433 + $0x108] sm:$0xf]
        %v2805 = vsel %vm2759, %v2651, %v2804
        %2806 = vst [vmem:[%s2433 + $0x108] sm:$0xf] %v2805
        %2807 = vst [vmem:[%s2433 + $0x114] sm:$0xf] %v2660
        %v2808 = vld [vmem:[%s2433 + $0x120] sm:$0xf]
        %v2809 = vsel %vm2759, %v2667, %v2808
        %2810 = vst [vmem:[%s2433 + $0x120] sm:$0xf] %v2809
        %2811 = vst [vmem:[%s2433 + $0x12c] sm:$0xf] %v2676
        %v2812 = vld [vmem:[%s2433 + $0x138] sm:$0xf]
        %v2813 = vsel %vm2759, %v2683, %v2812
        %2814 = vst [vmem:[%s2433 + $0x138] sm:$0xf] %v2813
        %2815 = vst [vmem:[%s2433 + $0x144] sm:$0xf] %v2692
        %v2816 = vld [vmem:[%s2433 + $0x150] sm:$0xf]
        %v2817 = vsel %vm2759, %v2699, %v2816
        %2818 = vst [vmem:[%s2433 + $0x150] sm:$0xf] %v2817
        %2819 = vst [vmem:[%s2433 + $0x15c] sm:$0xf] %v2708
        %v2820 = vld [vmem:[%s2433 + $0x168] sm:$0xf]
        %v2821 = vsel %vm2759, %v2715, %v2820
        %2822 = vst [vmem:[%s2433 + $0x168] sm:$0xf] %v2821
        %2823 = vst [vmem:[%s2433 + $0x174] sm:$0xf] %v2724
        %v2824 = vrot.slane %v2470, 4
        %v2825 = vrot.slane %v2824, 4
        %v2826 = vrot.slane %v2486, 4
        %v2827 = vrot.slane %v2826, 4
        %v2828 = vrot.slane %v2502, 4
        %v2829 = vrot.slane %v2828, 4
        %v2830 = vrot.slane %v2518, 4
        %v2831 = vrot.slane %v2830, 4
        %v2832 = vrot.slane %v2534, 4
        %v2833 = vrot.slane %v2832, 4
        %v2834 = vrot.slane %v2550, 4
        %v2835 = vrot.slane %v2834, 4
        %v2836 = vrot.slane %v2566, 4
        %v2837 = vrot.slane %v2836, 4
        %v2838 = vrot.slane %v2582, 4
        %v2839 = vrot.slane %v2838, 4
        %v2840 = vrot.slane %v2598, 4
        %v2841 = vrot.slane %v2840, 4
        %v2842 = vrot.slane %v2614, 4
        %v2843 = vrot.slane %v2842, 4
        %v2844 = vrot.slane %v2630, 4
        %v2845 = vrot.slane %v2844, 4
        %v2846 = vrot.slane %v2646, 4
        %v2847 = vrot.slane %v2846, 4
        %v2848 = vrot.slane %v2662, 4
        %v2849 = vrot.slane %v2848, 4
        %v2850 = vrot.slane %v2678, 4
        %v2851 = vrot.slane %v2850, 4
        %v2852 = vrot.slane %v2694, 4
        %v2853 = vrot.slane %v2852, 4
        %v2854 = vrot.slane %v2710, 4
        %v2855 = vrot.slane %v2854, 4
        %vm2872 = vcmask 1040384
        %vm2873 = vmand %vm2872, %vm2466
        %v2874 = vld [vmem:[%s2433] sm:$0x1]
        %v2875 = vsel %vm2873, %v2825, %v2874
        %2876 = vst [vmem:[%s2433] sm:$0x1] %v2875
        %v2877 = vld [vmem:[%s2433 + $0x18] sm:$0x1]
        %v2878 = vsel %vm2873, %v2827, %v2877
        %2879 = vst [vmem:[%s2433 + $0x18] sm:$0x1] %v2878
        %v2880 = vld [vmem:[%s2433 + $0x30] sm:$0x1]
        %v2881 = vsel %vm2873, %v2829, %v2880
        %2882 = vst [vmem:[%s2433 + $0x30] sm:$0x1] %v2881
        %v2883 = vld [vmem:[%s2433 + $0x48] sm:$0x1]
        %v2884 = vsel %vm2873, %v2831, %v2883
        %2885 = vst [vmem:[%s2433 + $0x48] sm:$0x1] %v2884
        %v2886 = vld [vmem:[%s2433 + $0x60] sm:$0x1]
        %v2887 = vsel %vm2873, %v2833, %v2886
        %2888 = vst [vmem:[%s2433 + $0x60] sm:$0x1] %v2887
        %v2889 = vld [vmem:[%s2433 + $0x78] sm:$0x1]
        %v2890 = vsel %vm2873, %v2835, %v2889
        %2891 = vst [vmem:[%s2433 + $0x78] sm:$0x1] %v2890
        %v2892 = vld [vmem:[%s2433 + $0x90] sm:$0x1]
        %v2893 = vsel %vm2873, %v2837, %v2892
        %2894 = vst [vmem:[%s2433 + $0x90] sm:$0x1] %v2893
        %v2895 = vld [vmem:[%s2433 + $0xa8] sm:$0x1]
        %v2896 = vsel %vm2873, %v2839, %v2895
        %2897 = vst [vmem:[%s2433 + $0xa8] sm:$0x1] %v2896
        %v2898 = vld [vmem:[%s2433 + $0xc0] sm:$0x1]
        %v2899 = vsel %vm2873, %v2841, %v2898
        %2900 = vst [vmem:[%s2433 + $0xc0] sm:$0x1] %v2899
        %v2901 = vld [vmem:[%s2433 + $0xd8] sm:$0x1]
        %v2902 = vsel %vm2873, %v2843, %v2901
        %2903 = vst [vmem:[%s2433 + $0xd8] sm:$0x1] %v2902
        %v2904 = vld [vmem:[%s2433 + $0xf0] sm:$0x1]
        %v2905 = vsel %vm2873, %v2845, %v2904
        %2906 = vst [vmem:[%s2433 + $0xf0] sm:$0x1] %v2905
        %v2907 = vld [vmem:[%s2433 + $0x108] sm:$0x1]
        %v2908 = vsel %vm2873, %v2847, %v2907
        %2909 = vst [vmem:[%s2433 + $0x108] sm:$0x1] %v2908
        %v2910 = vld [vmem:[%s2433 + $0x120] sm:$0x1]
        %v2911 = vsel %vm2873, %v2849, %v2910
        %2912 = vst [vmem:[%s2433 + $0x120] sm:$0x1] %v2911
        %v2913 = vld [vmem:[%s2433 + $0x138] sm:$0x1]
        %v2914 = vsel %vm2873, %v2851, %v2913
        %2915 = vst [vmem:[%s2433 + $0x138] sm:$0x1] %v2914
        %v2916 = vld [vmem:[%s2433 + $0x150] sm:$0x1]
        %v2917 = vsel %vm2873, %v2853, %v2916
        %2918 = vst [vmem:[%s2433 + $0x150] sm:$0x1] %v2917
        %v2919 = vld [vmem:[%s2433 + $0x168] sm:$0x1]
        %v2920 = vsel %vm2873, %v2855, %v2919
        %2921 = vst [vmem:[%s2433 + $0x168] sm:$0x1] %v2920
        %vm2922 = vsmask.f32 3328
        %vm2923 = vsmask.f32 7440
        %vm2924 = vmor %vm2922, %vm2923
        %v2925 = vrot.slane %v2473, 5
        %v2926 = vor.u32 %v2824, %v2925
        %v2927 = vrot.slane %v2926, 4
        %v2928 = vrot.slane %v2481, 5
        %v2929 = vsel %vm2924, %v2927, %v2928
        %v2930 = vrot.slane %v2478, 4
        %v2931 = vor.u32 %v2930, %v2928
        %v2932 = vrot.slane %v2931, 4
        %v2933 = vrot.slane %v2489, 5
        %v2934 = vor.u32 %v2826, %v2933
        %v2935 = vrot.slane %v2934, 4
        %v2936 = vrot.slane %v2497, 5
        %v2937 = vsel %vm2924, %v2935, %v2936
        %v2938 = vrot.slane %v2494, 4
        %v2939 = vor.u32 %v2938, %v2936
        %v2940 = vrot.slane %v2939, 4
        %v2941 = vrot.slane %v2505, 5
        %v2942 = vor.u32 %v2828, %v2941
        %v2943 = vrot.slane %v2942, 4
        %v2944 = vrot.slane %v2513, 5
        %v2945 = vsel %vm2924, %v2943, %v2944
        %v2946 = vrot.slane %v2510, 4
        %v2947 = vor.u32 %v2946, %v2944
        %v2948 = vrot.slane %v2947, 4
        %v2949 = vrot.slane %v2521, 5
        %v2950 = vor.u32 %v2830, %v2949
        %v2951 = vrot.slane %v2950, 4
        %v2952 = vrot.slane %v2529, 5
        %v2953 = vsel %vm2924, %v2951, %v2952
        %v2954 = vrot.slane %v2526, 4
        %v2955 = vor.u32 %v2954, %v2952
        %v2956 = vrot.slane %v2955, 4
        %v2957 = vrot.slane %v2537, 5
        %v2958 = vor.u32 %v2832, %v2957
        %v2959 = vrot.slane %v2958, 4
        %v2960 = vrot.slane %v2545, 5
        %v2961 = vsel %vm2924, %v2959, %v2960
        %v2962 = vrot.slane %v2542, 4
        %v2963 = vor.u32 %v2962, %v2960
        %v2964 = vrot.slane %v2963, 4
        %v2965 = vrot.slane %v2553, 5
        %v2966 = vor.u32 %v2834, %v2965
        %v2967 = vrot.slane %v2966, 4
        %v2968 = vrot.slane %v2561, 5
        %v2969 = vsel %vm2924, %v2967, %v2968
        %v2970 = vrot.slane %v2558, 4
        %v2971 = vor.u32 %v2970, %v2968
        %v2972 = vrot.slane %v2971, 4
        %v2973 = vrot.slane %v2569, 5
        %v2974 = vor.u32 %v2836, %v2973
        %v2975 = vrot.slane %v2974, 4
        %v2976 = vrot.slane %v2577, 5
        %v2977 = vsel %vm2924, %v2975, %v2976
        %v2978 = vrot.slane %v2574, 4
        %v2979 = vor.u32 %v2978, %v2976
        %v2980 = vrot.slane %v2979, 4
        %v2981 = vrot.slane %v2585, 5
        %v2982 = vor.u32 %v2838, %v2981
        %v2983 = vrot.slane %v2982, 4
        %v2984 = vrot.slane %v2593, 5
        %v2985 = vsel %vm2924, %v2983, %v2984
        %v2986 = vrot.slane %v2590, 4
        %v2987 = vor.u32 %v2986, %v2984
        %v2988 = vrot.slane %v2987, 4
        %v2989 = vrot.slane %v2601, 5
        %v2990 = vor.u32 %v2840, %v2989
        %v2991 = vrot.slane %v2990, 4
        %v2992 = vrot.slane %v2609, 5
        %v2993 = vsel %vm2924, %v2991, %v2992
        %v2994 = vrot.slane %v2606, 4
        %v2995 = vor.u32 %v2994, %v2992
        %v2996 = vrot.slane %v2995, 4
        %v2997 = vrot.slane %v2617, 5
        %v2998 = vor.u32 %v2842, %v2997
        %v2999 = vrot.slane %v2998, 4
        %v3000 = vrot.slane %v2625, 5
        %v3001 = vsel %vm2924, %v2999, %v3000
        %v3002 = vrot.slane %v2622, 4
        %v3003 = vor.u32 %v3002, %v3000
        %v3004 = vrot.slane %v3003, 4
        %v3005 = vrot.slane %v2633, 5
        %v3006 = vor.u32 %v2844, %v3005
        %v3007 = vrot.slane %v3006, 4
        %v3008 = vrot.slane %v2641, 5
        %v3009 = vsel %vm2924, %v3007, %v3008
        %v3010 = vrot.slane %v2638, 4
        %v3011 = vor.u32 %v3010, %v3008
        %v3012 = vrot.slane %v3011, 4
        %v3013 = vrot.slane %v2649, 5
        %v3014 = vor.u32 %v2846, %v3013
        %v3015 = vrot.slane %v3014, 4
        %v3016 = vrot.slane %v2657, 5
        %v3017 = vsel %vm2924, %v3015, %v3016
        %v3018 = vrot.slane %v2654, 4
        %v3019 = vor.u32 %v3018, %v3016
        %v3020 = vrot.slane %v3019, 4
        %v3021 = vrot.slane %v2665, 5
        %v3022 = vor.u32 %v2848, %v3021
        %v3023 = vrot.slane %v3022, 4
        %v3024 = vrot.slane %v2673, 5
        %v3025 = vsel %vm2924, %v3023, %v3024
        %v3026 = vrot.slane %v2670, 4
        %v3027 = vor.u32 %v3026, %v3024
        %v3028 = vrot.slane %v3027, 4
        %v3029 = vrot.slane %v2681, 5
        %v3030 = vor.u32 %v2850, %v3029
        %v3031 = vrot.slane %v3030, 4
        %v3032 = vrot.slane %v2689, 5
        %v3033 = vsel %vm2924, %v3031, %v3032
        %v3034 = vrot.slane %v2686, 4
        %v3035 = vor.u32 %v3034, %v3032
        %v3036 = vrot.slane %v3035, 4
        %v3037 = vrot.slane %v2697, 5
        %v3038 = vor.u32 %v2852, %v3037
        %v3039 = vrot.slane %v3038, 4
        %v3040 = vrot.slane %v2705, 5
        %v3041 = vsel %vm2924, %v3039, %v3040
        %v3042 = vrot.slane %v2702, 4
        %v3043 = vor.u32 %v3042, %v3040
        %v3044 = vrot.slane %v3043, 4
        %v3045 = vrot.slane %v2713, 5
        %v3046 = vor.u32 %v2854, %v3045
        %v3047 = vrot.slane %v3046, 4
        %v3048 = vrot.slane %v2721, 5
        %v3049 = vsel %vm2924, %v3047, %v3048
        %v3050 = vrot.slane %v2718, 4
        %v3051 = vor.u32 %v3050, %v3048
        %v3052 = vrot.slane %v3051, 4
        %3085 = vst [vmem:[%s2433 + $0x8] sm:$0xf] %v2929
        %vm3086 = vmand %vm2757, %vm2922
        %v3087 = vld [vmem:[%s2433 + $0x14] sm:$0xf]
        %v3088 = vsel %vm3086, %v2932, %v3087
        %3089 = vst [vmem:[%s2433 + $0x14] sm:$0xf] %v3088
        %3090 = vst [vmem:[%s2433 + $0x20] sm:$0xf] %v2937
        %v3091 = vld [vmem:[%s2433 + $0x2c] sm:$0xf]
        %v3092 = vsel %vm3086, %v2940, %v3091
        %3093 = vst [vmem:[%s2433 + $0x2c] sm:$0xf] %v3092
        %3094 = vst [vmem:[%s2433 + $0x38] sm:$0xf] %v2945
        %v3095 = vld [vmem:[%s2433 + $0x44] sm:$0xf]
        %v3096 = vsel %vm3086, %v2948, %v3095
        %3097 = vst [vmem:[%s2433 + $0x44] sm:$0xf] %v3096
        %3098 = vst [vmem:[%s2433 + $0x50] sm:$0xf] %v2953
        %v3099 = vld [vmem:[%s2433 + $0x5c] sm:$0xf]
        %v3100 = vsel %vm3086, %v2956, %v3099
        %3101 = vst [vmem:[%s2433 + $0x5c] sm:$0xf] %v3100
        %3102 = vst [vmem:[%s2433 + $0x68] sm:$0xf] %v2961
        %v3103 = vld [vmem:[%s2433 + $0x74] sm:$0xf]
        %v3104 = vsel %vm3086, %v2964, %v3103
        %3105 = vst [vmem:[%s2433 + $0x74] sm:$0xf] %v3104
        %3106 = vst [vmem:[%s2433 + $0x80] sm:$0xf] %v2969
        %v3107 = vld [vmem:[%s2433 + $0x8c] sm:$0xf]
        %v3108 = vsel %vm3086, %v2972, %v3107
        %3109 = vst [vmem:[%s2433 + $0x8c] sm:$0xf] %v3108
        %3110 = vst [vmem:[%s2433 + $0x98] sm:$0xf] %v2977
        %v3111 = vld [vmem:[%s2433 + $0xa4] sm:$0xf]
        %v3112 = vsel %vm3086, %v2980, %v3111
        %3113 = vst [vmem:[%s2433 + $0xa4] sm:$0xf] %v3112
        %3114 = vst [vmem:[%s2433 + $0xb0] sm:$0xf] %v2985
        %v3115 = vld [vmem:[%s2433 + $0xbc] sm:$0xf]
        %v3116 = vsel %vm3086, %v2988, %v3115
        %3117 = vst [vmem:[%s2433 + $0xbc] sm:$0xf] %v3116
        %3118 = vst [vmem:[%s2433 + $0xc8] sm:$0xf] %v2993
        %v3119 = vld [vmem:[%s2433 + $0xd4] sm:$0xf]
        %v3120 = vsel %vm3086, %v2996, %v3119
        %3121 = vst [vmem:[%s2433 + $0xd4] sm:$0xf] %v3120
        %3122 = vst [vmem:[%s2433 + $0xe0] sm:$0xf] %v3001
        %v3123 = vld [vmem:[%s2433 + $0xec] sm:$0xf]
        %v3124 = vsel %vm3086, %v3004, %v3123
        %3125 = vst [vmem:[%s2433 + $0xec] sm:$0xf] %v3124
        %3126 = vst [vmem:[%s2433 + $0xf8] sm:$0xf] %v3009
        %v3127 = vld [vmem:[%s2433 + $0x104] sm:$0xf]
        %v3128 = vsel %vm3086, %v3012, %v3127
        %3129 = vst [vmem:[%s2433 + $0x104] sm:$0xf] %v3128
        %3130 = vst [vmem:[%s2433 + $0x110] sm:$0xf] %v3017
        %v3131 = vld [vmem:[%s2433 + $0x11c] sm:$0xf]
        %v3132 = vsel %vm3086, %v3020, %v3131
        %3133 = vst [vmem:[%s2433 + $0x11c] sm:$0xf] %v3132
        %3134 = vst [vmem:[%s2433 + $0x128] sm:$0xf] %v3025
        %v3135 = vld [vmem:[%s2433 + $0x134] sm:$0xf]
        %v3136 = vsel %vm3086, %v3028, %v3135
        %3137 = vst [vmem:[%s2433 + $0x134] sm:$0xf] %v3136
        %3138 = vst [vmem:[%s2433 + $0x140] sm:$0xf] %v3033
        %v3139 = vld [vmem:[%s2433 + $0x14c] sm:$0xf]
        %v3140 = vsel %vm3086, %v3036, %v3139
        %3141 = vst [vmem:[%s2433 + $0x14c] sm:$0xf] %v3140
        %3142 = vst [vmem:[%s2433 + $0x158] sm:$0xf] %v3041
        %v3143 = vld [vmem:[%s2433 + $0x164] sm:$0xf]
        %v3144 = vsel %vm3086, %v3044, %v3143
        %3145 = vst [vmem:[%s2433 + $0x164] sm:$0xf] %v3144
        %3146 = vst [vmem:[%s2433 + $0x170] sm:$0xf] %v3049
        %v3147 = vld [vmem:[%s2433 + $0x17c] sm:$0xf]
        %v3148 = vsel %vm3086, %v3052, %v3147
        %3149 = vst [vmem:[%s2433 + $0x17c] sm:$0xf] %v3148
        %vm3166 = vcmask 1043459
        %vm3167 = vsmask.f32 7950
        %vm3168 = vmand %vm3166, %vm3167
        %v3169 = vld [vmem:[%s2433 + $0x14] sm:$0x8]
        %v3170 = vsel %vm3168, %v2481, %v3169
        %3171 = vst [vmem:[%s2433 + $0x14] sm:$0x8] %v3170
        %v3172 = vld [vmem:[%s2433 + $0x2c] sm:$0x8]
        %v3173 = vsel %vm3168, %v2497, %v3172
        %3174 = vst [vmem:[%s2433 + $0x2c] sm:$0x8] %v3173
        %v3175 = vld [vmem:[%s2433 + $0x44] sm:$0x8]
        %v3176 = vsel %vm3168, %v2513, %v3175
        %3177 = vst [vmem:[%s2433 + $0x44] sm:$0x8] %v3176
        %v3178 = vld [vmem:[%s2433 + $0x5c] sm:$0x8]
        %v3179 = vsel %vm3168, %v2529, %v3178
        %3180 = vst [vmem:[%s2433 + $0x5c] sm:$0x8] %v3179
        %v3181 = vld [vmem:[%s2433 + $0x74] sm:$0x8]
        %v3182 = vsel %vm3168, %v2545, %v3181
        %3183 = vst [vmem:[%s2433 + $0x74] sm:$0x8] %v3182
        %v3184 = vld [vmem:[%s2433 + $0x8c] sm:$0x8]
        %v3185 = vsel %vm3168, %v2561, %v3184
        %3186 = vst [vmem:[%s2433 + $0x8c] sm:$0x8] %v3185
        %v3187 = vld [vmem:[%s2433 + $0xa4] sm:$0x8]
        %v3188 = vsel %vm3168, %v2577, %v3187
        %3189 = vst [vmem:[%s2433 + $0xa4] sm:$0x8] %v3188
        %v3190 = vld [vmem:[%s2433 + $0xbc] sm:$0x8]
        %v3191 = vsel %vm3168, %v2593, %v3190
        %3192 = vst [vmem:[%s2433 + $0xbc] sm:$0x8] %v3191
        %v3193 = vld [vmem:[%s2433 + $0xd4] sm:$0x8]
        %v3194 = vsel %vm3168, %v2609, %v3193
        %3195 = vst [vmem:[%s2433 + $0xd4] sm:$0x8] %v3194
        %v3196 = vld [vmem:[%s2433 + $0xec] sm:$0x8]
        %v3197 = vsel %vm3168, %v2625, %v3196
        %3198 = vst [vmem:[%s2433 + $0xec] sm:$0x8] %v3197
        %v3199 = vld [vmem:[%s2433 + $0x104] sm:$0x8]
        %v3200 = vsel %vm3168, %v2641, %v3199
        %3201 = vst [vmem:[%s2433 + $0x104] sm:$0x8] %v3200
        %v3202 = vld [vmem:[%s2433 + $0x11c] sm:$0x8]
        %v3203 = vsel %vm3168, %v2657, %v3202
        %3204 = vst [vmem:[%s2433 + $0x11c] sm:$0x8] %v3203
        %v3205 = vld [vmem:[%s2433 + $0x134] sm:$0x8]
        %v3206 = vsel %vm3168, %v2673, %v3205
        %3207 = vst [vmem:[%s2433 + $0x134] sm:$0x8] %v3206
        %v3208 = vld [vmem:[%s2433 + $0x14c] sm:$0x8]
        %v3209 = vsel %vm3168, %v2689, %v3208
        %3210 = vst [vmem:[%s2433 + $0x14c] sm:$0x8] %v3209
        %v3211 = vld [vmem:[%s2433 + $0x164] sm:$0x8]
        %v3212 = vsel %vm3168, %v2705, %v3211
        %3213 = vst [vmem:[%s2433 + $0x164] sm:$0x8] %v3212
        %v3214 = vld [vmem:[%s2433 + $0x17c] sm:$0x8]
        %v3215 = vsel %vm3168, %v2721, %v3214
        %3216 = vst [vmem:[%s2433 + $0x17c] sm:$0x8] %v3215
        %s3217 = scalar_lea.vmem [#allocation2], 48
        %v3218 = vld [vmem:[%s3217] sm:$0xff]
        %v3219 = vld [vmem:[%s3217 + $0x8] sm:$0xf]
        %v3220 = vld [vmem:[%s3217 + $0xc] sm:$0xff]
        %v3221 = vld [vmem:[%s3217 + $0x14] sm:$0xf]
        %3222 = vst [vmem:[#allocation2] sm:$0xff] %v3218
        %3223 = vst [vmem:[#allocation2 + $0x8] sm:$0xf] %v3219
        %3224 = vst [vmem:[#allocation2 + $0xc] sm:$0xff] %v3220
        %3225 = vst [vmem:[#allocation2 + $0x14] sm:$0xf] %v3221
        %s3226 = scalar_lea.vmem [#allocation2], 360
        %v3227 = vld [vmem:[%s3226] sm:$0xff]
        %v3228 = vld [vmem:[%s3226 + $0x8] sm:$0xf]
        %v3229 = vld [vmem:[%s3226 + $0xc] sm:$0xff]
        %v3230 = vld [vmem:[%s3226 + $0x14] sm:$0xf]
        %s3231 = scalar_lea.vmem [#allocation2], 408
        %3232 = vst [vmem:[%s3231] sm:$0xff] %v3227
        %3233 = vst [vmem:[%s3231 + $0x8] sm:$0xf] %v3228
        %3234 = vst [vmem:[%s3231 + $0xc] sm:$0xff] %v3229
        %3235 = vst [vmem:[%s3231 + $0x14] sm:$0xf] %v3230
        %v3236 = vld [vmem:[#allocation2] sm:$0xff]
        %v3237 = vld [vmem:[#allocation2 + $0x8] sm:$0xf]
        %v3238 = vld [vmem:[#allocation2 + $0xc] sm:$0xff]
        %v3239 = vld [vmem:[#allocation2 + $0x14] sm:$0xf]
        %v3240 = vld [vmem:[#allocation2 + $0x18] sm:$0xff]
        %v3241 = vld [vmem:[#allocation2 + $0x20] sm:$0xf]
        %v3242 = vld [vmem:[#allocation2 + $0x24] sm:$0xff]
        %v3243 = vld [vmem:[#allocation2 + $0x2c] sm:$0xf]
        %v3244 = vld [vmem:[#allocation2 + $0x30] sm:$0xff]
        %v3245 = vld [vmem:[#allocation2 + $0x38] sm:$0xf]
        %v3246 = vld [vmem:[#allocation2 + $0x3c] sm:$0xff]
        %v3247 = vld [vmem:[#allocation2 + $0x44] sm:$0xf]
        %v3248 = vld [vmem:[#allocation2 + $0x48] sm:$0xff]
        %v3249 = vld [vmem:[#allocation2 + $0x50] sm:$0xf]
        %v3250 = vld [vmem:[#allocation2 + $0x54] sm:$0xff]
        %v3251 = vld [vmem:[#allocation2 + $0x5c] sm:$0xf]
        %v3252 = vld [vmem:[#allocation2 + $0x60] sm:$0xff]
        %v3253 = vld [vmem:[#allocation2 + $0x68] sm:$0xf]
        %v3254 = vld [vmem:[#allocation2 + $0x6c] sm:$0xff]
        %v3255 = vld [vmem:[#allocation2 + $0x74] sm:$0xf]
        %v3256 = vld [vmem:[#allocation2 + $0x78] sm:$0xff]
        %v3257 = vld [vmem:[#allocation2 + $0x80] sm:$0xf]
        %v3258 = vld [vmem:[#allocation2 + $0x84] sm:$0xff]
        %v3259 = vld [vmem:[#allocation2 + $0x8c] sm:$0xf]
        %v3260 = vld [vmem:[#allocation2 + $0x90] sm:$0xff]
        %v3261 = vld [vmem:[#allocation2 + $0x98] sm:$0xf]
        %v3262 = vld [vmem:[#allocation2 + $0x9c] sm:$0xff]
        %v3263 = vld [vmem:[#allocation2 + $0xa4] sm:$0xf]
        %v3264 = vld [vmem:[#allocation2 + $0xa8] sm:$0xff]
        %v3265 = vld [vmem:[#allocation2 + $0xb0] sm:$0xf]
        %v3266 = vld [vmem:[#allocation2 + $0xb4] sm:$0xff]
        %v3267 = vld [vmem:[#allocation2 + $0xbc] sm:$0xf]
        %v3268 = vld [vmem:[#allocation2 + $0xc0] sm:$0xff]
        %v3269 = vld [vmem:[#allocation2 + $0xc8] sm:$0xf]
        %v3270 = vld [vmem:[#allocation2 + $0xcc] sm:$0xff]
        %v3271 = vld [vmem:[#allocation2 + $0xd4] sm:$0xf]
        %v3272 = vld [vmem:[#allocation2 + $0xd8] sm:$0xff]
        %v3273 = vld [vmem:[#allocation2 + $0xe0] sm:$0xf]
        %v3274 = vld [vmem:[#allocation2 + $0xe4] sm:$0xff]
        %v3275 = vld [vmem:[#allocation2 + $0xec] sm:$0xf]
        %v3276 = vld [vmem:[#allocation2 + $0xf0] sm:$0xff]
        %v3277 = vld [vmem:[#allocation2 + $0xf8] sm:$0xf]
        %v3278 = vld [vmem:[#allocation2 + $0xfc] sm:$0xff]
        %v3279 = vld [vmem:[#allocation2 + $0x104] sm:$0xf]
        %v3280 = vld [vmem:[#allocation2 + $0x108] sm:$0xff]
        %v3281 = vld [vmem:[#allocation2 + $0x110] sm:$0xf]
        %v3282 = vld [vmem:[#allocation2 + $0x114] sm:$0xff]
        %v3283 = vld [vmem:[#allocation2 + $0x11c] sm:$0xf]
        %v3284 = vld [vmem:[#allocation2 + $0x120] sm:$0xff]
        %v3285 = vld [vmem:[#allocation2 + $0x128] sm:$0xf]
        %v3286 = vld [vmem:[#allocation2 + $0x12c] sm:$0xff]
        %v3287 = vld [vmem:[#allocation2 + $0x134] sm:$0xf]
        %v3288 = vld [vmem:[#allocation2 + $0x138] sm:$0xff]
        %v3289 = vld [vmem:[#allocation2 + $0x140] sm:$0xf]
        %v3290 = vld [vmem:[#allocation2 + $0x144] sm:$0xff]
        %v3291 = vld [vmem:[#allocation2 + $0x14c] sm:$0xf]
        %v3292 = vld [vmem:[#allocation2 + $0x150] sm:$0xff]
        %v3293 = vld [vmem:[#allocation2 + $0x158] sm:$0xf]
        %v3294 = vld [vmem:[#allocation2 + $0x15c] sm:$0xff]
        %v3295 = vld [vmem:[#allocation2 + $0x164] sm:$0xf]
        %v3296 = vld [vmem:[#allocation2 + $0x168] sm:$0xff]
        %v3297 = vld [vmem:[#allocation2 + $0x170] sm:$0xf]
        %v3298 = vld [vmem:[#allocation2 + $0x174] sm:$0xff]
        %v3299 = vld [vmem:[#allocation2 + $0x17c] sm:$0xf]
        %v3300 = vld [vmem:[#allocation2 + $0x180] sm:$0xff]
        %v3301 = vld [vmem:[#allocation2 + $0x188] sm:$0xf]
        %v3302 = vld [vmem:[#allocation2 + $0x18c] sm:$0xff]
        %v3303 = vld [vmem:[#allocation2 + $0x194] sm:$0xf]
        %v3304 = vld [vmem:[#allocation2 + $0x198] sm:$0xff]
        %v3305 = vld [vmem:[#allocation2 + $0x1a0] sm:$0xf]
        %v3306 = vld [vmem:[#allocation2 + $0x1a4] sm:$0xff]
        %v3307 = vld [vmem:[#allocation2 + $0x1ac] sm:$0xf]
        %v3308 = vld [vmem:[#allocation9] sm:$0xff]
        %v3309 = vld [vmem:[#allocation9 + $0x8] sm:$0xf]
        %v3310 = vld [vmem:[#allocation9 + $0xc] sm:$0xff]
        %v3311 = vld [vmem:[#allocation9 + $0x14] sm:$0xf]
        %v3312 = vld [vmem:[#allocation9 + $0x18] sm:$0xff]
        %v3313 = vld [vmem:[#allocation9 + $0x20] sm:$0xf]
        %v3314 = vld [vmem:[#allocation9 + $0x24] sm:$0xff]
        %v3315 = vld [vmem:[#allocation9 + $0x2c] sm:$0xf]
        %v3316 = vld [vmem:[#allocation9 + $0x30] sm:$0xff]
        %v3317 = vld [vmem:[#allocation9 + $0x38] sm:$0xf]
        %v3318 = vld [vmem:[#allocation9 + $0x3c] sm:$0xff]
        %v3319 = vld [vmem:[#allocation9 + $0x44] sm:$0xf]
        %v3320 = vld [vmem:[#allocation9 + $0x48] sm:$0xff]
        %v3321 = vld [vmem:[#allocation9 + $0x50] sm:$0xf]
        %v3322 = vld [vmem:[#allocation9 + $0x54] sm:$0xff]
        %v3323 = vld [vmem:[#allocation9 + $0x5c] sm:$0xf]
        %v3324 = vld [vmem:[#allocation9 + $0x60] sm:$0xff]
        %v3325 = vld [vmem:[#allocation9 + $0x68] sm:$0xf]
        %v3326 = vld [vmem:[#allocation9 + $0x6c] sm:$0xff]
        %v3327 = vld [vmem:[#allocation9 + $0x74] sm:$0xf]
        %v3328 = vld [vmem:[#allocation9 + $0x78] sm:$0xff]
        %v3329 = vld [vmem:[#allocation9 + $0x80] sm:$0xf]
        %v3330 = vld [vmem:[#allocation9 + $0x84] sm:$0xff]
        %v3331 = vld [vmem:[#allocation9 + $0x8c] sm:$0xf]
        %v3332 = vld [vmem:[#allocation9 + $0x90] sm:$0xff]
        %v3333 = vld [vmem:[#allocation9 + $0x98] sm:$0xf]
        %v3334 = vld [vmem:[#allocation9 + $0x9c] sm:$0xff]
        %v3335 = vld [vmem:[#allocation9 + $0xa4] sm:$0xf]
        %v3336 = vld [vmem:[#allocation9 + $0xa8] sm:$0xff]
        %v3337 = vld [vmem:[#allocation9 + $0xb0] sm:$0xf]
        %v3338 = vld [vmem:[#allocation9 + $0xb4] sm:$0xff]
        %v3339 = vld [vmem:[#allocation9 + $0xbc] sm:$0xf]
        %v3340 = vld [vmem:[#allocation9 + $0xc0] sm:$0xff]
        %v3341 = vld [vmem:[#allocation9 + $0xc8] sm:$0xf]
        %v3342 = vld [vmem:[#allocation9 + $0xcc] sm:$0xff]
        %v3343 = vld [vmem:[#allocation9 + $0xd4] sm:$0xf]
        %v3344 = vld [vmem:[#allocation9 + $0xd8] sm:$0xff]
        %v3345 = vld [vmem:[#allocation9 + $0xe0] sm:$0xf]
        %v3346 = vld [vmem:[#allocation9 + $0xe4] sm:$0xff]
        %v3347 = vld [vmem:[#allocation9 + $0xec] sm:$0xf]
        %v3348 = vld [vmem:[#allocation9 + $0xf0] sm:$0xff]
        %v3349 = vld [vmem:[#allocation9 + $0xf8] sm:$0xf]
        %v3350 = vld [vmem:[#allocation9 + $0xfc] sm:$0xff]
        %v3351 = vld [vmem:[#allocation9 + $0x104] sm:$0xf]
        %v3352 = vld [vmem:[#allocation9 + $0x108] sm:$0xff]
        %v3353 = vld [vmem:[#allocation9 + $0x110] sm:$0xf]
        %v3354 = vld [vmem:[#allocation9 + $0x114] sm:$0xff]
        %v3355 = vld [vmem:[#allocation9 + $0x11c] sm:$0xf]
        %v3356 = vld [vmem:[#allocation9 + $0x120] sm:$0xff]
        %v3357 = vld [vmem:[#allocation9 + $0x128] sm:$0xf]
        %v3358 = vld [vmem:[#allocation9 + $0x12c] sm:$0xff]
        %v3359 = vld [vmem:[#allocation9 + $0x134] sm:$0xf]
        %v3360 = vld [vmem:[#allocation9 + $0x138] sm:$0xff]
        %v3361 = vld [vmem:[#allocation9 + $0x140] sm:$0xf]
        %v3362 = vld [vmem:[#allocation9 + $0x144] sm:$0xff]
        %v3363 = vld [vmem:[#allocation9 + $0x14c] sm:$0xf]
        %v3364 = vld [vmem:[#allocation9 + $0x150] sm:$0xff]
        %v3365 = vld [vmem:[#allocation9 + $0x158] sm:$0xf]
        %v3366 = vld [vmem:[#allocation9 + $0x15c] sm:$0xff]
        %v3367 = vld [vmem:[#allocation9 + $0x164] sm:$0xf]
        %v3368 = vld [vmem:[#allocation9 + $0x168] sm:$0xff]
        %v3369 = vld [vmem:[#allocation9 + $0x170] sm:$0xf]
        %v3370 = vld [vmem:[#allocation9 + $0x174] sm:$0xff]
        %v3371 = vld [vmem:[#allocation9 + $0x17c] sm:$0xf]
        %v3372 = vld [vmem:[#allocation9 + $0x180] sm:$0xff]
        %v3373 = vld [vmem:[#allocation9 + $0x188] sm:$0xf]
        %v3374 = vld [vmem:[#allocation9 + $0x18c] sm:$0xff]
        %v3375 = vld [vmem:[#allocation9 + $0x194] sm:$0xf]
        %v3376 = vld [vmem:[#allocation9 + $0x198] sm:$0xff]
        %v3377 = vld [vmem:[#allocation9 + $0x1a0] sm:$0xf]
        %v3378 = vld [vmem:[#allocation9 + $0x1a4] sm:$0xff]
        %v3379 = vld [vmem:[#allocation9 + $0x1ac] sm:$0xf]
        %v3380 = vld [vmem:[#allocation9 + $0x1b0] sm:$0xff]
        %v3381 = vld [vmem:[#allocation9 + $0x1b8] sm:$0xf]
        %v3382 = vld [vmem:[#allocation9 + $0x1bc] sm:$0xff]
        %v3383 = vld [vmem:[#allocation9 + $0x1c4] sm:$0xf]
        %v3384 = vld [vmem:[#allocation9 + $0x1c8] sm:$0xff]
        %v3385 = vld [vmem:[#allocation9 + $0x1d0] sm:$0xf]
        %v3386 = vld [vmem:[#allocation9 + $0x1d4] sm:$0xff]
        %v3387 = vld [vmem:[#allocation9 + $0x1dc] sm:$0xf]
        %v3388 = vld [vmem:[#allocation9 + $0x1e0] sm:$0xff]
        %v3389 = vld [vmem:[#allocation9 + $0x1e8] sm:$0xf]
        %v3390 = vld [vmem:[#allocation9 + $0x1ec] sm:$0xff]
        %v3391 = vld [vmem:[#allocation9 + $0x1f4] sm:$0xf]
        %v3392 = vld [vmem:[#allocation9 + $0x1f8] sm:$0xff]
        %v3393 = vld [vmem:[#allocation9 + $0x200] sm:$0xf]
        %v3394 = vld [vmem:[#allocation9 + $0x204] sm:$0xff]
        %v3395 = vld [vmem:[#allocation9 + $0x20c] sm:$0xf]
        %v3396 = vld [vmem:[#allocation9 + $0x210] sm:$0xff]
        %v3397 = vld [vmem:[#allocation9 + $0x218] sm:$0xf]
        %v3398 = vld [vmem:[#allocation9 + $0x21c] sm:$0xff]
        %v3399 = vld [vmem:[#allocation9 + $0x224] sm:$0xf]
        %v3400 = vld [vmem:[#allocation9 + $0x228] sm:$0xff]
        %v3401 = vld [vmem:[#allocation9 + $0x230] sm:$0xf]
        %v3402 = vld [vmem:[#allocation9 + $0x234] sm:$0xff]
        %v3403 = vld [vmem:[#allocation9 + $0x23c] sm:$0xf]
        %v3476 = vunpack.c.l.b16 %v3236
        %v3477 = vunpack.c.h.b16 %v3236
        %v3478 = vunpack.c.l.b16 %v3237
        %v3479 = vunpack.c.l.b16 %v3238
        %v3480 = vunpack.c.h.b16 %v3238
        %v3481 = vunpack.c.l.b16 %v3239
        %v3482 = vunpack.c.l.b16 %v3240
        %v3483 = vunpack.c.h.b16 %v3240
        %v3484 = vunpack.c.l.b16 %v3241
        %v3485 = vunpack.c.l.b16 %v3242
        %v3486 = vunpack.c.h.b16 %v3242
        %v3487 = vunpack.c.l.b16 %v3243
        %v3488 = vunpack.c.l.b16 %v3244
        %v3489 = vunpack.c.h.b16 %v3244
        %v3490 = vunpack.c.l.b16 %v3245
        %v3491 = vunpack.c.l.b16 %v3246
        %v3492 = vunpack.c.h.b16 %v3246
        %v3493 = vunpack.c.l.b16 %v3247
        %v3494 = vunpack.c.l.b16 %v3248
        %v3495 = vunpack.c.h.b16 %v3248
        %v3496 = vunpack.c.l.b16 %v3249
        %v3497 = vunpack.c.l.b16 %v3250
        %v3498 = vunpack.c.h.b16 %v3250
        %v3499 = vunpack.c.l.b16 %v3251
        %v3500 = vunpack.c.l.b16 %v3252
        %v3501 = vunpack.c.h.b16 %v3252
        %v3502 = vunpack.c.l.b16 %v3253
        %v3503 = vunpack.c.l.b16 %v3254
        %v3504 = vunpack.c.h.b16 %v3254
        %v3505 = vunpack.c.l.b16 %v3255
        %v3506 = vunpack.c.l.b16 %v3256
        %v3507 = vunpack.c.h.b16 %v3256
        %v3508 = vunpack.c.l.b16 %v3257
        %v3509 = vunpack.c.l.b16 %v3258
        %v3510 = vunpack.c.h.b16 %v3258
        %v3511 = vunpack.c.l.b16 %v3259
        %v3512 = vunpack.c.l.b16 %v3260
        %v3513 = vunpack.c.h.b16 %v3260
        %v3514 = vunpack.c.l.b16 %v3261
        %v3515 = vunpack.c.l.b16 %v3262
        %v3516 = vunpack.c.h.b16 %v3262
        %v3517 = vunpack.c.l.b16 %v3263
        %v3518 = vunpack.c.l.b16 %v3264
        %v3519 = vunpack.c.h.b16 %v3264
        %v3520 = vunpack.c.l.b16 %v3265
        %v3521 = vunpack.c.l.b16 %v3266
        %v3522 = vunpack.c.h.b16 %v3266
        %v3523 = vunpack.c.l.b16 %v3267
        %v3524 = vunpack.c.l.b16 %v3268
        %v3525 = vunpack.c.h.b16 %v3268
        %v3526 = vunpack.c.l.b16 %v3269
        %v3527 = vunpack.c.l.b16 %v3270
        %v3528 = vunpack.c.h.b16 %v3270
        %v3529 = vunpack.c.l.b16 %v3271
        %v3530 = vunpack.c.l.b16 %v3272
        %v3531 = vunpack.c.h.b16 %v3272
        %v3532 = vunpack.c.l.b16 %v3273
        %v3533 = vunpack.c.l.b16 %v3274
        %v3534 = vunpack.c.h.b16 %v3274
        %v3535 = vunpack.c.l.b16 %v3275
        %v3536 = vunpack.c.l.b16 %v3276
        %v3537 = vunpack.c.h.b16 %v3276
        %v3538 = vunpack.c.l.b16 %v3277
        %v3539 = vunpack.c.l.b16 %v3278
        %v3540 = vunpack.c.h.b16 %v3278
        %v3541 = vunpack.c.l.b16 %v3279
        %v3542 = vunpack.c.l.b16 %v3280
        %v3543 = vunpack.c.h.b16 %v3280
        %v3544 = vunpack.c.l.b16 %v3281
        %v3545 = vunpack.c.l.b16 %v3282
        %v3546 = vunpack.c.h.b16 %v3282
        %v3547 = vunpack.c.l.b16 %v3283
        %v3548 = vunpack.c.l.b16 %v3284
        %v3549 = vunpack.c.h.b16 %v3284
        %v3550 = vunpack.c.l.b16 %v3285
        %v3551 = vunpack.c.l.b16 %v3286
        %v3552 = vunpack.c.h.b16 %v3286
        %v3553 = vunpack.c.l.b16 %v3287
        %v3554 = vunpack.c.l.b16 %v3288
        %v3555 = vunpack.c.h.b16 %v3288
        %v3556 = vunpack.c.l.b16 %v3289
        %v3557 = vunpack.c.l.b16 %v3290
        %v3558 = vunpack.c.h.b16 %v3290
        %v3559 = vunpack.c.l.b16 %v3291
        %v3560 = vunpack.c.l.b16 %v3292
        %v3561 = vunpack.c.h.b16 %v3292
        %v3562 = vunpack.c.l.b16 %v3293
        %v3563 = vunpack.c.l.b16 %v3294
        %v3564 = vunpack.c.h.b16 %v3294
        %v3565 = vunpack.c.l.b16 %v3295
        %v3566 = vunpack.c.l.b16 %v3296
        %v3567 = vunpack.c.h.b16 %v3296
        %v3568 = vunpack.c.l.b16 %v3297
        %v3569 = vunpack.c.l.b16 %v3298
        %v3570 = vunpack.c.h.b16 %v3298
        %v3571 = vunpack.c.l.b16 %v3299
        %v3572 = vunpack.c.l.b16 %v3300
        %v3573 = vunpack.c.h.b16 %v3300
        %v3574 = vunpack.c.l.b16 %v3301
        %v3575 = vunpack.c.l.b16 %v3302
        %v3576 = vunpack.c.h.b16 %v3302
        %v3577 = vunpack.c.l.b16 %v3303
        %v3578 = vunpack.c.l.b16 %v3304
        %v3579 = vunpack.c.h.b16 %v3304
        %v3580 = vunpack.c.l.b16 %v3305
        %v3581 = vunpack.c.l.b16 %v3306
        %v3582 = vunpack.c.h.b16 %v3306
        %v3583 = vunpack.c.l.b16 %v3307
        %v3584 = vpack.c.b16 %v3479, %v3476
        %v3585 = vpack.c.b16 %v3480, %v3477
        %v3586 = vpack.c.b16 %v3481, %v3478
        %v3587 = vpack.c.b16 %v3485, %v3482
        %v3588 = vpack.c.b16 %v3486, %v3483
        %v3589 = vpack.c.b16 %v3487, %v3484
        %v3590 = vpack.c.b16 %v3491, %v3488
        %v3591 = vpack.c.b16 %v3492, %v3489
        %v3592 = vpack.c.b16 %v3493, %v3490
        %v3593 = vpack.c.b16 %v3497, %v3494
        %v3594 = vpack.c.b16 %v3498, %v3495
        %v3595 = vpack.c.b16 %v3499, %v3496
        %v3596 = vpack.c.b16 %v3503, %v3500
        %v3597 = vpack.c.b16 %v3504, %v3501
        %v3598 = vpack.c.b16 %v3505, %v3502
        %v3599 = vpack.c.b16 %v3509, %v3506
        %v3600 = vpack.c.b16 %v3510, %v3507
        %v3601 = vpack.c.b16 %v3511, %v3508
        %v3602 = vpack.c.b16 %v3515, %v3512
        %v3603 = vpack.c.b16 %v3516, %v3513
        %v3604 = vpack.c.b16 %v3517, %v3514
        %v3605 = vpack.c.b16 %v3521, %v3518
        %v3606 = vpack.c.b16 %v3522, %v3519
        %v3607 = vpack.c.b16 %v3523, %v3520
        %v3608 = vpack.c.b16 %v3527, %v3524
        %v3609 = vpack.c.b16 %v3528, %v3525
        %v3610 = vpack.c.b16 %v3529, %v3526
        %v3611 = vpack.c.b16 %v3533, %v3530
        %v3612 = vpack.c.b16 %v3534, %v3531
        %v3613 = vpack.c.b16 %v3535, %v3532
        %v3614 = vpack.c.b16 %v3539, %v3536
        %v3615 = vpack.c.b16 %v3540, %v3537
        %v3616 = vpack.c.b16 %v3541, %v3538
        %v3617 = vpack.c.b16 %v3545, %v3542
        %v3618 = vpack.c.b16 %v3546, %v3543
        %v3619 = vpack.c.b16 %v3547, %v3544
        %v3620 = vpack.c.b16 %v3551, %v3548
        %v3621 = vpack.c.b16 %v3552, %v3549
        %v3622 = vpack.c.b16 %v3553, %v3550
        %v3623 = vpack.c.b16 %v3557, %v3554
        %v3624 = vpack.c.b16 %v3558, %v3555
        %v3625 = vpack.c.b16 %v3559, %v3556
        %v3626 = vpack.c.b16 %v3563, %v3560
        %v3627 = vpack.c.b16 %v3564, %v3561
        %v3628 = vpack.c.b16 %v3565, %v3562
        %v3629 = vpack.c.b16 %v3569, %v3566
        %v3630 = vpack.c.b16 %v3570, %v3567
        %v3631 = vpack.c.b16 %v3571, %v3568
        %v3632 = vpack.c.b16 %v3575, %v3572
        %v3633 = vpack.c.b16 %v3576, %v3573
        %v3634 = vpack.c.b16 %v3577, %v3574
        %v3635 = vpack.c.b16 %v3581, %v3578
        %v3636 = vpack.c.b16 %v3582, %v3579
        %v3637 = vpack.c.b16 %v3583, %v3580
        %v3788 = vunpack.c.l.b16 %v3308
        %v3789 = vunpack.c.h.b16 %v3308
        %v3790 = vunpack.c.l.b16 %v3309
        %v3791 = vunpack.c.l.b16 %v3310
        %v3792 = vunpack.c.h.b16 %v3310
        %v3793 = vunpack.c.l.b16 %v3311
        %v3794 = vunpack.c.l.b16 %v3312
        %v3795 = vunpack.c.h.b16 %v3312
        %v3796 = vunpack.c.l.b16 %v3313
        %v3797 = vunpack.c.l.b16 %v3314
        %v3798 = vunpack.c.h.b16 %v3314
        %v3799 = vunpack.c.l.b16 %v3315
        %v3800 = vunpack.c.l.b16 %v3316
        %v3801 = vunpack.c.h.b16 %v3316
        %v3802 = vunpack.c.l.b16 %v3317
        %v3803 = vunpack.c.l.b16 %v3318
        %v3804 = vunpack.c.h.b16 %v3318
        %v3805 = vunpack.c.l.b16 %v3319
        %v3806 = vunpack.c.l.b16 %v3320
        %v3807 = vunpack.c.h.b16 %v3320
        %v3808 = vunpack.c.l.b16 %v3321
        %v3809 = vunpack.c.l.b16 %v3322
        %v3810 = vunpack.c.h.b16 %v3322
        %v3811 = vunpack.c.l.b16 %v3323
        %v3812 = vunpack.c.l.b16 %v3324
        %v3813 = vunpack.c.h.b16 %v3324
        %v3814 = vunpack.c.l.b16 %v3325
        %v3815 = vunpack.c.l.b16 %v3326
        %v3816 = vunpack.c.h.b16 %v3326
        %v3817 = vunpack.c.l.b16 %v3327
        %v3818 = vunpack.c.l.b16 %v3328
        %v3819 = vunpack.c.h.b16 %v3328
        %v3820 = vunpack.c.l.b16 %v3329
        %v3821 = vunpack.c.l.b16 %v3330
        %v3822 = vunpack.c.h.b16 %v3330
        %v3823 = vunpack.c.l.b16 %v3331
        %v3824 = vunpack.c.l.b16 %v3332
        %v3825 = vunpack.c.h.b16 %v3332
        %v3826 = vunpack.c.l.b16 %v3333
        %v3827 = vunpack.c.l.b16 %v3334
        %v3828 = vunpack.c.h.b16 %v3334
        %v3829 = vunpack.c.l.b16 %v3335
        %v3830 = vunpack.c.l.b16 %v3336
        %v3831 = vunpack.c.h.b16 %v3336
        %v3832 = vunpack.c.l.b16 %v3337
        %v3833 = vunpack.c.l.b16 %v3338
        %v3834 = vunpack.c.h.b16 %v3338
        %v3835 = vunpack.c.l.b16 %v3339
        %v3836 = vunpack.c.l.b16 %v3340
        %v3837 = vunpack.c.h.b16 %v3340
        %v3838 = vunpack.c.l.b16 %v3341
        %v3839 = vunpack.c.l.b16 %v3342
        %v3840 = vunpack.c.h.b16 %v3342
        %v3841 = vunpack.c.l.b16 %v3343
        %v3842 = vunpack.c.l.b16 %v3344
        %v3843 = vunpack.c.h.b16 %v3344
        %v3844 = vunpack.c.l.b16 %v3345
        %v3845 = vunpack.c.l.b16 %v3346
        %v3846 = vunpack.c.h.b16 %v3346
        %v3847 = vunpack.c.l.b16 %v3347
        %v3848 = vunpack.c.l.b16 %v3348
        %v3849 = vunpack.c.h.b16 %v3348
        %v3850 = vunpack.c.l.b16 %v3349
        %v3851 = vunpack.c.l.b16 %v3350
        %v3852 = vunpack.c.h.b16 %v3350
        %v3853 = vunpack.c.l.b16 %v3351
        %v3854 = vunpack.c.l.b16 %v3352
        %v3855 = vunpack.c.h.b16 %v3352
        %v3856 = vunpack.c.l.b16 %v3353
        %v3857 = vunpack.c.l.b16 %v3354
        %v3858 = vunpack.c.h.b16 %v3354
        %v3859 = vunpack.c.l.b16 %v3355
        %v3860 = vunpack.c.l.b16 %v3356
        %v3861 = vunpack.c.h.b16 %v3356
        %v3862 = vunpack.c.l.b16 %v3357
        %v3863 = vunpack.c.l.b16 %v3358
        %v3864 = vunpack.c.h.b16 %v3358
        %v3865 = vunpack.c.l.b16 %v3359
        %v3866 = vunpack.c.l.b16 %v3360
        %v3867 = vunpack.c.h.b16 %v3360
        %v3868 = vunpack.c.l.b16 %v3361
        %v3869 = vunpack.c.l.b16 %v3362
        %v3870 = vunpack.c.h.b16 %v3362
        %v3871 = vunpack.c.l.b16 %v3363
        %v3872 = vunpack.c.l.b16 %v3364
        %v3873 = vunpack.c.h.b16 %v3364
        %v3874 = vunpack.c.l.b16 %v3365
        %v3875 = vunpack.c.l.b16 %v3366
        %v3876 = vunpack.c.h.b16 %v3366
        %v3877 = vunpack.c.l.b16 %v3367
        %v3878 = vunpack.c.l.b16 %v3368
        %v3879 = vunpack.c.h.b16 %v3368
        %v3880 = vunpack.c.l.b16 %v3369
        %v3881 = vunpack.c.l.b16 %v3370
        %v3882 = vunpack.c.h.b16 %v3370
        %v3883 = vunpack.c.l.b16 %v3371
        %v3884 = vunpack.c.l.b16 %v3372
        %v3885 = vunpack.c.h.b16 %v3372
        %v3886 = vunpack.c.l.b16 %v3373
        %v3887 = vunpack.c.l.b16 %v3374
        %v3888 = vunpack.c.h.b16 %v3374
        %v3889 = vunpack.c.l.b16 %v3375
        %v3890 = vunpack.c.l.b16 %v3376
        %v3891 = vunpack.c.h.b16 %v3376
        %v3892 = vunpack.c.l.b16 %v3377
        %v3893 = vunpack.c.l.b16 %v3378
        %v3894 = vunpack.c.h.b16 %v3378
        %v3895 = vunpack.c.l.b16 %v3379
        %v3896 = vunpack.c.l.b16 %v3380
        %v3897 = vunpack.c.h.b16 %v3380
        %v3898 = vunpack.c.l.b16 %v3381
        %v3899 = vunpack.c.l.b16 %v3382
        %v3900 = vunpack.c.h.b16 %v3382
        %v3901 = vunpack.c.l.b16 %v3383
        %v3902 = vunpack.c.l.b16 %v3384
        %v3903 = vunpack.c.h.b16 %v3384
        %v3904 = vunpack.c.l.b16 %v3385
        %v3905 = vunpack.c.l.b16 %v3386
        %v3906 = vunpack.c.h.b16 %v3386
        %v3907 = vunpack.c.l.b16 %v3387
        %v3908 = vunpack.c.l.b16 %v3388
        %v3909 = vunpack.c.h.b16 %v3388
        %v3910 = vunpack.c.l.b16 %v3389
        %v3911 = vunpack.c.l.b16 %v3390
        %v3912 = vunpack.c.h.b16 %v3390
        %v3913 = vunpack.c.l.b16 %v3391
        %v3914 = vunpack.c.l.b16 %v3392
        %v3915 = vunpack.c.h.b16 %v3392
        %v3916 = vunpack.c.l.b16 %v3393
        %v3917 = vunpack.c.l.b16 %v3394
        %v3918 = vunpack.c.h.b16 %v3394
        %v3919 = vunpack.c.l.b16 %v3395
        %v3920 = vunpack.c.l.b16 %v3396
        %v3921 = vunpack.c.h.b16 %v3396
        %v3922 = vunpack.c.l.b16 %v3397
        %v3923 = vunpack.c.l.b16 %v3398
        %v3924 = vunpack.c.h.b16 %v3398
        %v3925 = vunpack.c.l.b16 %v3399
        %v3926 = vunpack.c.l.b16 %v3400
        %v3927 = vunpack.c.h.b16 %v3400
        %v3928 = vunpack.c.l.b16 %v3401
        %v3929 = vunpack.c.l.b16 %v3402
        %v3930 = vunpack.c.h.b16 %v3402
        %v3931 = vunpack.c.l.b16 %v3403
        %v3932 = vpack.c.b16 %v3791, %v3788
        %v3933 = vpack.c.b16 %v3792, %v3789
        %v3934 = vpack.c.b16 %v3793, %v3790
        %v3935 = vpack.c.b16 %v3797, %v3794
        %v3936 = vpack.c.b16 %v3798, %v3795
        %v3937 = vpack.c.b16 %v3799, %v3796
        %v3938 = vpack.c.b16 %v3803, %v3800
        %v3939 = vpack.c.b16 %v3804, %v3801
        %v3940 = vpack.c.b16 %v3805, %v3802
        %v3941 = vpack.c.b16 %v3809, %v3806
        %v3942 = vpack.c.b16 %v3810, %v3807
        %v3943 = vpack.c.b16 %v3811, %v3808
        %v3944 = vpack.c.b16 %v3815, %v3812
        %v3945 = vpack.c.b16 %v3816, %v3813
        %v3946 = vpack.c.b16 %v3817, %v3814
        %v3947 = vpack.c.b16 %v3821, %v3818
        %v3948 = vpack.c.b16 %v3822, %v3819
        %v3949 = vpack.c.b16 %v3823, %v3820
        %v3950 = vpack.c.b16 %v3827, %v3824
        %v3951 = vpack.c.b16 %v3828, %v3825
        %v3952 = vpack.c.b16 %v3829, %v3826
        %v3953 = vpack.c.b16 %v3833, %v3830
        %v3954 = vpack.c.b16 %v3834, %v3831
        %v3955 = vpack.c.b16 %v3835, %v3832
        %v3956 = vpack.c.b16 %v3839, %v3836
        %v3957 = vpack.c.b16 %v3840, %v3837
        %v3958 = vpack.c.b16 %v3841, %v3838
        %v3959 = vpack.c.b16 %v3845, %v3842
        %v3960 = vpack.c.b16 %v3846, %v3843
        %v3961 = vpack.c.b16 %v3847, %v3844
        %v3962 = vpack.c.b16 %v3851, %v3848
        %v3963 = vpack.c.b16 %v3852, %v3849
        %v3964 = vpack.c.b16 %v3853, %v3850
        %v3965 = vpack.c.b16 %v3857, %v3854
        %v3966 = vpack.c.b16 %v3858, %v3855
        %v3967 = vpack.c.b16 %v3859, %v3856
        %v3968 = vpack.c.b16 %v3863, %v3860
        %v3969 = vpack.c.b16 %v3864, %v3861
        %v3970 = vpack.c.b16 %v3865, %v3862
        %v3971 = vpack.c.b16 %v3869, %v3866
        %v3972 = vpack.c.b16 %v3870, %v3867
        %v3973 = vpack.c.b16 %v3871, %v3868
        %v3974 = vpack.c.b16 %v3875, %v3872
        %v3975 = vpack.c.b16 %v3876, %v3873
        %v3976 = vpack.c.b16 %v3877, %v3874
        %v3977 = vpack.c.b16 %v3881, %v3878
        %v3978 = vpack.c.b16 %v3882, %v3879
        %v3979 = vpack.c.b16 %v3883, %v3880
        %v3980 = vpack.c.b16 %v3887, %v3884
        %v3981 = vpack.c.b16 %v3888, %v3885
        %v3982 = vpack.c.b16 %v3889, %v3886
        %v3983 = vpack.c.b16 %v3893, %v3890
        %v3984 = vpack.c.b16 %v3894, %v3891
        %v3985 = vpack.c.b16 %v3895, %v3892
        %v3986 = vpack.c.b16 %v3899, %v3896
        %v3987 = vpack.c.b16 %v3900, %v3897
        %v3988 = vpack.c.b16 %v3901, %v3898
        %v3989 = vpack.c.b16 %v3905, %v3902
        %v3990 = vpack.c.b16 %v3906, %v3903
        %v3991 = vpack.c.b16 %v3907, %v3904
        %v3992 = vpack.c.b16 %v3911, %v3908
        %v3993 = vpack.c.b16 %v3912, %v3909
        %v3994 = vpack.c.b16 %v3913, %v3910
        %v3995 = vpack.c.b16 %v3917, %v3914
        %v3996 = vpack.c.b16 %v3918, %v3915
        %v3997 = vpack.c.b16 %v3919, %v3916
        %v3998 = vpack.c.b16 %v3923, %v3920
        %v3999 = vpack.c.b16 %v3924, %v3921
        %v4000 = vpack.c.b16 %v3925, %v3922
        %v4001 = vpack.c.b16 %v3929, %v3926
        %v4002 = vpack.c.b16 %v3930, %v3927
        %v4003 = vpack.c.b16 %v3931, %v3928
        %4076 = vmatprep.subr.bf16.mxu0 %v3954
        %4077 = vmatpush1.bf16.msra.mxu0 %v3953
        %4078 = vmatprep.subr.bf16.mxu0 %v3951
        %4079 = vmatpush1.bf16.msra.mxu0 %v3950
        %4080 = vmatprep.subr.bf16.mxu0 %v3948
        %4081 = vmatpush1.bf16.msra.mxu0 %v3947
        %4082 = vmatprep.subr.bf16.mxu0 %v3945
        %4083 = vmatpush1.bf16.msra.mxu0 %v3944
        %4084 = vmatprep.subr.bf16.mxu0 %v3942
        %4085 = vmatpush1.bf16.msra.mxu0 %v3941
        %4086 = vmatprep.subr.bf16.mxu0 %v3939
        %4087 = vmatpush1.bf16.msra.mxu0 %v3938
        %4088 = vmatprep.subr.bf16.mxu0 %v3936
        %4089 = vmatpush1.bf16.msra.mxu0 %v3935
        %4090 = vmatprep.subr.bf16.mxu0 %v3933
        %4091 = vmatpush1.bf16.msra.mxu0 %v3932
        %4092 = vmatprep.subr.bf16.mxu0 %v3978
        %4093 = vmatpush2.bf16.msra.mxu0 %v3977
        %4094 = vmatprep.subr.bf16.mxu0 %v3975
        %4095 = vmatpush2.bf16.msra.mxu0 %v3974
        %4096 = vmatprep.subr.bf16.mxu0 %v3972
        %4097 = vmatpush2.bf16.msra.mxu0 %v3971
        %4098 = vmatprep.subr.bf16.mxu0 %v3969
        %4099 = vmatpush2.bf16.msra.mxu0 %v3968
        %4100 = vmatprep.subr.bf16.mxu0 %v3966
        %4101 = vmatpush2.bf16.msra.mxu0 %v3965
        %4102 = vmatprep.subr.bf16.mxu0 %v3963
        %4103 = vmatpush2.bf16.msra.mxu0 %v3962
        %4104 = vmatprep.subr.bf16.mxu0 %v3960
        %4105 = vmatpush2.bf16.msra.mxu0 %v3959
        %4106 = vmatprep.subr.bf16.mxu0 %v3957
        %4107 = vmatpush2.bf16.msra.mxu0 %v3956
        %4108 = vmatprep.mubr.bf16.mxu0 %v3585
        %4109 = vmatmul.mubr.bf16.gmra.mxu0 %v3584
        %v4110 = vpop.f32.mrf.mxu0
        %v4111 = vadd.f32 0.0, %v4110
        %v4112 = vpop.f32.mrf.mxu0
        %v4113 = vpop.f32.mrf.mxu0
        %v4114 = vadd.f32 0.0, %v4113
        %v4115 = vpop.f32.mrf.mxu0
        %4116 = vmatprep.mubr.bf16.mxu0 %v3588
        %4117 = vmatmul.mubr.bf16.gmra.mxu0 %v3587
        %v4118 = vpop.f32.mrf.mxu0
        %v4119 = vadd.f32 0.0, %v4118
        %v4120 = vpop.f32.mrf.mxu0
        %v4121 = vadd.f32 0.0, %v4120
        %v4122 = vpop.f32.mrf.mxu0
        %v4123 = vadd.f32 0.0, %v4122
        %v4124 = vpop.f32.mrf.mxu0
        %v4125 = vadd.f32 0.0, %v4124
        %4126 = vmatprep.mubr.bf16.mxu0 %v3591
        %4127 = vmatmul.mubr.bf16.gmra.mxu0 %v3590
        %v4128 = vpop.f32.mrf.mxu0
        %v4129 = vadd.f32 0.0, %v4128
        %v4130 = vpop.f32.mrf.mxu0
        %v4131 = vadd.f32 0.0, %v4130
        %v4132 = vpop.f32.mrf.mxu0
        %v4133 = vadd.f32 0.0, %v4132
        %v4134 = vpop.f32.mrf.mxu0
        %v4135 = vadd.f32 0.0, %v4134
        %4136 = vmatprep.mubr.bf16.mxu0 %v3594
        %4137 = vmatmul.mubr.bf16.gmra.mxu0 %v3593
        %v4138 = vpop.f32.mrf.mxu0
        %v4139 = vadd.f32 0.0, %v4138
        %v4140 = vpop.f32.mrf.mxu0
        %v4141 = vadd.f32 0.0, %v4140
        %v4142 = vpop.f32.mrf.mxu0
        %v4143 = vadd.f32 0.0, %v4142
        %v4144 = vpop.f32.mrf.mxu0
        %v4145 = vadd.f32 0.0, %v4144
        %4146 = vmatprep.mubr.bf16.mxu0 %v3597
        %4147 = vmatmul.mubr.bf16.gmra.mxu0 %v3596
        %v4148 = vpop.f32.mrf.mxu0
        %v4149 = vadd.f32 0.0, %v4148
        %v4150 = vpop.f32.mrf.mxu0
        %v4151 = vadd.f32 0.0, %v4150
        %v4152 = vpop.f32.mrf.mxu0
        %v4153 = vadd.f32 0.0, %v4152
        %v4154 = vpop.f32.mrf.mxu0
        %v4155 = vadd.f32 0.0, %v4154
        %4156 = vmatprep.mubr.bf16.mxu0 %v3600
        %4157 = vmatmul.mubr.bf16.gmra.mxu0 %v3599
        %v4158 = vpop.f32.mrf.mxu0
        %v4159 = vadd.f32 0.0, %v4158
        %v4160 = vpop.f32.mrf.mxu0
        %v4161 = vadd.f32 0.0, %v4160
        %v4162 = vpop.f32.mrf.mxu0
        %v4163 = vadd.f32 0.0, %v4162
        %v4164 = vpop.f32.mrf.mxu0
        %v4165 = vadd.f32 0.0, %v4164
        %4166 = vmatprep.mubr.bf16.mxu0 %v3603
        %4167 = vmatmul.mubr.bf16.gmra.mxu0 %v3602
        %v4168 = vpop.f32.mrf.mxu0
        %v4169 = vadd.f32 0.0, %v4168
        %v4170 = vpop.f32.mrf.mxu0
        %v4171 = vadd.f32 0.0, %v4170
        %v4172 = vpop.f32.mrf.mxu0
        %v4173 = vadd.f32 0.0, %v4172
        %v4174 = vpop.f32.mrf.mxu0
        %v4175 = vadd.f32 0.0, %v4174
        %4176 = vmatprep.mubr.bf16.mxu0 %v3606
        %4177 = vmatmul.mubr.bf16.gmra.mxu0 %v3605
        %v4178 = vpop.f32.mrf.mxu0
        %v4179 = vadd.f32 0.0, %v4178
        %v4180 = vpop.f32.mrf.mxu0
        %v4181 = vadd.f32 0.0, %v4180
        %v4182 = vpop.f32.mrf.mxu0
        %v4183 = vadd.f32 0.0, %v4182
        %v4184 = vpop.f32.mrf.mxu0
        %v4185 = vadd.f32 0.0, %v4184
        %4186 = vmatprep.mubr.bf16.mxu0 %v3609
        %4187 = vmatmul.mubr.bf16.gmra.mxu0 %v3608
        %v4188 = vpop.f32.mrf.mxu0
        %v4189 = vadd.f32 0.0, %v4188
        %v4190 = vpop.f32.mrf.mxu0
        %v4191 = vadd.f32 0.0, %v4190
        %v4192 = vpop.f32.mrf.mxu0
        %v4193 = vadd.f32 0.0, %v4192
        %v4194 = vpop.f32.mrf.mxu0
        %v4195 = vadd.f32 0.0, %v4194
        %4196 = vmatprep.mubr.bf16.mxu0 %v3612
        %4197 = vmatmul.mubr.bf16.gmra.mxu0 %v3611
        %v4198 = vpop.f32.mrf.mxu0
        %v4199 = vadd.f32 0.0, %v4198
        %v4200 = vpop.f32.mrf.mxu0
        %v4201 = vadd.f32 0.0, %v4200
        %v4202 = vpop.f32.mrf.mxu0
        %v4203 = vadd.f32 0.0, %v4202
        %v4204 = vpop.f32.mrf.mxu0
        %v4205 = vadd.f32 0.0, %v4204
        %4206 = vmatprep.mubr.bf16.mxu0 %v3615
        %4207 = vmatmul.mubr.bf16.gmra.mxu0 %v3614
        %v4208 = vpop.f32.mrf.mxu0
        %v4209 = vadd.f32 0.0, %v4208
        %v4210 = vpop.f32.mrf.mxu0
        %v4211 = vadd.f32 0.0, %v4210
        %v4212 = vpop.f32.mrf.mxu0
        %v4213 = vadd.f32 0.0, %v4212
        %v4214 = vpop.f32.mrf.mxu0
        %v4215 = vadd.f32 0.0, %v4214
        %4216 = vmatprep.mubr.bf16.mxu0 %v3618
        %4217 = vmatmul.mubr.bf16.gmra.mxu0 %v3617
        %v4218 = vpop.f32.mrf.mxu0
        %v4219 = vadd.f32 0.0, %v4218
        %v4220 = vpop.f32.mrf.mxu0
        %v4221 = vadd.f32 0.0, %v4220
        %v4222 = vpop.f32.mrf.mxu0
        %v4223 = vadd.f32 0.0, %v4222
        %v4224 = vpop.f32.mrf.mxu0
        %v4225 = vadd.f32 0.0, %v4224
        %4226 = vmatprep.mubr.bf16.mxu0 %v3621
        %4227 = vmatmul.mubr.bf16.gmra.mxu0 %v3620
        %v4228 = vpop.f32.mrf.mxu0
        %v4229 = vadd.f32 0.0, %v4228
        %v4230 = vpop.f32.mrf.mxu0
        %v4231 = vadd.f32 0.0, %v4230
        %v4232 = vpop.f32.mrf.mxu0
        %v4233 = vadd.f32 0.0, %v4232
        %v4234 = vpop.f32.mrf.mxu0
        %v4235 = vadd.f32 0.0, %v4234
        %4236 = vmatprep.mubr.bf16.mxu0 %v3624
        %4237 = vmatmul.mubr.bf16.gmra.mxu0 %v3623
        %v4238 = vpop.f32.mrf.mxu0
        %v4239 = vadd.f32 0.0, %v4238
        %v4240 = vpop.f32.mrf.mxu0
        %v4241 = vadd.f32 0.0, %v4240
        %v4242 = vpop.f32.mrf.mxu0
        %v4243 = vadd.f32 0.0, %v4242
        %v4244 = vpop.f32.mrf.mxu0
        %v4245 = vadd.f32 0.0, %v4244
        %4246 = vmatprep.mubr.bf16.mxu0 %v3627
        %4247 = vmatmul.mubr.bf16.gmra.mxu0 %v3626
        %v4248 = vpop.f32.mrf.mxu0
        %v4249 = vadd.f32 0.0, %v4248
        %v4250 = vpop.f32.mrf.mxu0
        %v4251 = vadd.f32 0.0, %v4250
        %v4252 = vpop.f32.mrf.mxu0
        %v4253 = vadd.f32 0.0, %v4252
        %v4254 = vpop.f32.mrf.mxu0
        %v4255 = vadd.f32 0.0, %v4254
        %4256 = vmatprep.mubr.bf16.mxu0 %v3630
        %4257 = vmatmul.mubr.bf16.gmra.mxu0 %v3629
        %v4258 = vpop.f32.mrf.mxu0
        %v4259 = vadd.f32 0.0, %v4258
        %v4260 = vpop.f32.mrf.mxu0
        %v4261 = vadd.f32 0.0, %v4260
        %v4262 = vpop.f32.mrf.mxu0
        %v4263 = vadd.f32 0.0, %v4262
        %v4264 = vpop.f32.mrf.mxu0
        %v4265 = vadd.f32 0.0, %v4264
        %4266 = vmatprep.mubr.bf16.mxu0 %v3633
        %4267 = vmatmul.mubr.bf16.gmra.mxu0 %v3632
        %v4268 = vpop.f32.mrf.mxu0
        %v4269 = vpop.f32.mrf.mxu0
        %v4270 = vadd.f32 0.0, %v4269
        %v4271 = vpop.f32.mrf.mxu0
        %v4272 = vpop.f32.mrf.mxu0
        %v4273 = vadd.f32 0.0, %v4272
        %4274 = vmatprep.mubr.bf16.mxu0 %v3636
        %4275 = vmatmul.mubr.bf16.gmra.mxu0 %v3635
        %v4276 = vpop.f32.mrf.mxu0
        %v4277 = vpop.f32.mrf.mxu0
        %v4278 = vpop.f32.mrf.mxu0
        %v4279 = vpop.f32.mrf.mxu0
        %4280 = vdwg.mxu0
        %4281 = vmatprep.subr.bf16.mxu0 %v4002
        %4282 = vmatpush1.bf16.msra.mxu0 %v4001
        %4283 = vmatprep.subr.bf16.mxu0 %v3999
        %4284 = vmatpush1.bf16.msra.mxu0 %v3998
        %4285 = vmatprep.subr.bf16.mxu0 %v3996
        %4286 = vmatpush1.bf16.msra.mxu0 %v3995
        %4287 = vmatprep.subr.bf16.mxu0 %v3993
        %4288 = vmatpush1.bf16.msra.mxu0 %v3992
        %4289 = vmatprep.subr.bf16.mxu0 %v3990
        %4290 = vmatpush1.bf16.msra.mxu0 %v3989
        %4291 = vmatprep.subr.bf16.mxu0 %v3987
        %4292 = vmatpush1.bf16.msra.mxu0 %v3986
        %4293 = vmatprep.subr.bf16.mxu0 %v3984
        %4294 = vmatpush1.bf16.msra.mxu0 %v3983
        %4295 = vmatprep.subr.bf16.mxu0 %v3981
        %4296 = vmatpush1.bf16.msra.mxu0 %v3980
        %4297 = vmatprep.subr.bf16.mxu0 0
        %4298 = vmatpush2.bf16.msra.mxu0 0
        %4299 = vmatprep.subr.bf16.mxu0 0
        %4300 = vmatpush2.bf16.msra.mxu0 0
        %4301 = vmatprep.subr.bf16.mxu0 0
        %4302 = vmatpush2.bf16.msra.mxu0 0
        %4303 = vmatprep.subr.bf16.mxu0 0
        %4304 = vmatpush2.bf16.msra.mxu0 0
        %4305 = vmatprep.subr.bf16.mxu0 0
        %4306 = vmatpush2.bf16.msra.mxu0 0
        %4307 = vmatprep.subr.bf16.mxu0 0
        %4308 = vmatpush2.bf16.msra.mxu0 0
        %4309 = vmatprep.subr.bf16.mxu0 0
        %4310 = vmatpush2.bf16.msra.mxu0 0
        %4311 = vmatprep.subr.bf16.mxu0 0
        %4312 = vmatpush2.bf16.msra.mxu0 0
        %4313 = vmatprep.mubr.bf16.mxu0 0
        %4314 = vmatmul.mubr.bf16.gmra.mxu0 %v3586
        %v4315 = vpop.f32.mrf.mxu0
        %v4316 = vadd.f32 %v4111, %v4315
        %v4317 = vpop.f32.mrf.mxu0
        %v4318 = vpop.f32.mrf.mxu0
        %v4319 = vadd.f32 %v4114, %v4318
        %v4320 = vpop.f32.mrf.mxu0
        %4321 = vmatprep.mubr.bf16.mxu0 0
        %4322 = vmatmul.mubr.bf16.gmra.mxu0 %v3589
        %v4323 = vpop.f32.mrf.mxu0
        %v4324 = vadd.f32 %v4119, %v4323
        %v4325 = vpop.f32.mrf.mxu0
        %v4326 = vadd.f32 %v4121, %v4325
        %v4327 = vpop.f32.mrf.mxu0
        %v4328 = vadd.f32 %v4123, %v4327
        %v4329 = vpop.f32.mrf.mxu0
        %v4330 = vadd.f32 %v4125, %v4329
        %4331 = vmatprep.mubr.bf16.mxu0 0
        %4332 = vmatmul.mubr.bf16.gmra.mxu0 %v3592
        %v4333 = vpop.f32.mrf.mxu0
        %v4334 = vadd.f32 %v4129, %v4333
        %v4335 = vpop.f32.mrf.mxu0
        %v4336 = vadd.f32 %v4131, %v4335
        %v4337 = vpop.f32.mrf.mxu0
        %v4338 = vadd.f32 %v4133, %v4337
        %v4339 = vpop.f32.mrf.mxu0
        %v4340 = vadd.f32 %v4135, %v4339
        %4341 = vmatprep.mubr.bf16.mxu0 0
        %4342 = vmatmul.mubr.bf16.gmra.mxu0 %v3595
        %v4343 = vpop.f32.mrf.mxu0
        %v4344 = vadd.f32 %v4139, %v4343
        %v4345 = vpop.f32.mrf.mxu0
        %v4346 = vadd.f32 %v4141, %v4345
        %v4347 = vpop.f32.mrf.mxu0
        %v4348 = vadd.f32 %v4143, %v4347
        %v4349 = vpop.f32.mrf.mxu0
        %v4350 = vadd.f32 %v4145, %v4349
        %4351 = vmatprep.mubr.bf16.mxu0 0
        %4352 = vmatmul.mubr.bf16.gmra.mxu0 %v3598
        %v4353 = vpop.f32.mrf.mxu0
        %v4354 = vadd.f32 %v4149, %v4353
        %v4355 = vpop.f32.mrf.mxu0
        %v4356 = vadd.f32 %v4151, %v4355
        %v4357 = vpop.f32.mrf.mxu0
        %v4358 = vadd.f32 %v4153, %v4357
        %v4359 = vpop.f32.mrf.mxu0
        %v4360 = vadd.f32 %v4155, %v4359
        %4361 = vmatprep.mubr.bf16.mxu0 0
        %4362 = vmatmul.mubr.bf16.gmra.mxu0 %v3601
        %v4363 = vpop.f32.mrf.mxu0
        %v4364 = vadd.f32 %v4159, %v4363
        %v4365 = vpop.f32.mrf.mxu0
        %v4366 = vadd.f32 %v4161, %v4365
        %v4367 = vpop.f32.mrf.mxu0
        %v4368 = vadd.f32 %v4163, %v4367
        %v4369 = vpop.f32.mrf.mxu0
        %v4370 = vadd.f32 %v4165, %v4369
        %4371 = vmatprep.mubr.bf16.mxu0 0
        %4372 = vmatmul.mubr.bf16.gmra.mxu0 %v3604
        %v4373 = vpop.f32.mrf.mxu0
        %v4374 = vadd.f32 %v4169, %v4373
        %v4375 = vpop.f32.mrf.mxu0
        %v4376 = vadd.f32 %v4171, %v4375
        %v4377 = vpop.f32.mrf.mxu0
        %v4378 = vadd.f32 %v4173, %v4377
        %v4379 = vpop.f32.mrf.mxu0
        %v4380 = vadd.f32 %v4175, %v4379
        %4381 = vmatprep.mubr.bf16.mxu0 0
        %4382 = vmatmul.mubr.bf16.gmra.mxu0 %v3607
        %v4383 = vpop.f32.mrf.mxu0
        %v4384 = vadd.f32 %v4179, %v4383
        %v4385 = vpop.f32.mrf.mxu0
        %v4386 = vadd.f32 %v4181, %v4385
        %v4387 = vpop.f32.mrf.mxu0
        %v4388 = vadd.f32 %v4183, %v4387
        %v4389 = vpop.f32.mrf.mxu0
        %v4390 = vadd.f32 %v4185, %v4389
        %4391 = vmatprep.mubr.bf16.mxu0 0
        %4392 = vmatmul.mubr.bf16.gmra.mxu0 %v3610
        %v4393 = vpop.f32.mrf.mxu0
        %v4394 = vadd.f32 %v4189, %v4393
        %v4395 = vpop.f32.mrf.mxu0
        %v4396 = vadd.f32 %v4191, %v4395
        %v4397 = vpop.f32.mrf.mxu0
        %v4398 = vadd.f32 %v4193, %v4397
        %v4399 = vpop.f32.mrf.mxu0
        %v4400 = vadd.f32 %v4195, %v4399
        %4401 = vmatprep.mubr.bf16.mxu0 0
        %4402 = vmatmul.mubr.bf16.gmra.mxu0 %v3613
        %v4403 = vpop.f32.mrf.mxu0
        %v4404 = vadd.f32 %v4199, %v4403
        %v4405 = vpop.f32.mrf.mxu0
        %v4406 = vadd.f32 %v4201, %v4405
        %v4407 = vpop.f32.mrf.mxu0
        %v4408 = vadd.f32 %v4203, %v4407
        %v4409 = vpop.f32.mrf.mxu0
        %v4410 = vadd.f32 %v4205, %v4409
        %4411 = vmatprep.mubr.bf16.mxu0 0
        %4412 = vmatmul.mubr.bf16.gmra.mxu0 %v3616
        %v4413 = vpop.f32.mrf.mxu0
        %v4414 = vadd.f32 %v4209, %v4413
        %v4415 = vpop.f32.mrf.mxu0
        %v4416 = vadd.f32 %v4211, %v4415
        %v4417 = vpop.f32.mrf.mxu0
        %v4418 = vadd.f32 %v4213, %v4417
        %v4419 = vpop.f32.mrf.mxu0
        %v4420 = vadd.f32 %v4215, %v4419
        %4421 = vmatprep.mubr.bf16.mxu0 0
        %4422 = vmatmul.mubr.bf16.gmra.mxu0 %v3619
        %v4423 = vpop.f32.mrf.mxu0
        %v4424 = vadd.f32 %v4219, %v4423
        %v4425 = vpop.f32.mrf.mxu0
        %v4426 = vadd.f32 %v4221, %v4425
        %v4427 = vpop.f32.mrf.mxu0
        %v4428 = vadd.f32 %v4223, %v4427
        %v4429 = vpop.f32.mrf.mxu0
        %v4430 = vadd.f32 %v4225, %v4429
        %4431 = vmatprep.mubr.bf16.mxu0 0
        %4432 = vmatmul.mubr.bf16.gmra.mxu0 %v3622
        %v4433 = vpop.f32.mrf.mxu0
        %v4434 = vadd.f32 %v4229, %v4433
        %v4435 = vpop.f32.mrf.mxu0
        %v4436 = vadd.f32 %v4231, %v4435
        %v4437 = vpop.f32.mrf.mxu0
        %v4438 = vadd.f32 %v4233, %v4437
        %v4439 = vpop.f32.mrf.mxu0
        %v4440 = vadd.f32 %v4235, %v4439
        %4441 = vmatprep.mubr.bf16.mxu0 0
        %4442 = vmatmul.mubr.bf16.gmra.mxu0 %v3625
        %v4443 = vpop.f32.mrf.mxu0
        %v4444 = vadd.f32 %v4239, %v4443
        %v4445 = vpop.f32.mrf.mxu0
        %v4446 = vadd.f32 %v4241, %v4445
        %v4447 = vpop.f32.mrf.mxu0
        %v4448 = vadd.f32 %v4243, %v4447
        %v4449 = vpop.f32.mrf.mxu0
        %v4450 = vadd.f32 %v4245, %v4449
        %4451 = vmatprep.mubr.bf16.mxu0 0
        %4452 = vmatmul.mubr.bf16.gmra.mxu0 %v3628
        %v4453 = vpop.f32.mrf.mxu0
        %v4454 = vadd.f32 %v4249, %v4453
        %v4455 = vpop.f32.mrf.mxu0
        %v4456 = vadd.f32 %v4251, %v4455
        %v4457 = vpop.f32.mrf.mxu0
        %v4458 = vadd.f32 %v4253, %v4457
        %v4459 = vpop.f32.mrf.mxu0
        %v4460 = vadd.f32 %v4255, %v4459
        %4461 = vmatprep.mubr.bf16.mxu0 0
        %4462 = vmatmul.mubr.bf16.gmra.mxu0 %v3631
        %v4463 = vpop.f32.mrf.mxu0
        %v4464 = vadd.f32 %v4259, %v4463
        %v4465 = vpop.f32.mrf.mxu0
        %v4466 = vadd.f32 %v4261, %v4465
        %v4467 = vpop.f32.mrf.mxu0
        %v4468 = vadd.f32 %v4263, %v4467
        %v4469 = vpop.f32.mrf.mxu0
        %v4470 = vadd.f32 %v4265, %v4469
        %4471 = vmatprep.mubr.bf16.mxu0 0
        %4472 = vmatmul.mubr.bf16.gmra.mxu0 %v3634
        %v4473 = vpop.f32.mrf.mxu0
        %v4474 = vpop.f32.mrf.mxu0
        %v4475 = vadd.f32 %v4270, %v4474
        %v4476 = vpop.f32.mrf.mxu0
        %v4477 = vpop.f32.mrf.mxu0
        %v4478 = vadd.f32 %v4273, %v4477
        %4479 = vmatprep.mubr.bf16.mxu0 0
        %4480 = vmatmul.mubr.bf16.gmra.mxu0 %v3637
        %v4481 = vpop.f32.mrf.mxu0
        %v4482 = vpop.f32.mrf.mxu0
        %v4483 = vpop.f32.mrf.mxu0
        %v4484 = vpop.f32.mrf.mxu0
        %4485 = vdwg.mxu0
        %4486 = vmatprep.subr.bf16.mxu0 0
        %4487 = vmatpush1.bf16.msra.mxu0 %v3955
        %4488 = vmatprep.subr.bf16.mxu0 0
        %4489 = vmatpush1.bf16.msra.mxu0 %v3952
        %4490 = vmatprep.subr.bf16.mxu0 0
        %4491 = vmatpush1.bf16.msra.mxu0 %v3949
        %4492 = vmatprep.subr.bf16.mxu0 0
        %4493 = vmatpush1.bf16.msra.mxu0 %v3946
        %4494 = vmatprep.subr.bf16.mxu0 0
        %4495 = vmatpush1.bf16.msra.mxu0 %v3943
        %4496 = vmatprep.subr.bf16.mxu0 0
        %4497 = vmatpush1.bf16.msra.mxu0 %v3940
        %4498 = vmatprep.subr.bf16.mxu0 0
        %4499 = vmatpush1.bf16.msra.mxu0 %v3937
        %4500 = vmatprep.subr.bf16.mxu0 0
        %4501 = vmatpush1.bf16.msra.mxu0 %v3934
        %4502 = vmatprep.subr.bf16.mxu0 0
        %4503 = vmatpush2.bf16.msra.mxu0 %v3979
        %4504 = vmatprep.subr.bf16.mxu0 0
        %4505 = vmatpush2.bf16.msra.mxu0 %v3976
        %4506 = vmatprep.subr.bf16.mxu0 0
        %4507 = vmatpush2.bf16.msra.mxu0 %v3973
        %4508 = vmatprep.subr.bf16.mxu0 0
        %4509 = vmatpush2.bf16.msra.mxu0 %v3970
        %4510 = vmatprep.subr.bf16.mxu0 0
        %4511 = vmatpush2.bf16.msra.mxu0 %v3967
        %4512 = vmatprep.subr.bf16.mxu0 0
        %4513 = vmatpush2.bf16.msra.mxu0 %v3964
        %4514 = vmatprep.subr.bf16.mxu0 0
        %4515 = vmatpush2.bf16.msra.mxu0 %v3961
        %4516 = vmatprep.subr.bf16.mxu0 0
        %4517 = vmatpush2.bf16.msra.mxu0 %v3958
        %4518 = vmatprep.mubr.bf16.mxu0 %v3585
        %4519 = vmatmul.mubr.bf16.gmra.mxu0 %v3584
        %v4520 = vpop.f32.mrf.mxu0
        %v4521 = vpop.f32.mrf.mxu0
        %v4522 = vpop.f32.mrf.mxu0
        %v4523 = vpop.f32.mrf.mxu0
        %4524 = vmatprep.mubr.bf16.mxu0 %v3588
        %4525 = vmatmul.mubr.bf16.gmra.mxu0 %v3587
        %v4526 = vpop.f32.mrf.mxu0
        %v4527 = vpop.f32.mrf.mxu0
        %v4528 = vpop.f32.mrf.mxu0
        %v4529 = vpop.f32.mrf.mxu0
        %4530 = vmatprep.mubr.bf16.mxu0 %v3591
        %4531 = vmatmul.mubr.bf16.gmra.mxu0 %v3590
        %v4532 = vpop.f32.mrf.mxu0
        %v4533 = vadd.f32 0.0, %v4532
        %v4534 = vpop.f32.mrf.mxu0
        %v4535 = vpop.f32.mrf.mxu0
        %v4536 = vadd.f32 0.0, %v4535
        %v4537 = vpop.f32.mrf.mxu0
        %4538 = vmatprep.mubr.bf16.mxu0 %v3594
        %4539 = vmatmul.mubr.bf16.gmra.mxu0 %v3593
        %v4540 = vpop.f32.mrf.mxu0
        %v4541 = vadd.f32 0.0, %v4540
        %v4542 = vpop.f32.mrf.mxu0
        %v4543 = vpop.f32.mrf.mxu0
        %v4544 = vadd.f32 0.0, %v4543
        %v4545 = vpop.f32.mrf.mxu0
        %4546 = vmatprep.mubr.bf16.mxu0 %v3597
        %4547 = vmatmul.mubr.bf16.gmra.mxu0 %v3596
        %v4548 = vpop.f32.mrf.mxu0
        %v4549 = vadd.f32 0.0, %v4548
        %v4550 = vpop.f32.mrf.mxu0
        %v4551 = vpop.f32.mrf.mxu0
        %v4552 = vadd.f32 0.0, %v4551
        %v4553 = vpop.f32.mrf.mxu0
        %4554 = vmatprep.mubr.bf16.mxu0 %v3600
        %4555 = vmatmul.mubr.bf16.gmra.mxu0 %v3599
        %v4556 = vpop.f32.mrf.mxu0
        %v4557 = vadd.f32 0.0, %v4556
        %v4558 = vpop.f32.mrf.mxu0
        %v4559 = vpop.f32.mrf.mxu0
        %v4560 = vadd.f32 0.0, %v4559
        %v4561 = vpop.f32.mrf.mxu0
        %4562 = vmatprep.mubr.bf16.mxu0 %v3603
        %4563 = vmatmul.mubr.bf16.gmra.mxu0 %v3602
        %v4564 = vpop.f32.mrf.mxu0
        %v4565 = vadd.f32 0.0, %v4564
        %v4566 = vpop.f32.mrf.mxu0
        %v4567 = vpop.f32.mrf.mxu0
        %v4568 = vadd.f32 0.0, %v4567
        %v4569 = vpop.f32.mrf.mxu0
        %4570 = vmatprep.mubr.bf16.mxu0 %v3606
        %4571 = vmatmul.mubr.bf16.gmra.mxu0 %v3605
        %v4572 = vpop.f32.mrf.mxu0
        %v4573 = vadd.f32 0.0, %v4572
        %v4574 = vpop.f32.mrf.mxu0
        %v4575 = vpop.f32.mrf.mxu0
        %v4576 = vadd.f32 0.0, %v4575
        %v4577 = vpop.f32.mrf.mxu0
        %4578 = vmatprep.mubr.bf16.mxu0 %v3609
        %4579 = vmatmul.mubr.bf16.gmra.mxu0 %v3608
        %v4580 = vpop.f32.mrf.mxu0
        %v4581 = vadd.f32 0.0, %v4580
        %v4582 = vpop.f32.mrf.mxu0
        %v4583 = vpop.f32.mrf.mxu0
        %v4584 = vadd.f32 0.0, %v4583
        %v4585 = vpop.f32.mrf.mxu0
        %4586 = vmatprep.mubr.bf16.mxu0 %v3612
        %4587 = vmatmul.mubr.bf16.gmra.mxu0 %v3611
        %v4588 = vpop.f32.mrf.mxu0
        %v4589 = vadd.f32 0.0, %v4588
        %v4590 = vpop.f32.mrf.mxu0
        %v4591 = vpop.f32.mrf.mxu0
        %v4592 = vadd.f32 0.0, %v4591
        %v4593 = vpop.f32.mrf.mxu0
        %4594 = vmatprep.mubr.bf16.mxu0 %v3615
        %4595 = vmatmul.mubr.bf16.gmra.mxu0 %v3614
        %v4596 = vpop.f32.mrf.mxu0
        %v4597 = vadd.f32 0.0, %v4596
        %v4598 = vpop.f32.mrf.mxu0
        %v4599 = vpop.f32.mrf.mxu0
        %v4600 = vadd.f32 0.0, %v4599
        %v4601 = vpop.f32.mrf.mxu0
        %4602 = vmatprep.mubr.bf16.mxu0 %v3618
        %4603 = vmatmul.mubr.bf16.gmra.mxu0 %v3617
        %v4604 = vpop.f32.mrf.mxu0
        %v4605 = vadd.f32 0.0, %v4604
        %v4606 = vpop.f32.mrf.mxu0
        %v4607 = vpop.f32.mrf.mxu0
        %v4608 = vadd.f32 0.0, %v4607
        %v4609 = vpop.f32.mrf.mxu0
        %4610 = vmatprep.mubr.bf16.mxu0 %v3621
        %4611 = vmatmul.mubr.bf16.gmra.mxu0 %v3620
        %v4612 = vpop.f32.mrf.mxu0
        %v4613 = vadd.f32 0.0, %v4612
        %v4614 = vpop.f32.mrf.mxu0
        %v4615 = vpop.f32.mrf.mxu0
        %v4616 = vadd.f32 0.0, %v4615
        %v4617 = vpop.f32.mrf.mxu0
        %4618 = vmatprep.mubr.bf16.mxu0 %v3624
        %4619 = vmatmul.mubr.bf16.gmra.mxu0 %v3623
        %v4620 = vpop.f32.mrf.mxu0
        %v4621 = vadd.f32 0.0, %v4620
        %v4622 = vpop.f32.mrf.mxu0
        %v4623 = vpop.f32.mrf.mxu0
        %v4624 = vadd.f32 0.0, %v4623
        %v4625 = vpop.f32.mrf.mxu0
        %4626 = vmatprep.mubr.bf16.mxu0 %v3627
        %4627 = vmatmul.mubr.bf16.gmra.mxu0 %v3626
        %v4628 = vpop.f32.mrf.mxu0
        %v4629 = vadd.f32 0.0, %v4628
        %v4630 = vpop.f32.mrf.mxu0
        %v4631 = vpop.f32.mrf.mxu0
        %v4632 = vadd.f32 0.0, %v4631
        %v4633 = vpop.f32.mrf.mxu0
        %4634 = vmatprep.mubr.bf16.mxu0 %v3630
        %4635 = vmatmul.mubr.bf16.gmra.mxu0 %v3629
        %v4636 = vpop.f32.mrf.mxu0
        %v4637 = vadd.f32 0.0, %v4636
        %v4638 = vpop.f32.mrf.mxu0
        %v4639 = vpop.f32.mrf.mxu0
        %v4640 = vadd.f32 0.0, %v4639
        %v4641 = vpop.f32.mrf.mxu0
        %4642 = vmatprep.mubr.bf16.mxu0 %v3633
        %4643 = vmatmul.mubr.bf16.gmra.mxu0 %v3632
        %v4644 = vpop.f32.mrf.mxu0
        %v4645 = vadd.f32 0.0, %v4644
        %v4646 = vpop.f32.mrf.mxu0
        %v4647 = vpop.f32.mrf.mxu0
        %v4648 = vadd.f32 0.0, %v4647
        %v4649 = vpop.f32.mrf.mxu0
        %4650 = vmatprep.mubr.bf16.mxu0 %v3636
        %4651 = vmatmul.mubr.bf16.gmra.mxu0 %v3635
        %v4652 = vpop.f32.mrf.mxu0
        %v4653 = vadd.f32 0.0, %v4652
        %v4654 = vpop.f32.mrf.mxu0
        %v4655 = vpop.f32.mrf.mxu0
        %v4656 = vadd.f32 0.0, %v4655
        %v4657 = vpop.f32.mrf.mxu0
        %4658 = vdwg.mxu0
        %4659 = vmatprep.subr.bf16.mxu0 0
        %4660 = vmatpush1.bf16.msra.mxu0 %v4003
        %4661 = vmatprep.subr.bf16.mxu0 0
        %4662 = vmatpush1.bf16.msra.mxu0 %v4000
        %4663 = vmatprep.subr.bf16.mxu0 0
        %4664 = vmatpush1.bf16.msra.mxu0 %v3997
        %4665 = vmatprep.subr.bf16.mxu0 0
        %4666 = vmatpush1.bf16.msra.mxu0 %v3994
        %4667 = vmatprep.subr.bf16.mxu0 0
        %4668 = vmatpush1.bf16.msra.mxu0 %v3991
        %4669 = vmatprep.subr.bf16.mxu0 0
        %4670 = vmatpush1.bf16.msra.mxu0 %v3988
        %4671 = vmatprep.subr.bf16.mxu0 0
        %4672 = vmatpush1.bf16.msra.mxu0 %v3985
        %4673 = vmatprep.subr.bf16.mxu0 0
        %4674 = vmatpush1.bf16.msra.mxu0 %v3982
        %4675 = vmatprep.subr.bf16.mxu0 0
        %4676 = vmatpush2.bf16.msra.mxu0 0
        %4677 = vmatprep.subr.bf16.mxu0 0
        %4678 = vmatpush2.bf16.msra.mxu0 0
        %4679 = vmatprep.subr.bf16.mxu0 0
        %4680 = vmatpush2.bf16.msra.mxu0 0
        %4681 = vmatprep.subr.bf16.mxu0 0
        %4682 = vmatpush2.bf16.msra.mxu0 0
        %4683 = vmatprep.subr.bf16.mxu0 0
        %4684 = vmatpush2.bf16.msra.mxu0 0
        %4685 = vmatprep.subr.bf16.mxu0 0
        %4686 = vmatpush2.bf16.msra.mxu0 0
        %4687 = vmatprep.subr.bf16.mxu0 0
        %4688 = vmatpush2.bf16.msra.mxu0 0
        %4689 = vmatprep.subr.bf16.mxu0 0
        %4690 = vmatpush2.bf16.msra.mxu0 0
        %4691 = vmatprep.mubr.bf16.mxu0 0
        %4692 = vmatmul.mubr.bf16.gmra.mxu0 %v3586
        %v4693 = vpop.f32.mrf.mxu0
        %v4694 = vpop.f32.mrf.mxu0
        %v4695 = vpop.f32.mrf.mxu0
        %v4696 = vpop.f32.mrf.mxu0
        %4697 = vmatprep.mubr.bf16.mxu0 0
        %4698 = vmatmul.mubr.bf16.gmra.mxu0 %v3589
        %v4699 = vpop.f32.mrf.mxu0
        %v4700 = vpop.f32.mrf.mxu0
        %v4701 = vpop.f32.mrf.mxu0
        %v4702 = vpop.f32.mrf.mxu0
        %4703 = vmatprep.mubr.bf16.mxu0 0
        %4704 = vmatmul.mubr.bf16.gmra.mxu0 %v3592
        %v4705 = vpop.f32.mrf.mxu0
        %v4706 = vadd.f32 %v4533, %v4705
        %v4707 = vpop.f32.mrf.mxu0
        %v4708 = vpop.f32.mrf.mxu0
        %v4709 = vadd.f32 %v4536, %v4708
        %v4710 = vpop.f32.mrf.mxu0
        %4711 = vmatprep.mubr.bf16.mxu0 0
        %4712 = vmatmul.mubr.bf16.gmra.mxu0 %v3595
        %v4713 = vpop.f32.mrf.mxu0
        %v4714 = vadd.f32 %v4541, %v4713
        %v4715 = vpop.f32.mrf.mxu0
        %v4716 = vpop.f32.mrf.mxu0
        %v4717 = vadd.f32 %v4544, %v4716
        %v4718 = vpop.f32.mrf.mxu0
        %4719 = vmatprep.mubr.bf16.mxu0 0
        %4720 = vmatmul.mubr.bf16.gmra.mxu0 %v3598
        %v4721 = vpop.f32.mrf.mxu0
        %v4722 = vadd.f32 %v4549, %v4721
        %v4723 = vpop.f32.mrf.mxu0
        %v4724 = vpop.f32.mrf.mxu0
        %v4725 = vadd.f32 %v4552, %v4724
        %v4726 = vpop.f32.mrf.mxu0
        %4727 = vmatprep.mubr.bf16.mxu0 0
        %4728 = vmatmul.mubr.bf16.gmra.mxu0 %v3601
        %v4729 = vpop.f32.mrf.mxu0
        %v4730 = vadd.f32 %v4557, %v4729
        %v4731 = vpop.f32.mrf.mxu0
        %v4732 = vpop.f32.mrf.mxu0
        %v4733 = vadd.f32 %v4560, %v4732
        %v4734 = vpop.f32.mrf.mxu0
        %4735 = vmatprep.mubr.bf16.mxu0 0
        %4736 = vmatmul.mubr.bf16.gmra.mxu0 %v3604
        %v4737 = vpop.f32.mrf.mxu0
        %v4738 = vadd.f32 %v4565, %v4737
        %v4739 = vpop.f32.mrf.mxu0
        %v4740 = vpop.f32.mrf.mxu0
        %v4741 = vadd.f32 %v4568, %v4740
        %v4742 = vpop.f32.mrf.mxu0
        %4743 = vmatprep.mubr.bf16.mxu0 0
        %4744 = vmatmul.mubr.bf16.gmra.mxu0 %v3607
        %v4745 = vpop.f32.mrf.mxu0
        %v4746 = vadd.f32 %v4573, %v4745
        %v4747 = vpop.f32.mrf.mxu0
        %v4748 = vpop.f32.mrf.mxu0
        %v4749 = vadd.f32 %v4576, %v4748
        %v4750 = vpop.f32.mrf.mxu0
        %4751 = vmatprep.mubr.bf16.mxu0 0
        %4752 = vmatmul.mubr.bf16.gmra.mxu0 %v3610
        %v4753 = vpop.f32.mrf.mxu0
        %v4754 = vadd.f32 %v4581, %v4753
        %v4755 = vpop.f32.mrf.mxu0
        %v4756 = vpop.f32.mrf.mxu0
        %v4757 = vadd.f32 %v4584, %v4756
        %v4758 = vpop.f32.mrf.mxu0
        %4759 = vmatprep.mubr.bf16.mxu0 0
        %4760 = vmatmul.mubr.bf16.gmra.mxu0 %v3613
        %v4761 = vpop.f32.mrf.mxu0
        %v4762 = vadd.f32 %v4589, %v4761
        %v4763 = vpop.f32.mrf.mxu0
        %v4764 = vpop.f32.mrf.mxu0
        %v4765 = vadd.f32 %v4592, %v4764
        %v4766 = vpop.f32.mrf.mxu0
        %4767 = vmatprep.mubr.bf16.mxu0 0
        %4768 = vmatmul.mubr.bf16.gmra.mxu0 %v3616
        %v4769 = vpop.f32.mrf.mxu0
        %v4770 = vadd.f32 %v4597, %v4769
        %v4771 = vpop.f32.mrf.mxu0
        %v4772 = vpop.f32.mrf.mxu0
        %v4773 = vadd.f32 %v4600, %v4772
        %v4774 = vpop.f32.mrf.mxu0
        %4775 = vmatprep.mubr.bf16.mxu0 0
        %4776 = vmatmul.mubr.bf16.gmra.mxu0 %v3619
        %v4777 = vpop.f32.mrf.mxu0
        %v4778 = vadd.f32 %v4605, %v4777
        %v4779 = vpop.f32.mrf.mxu0
        %v4780 = vpop.f32.mrf.mxu0
        %v4781 = vadd.f32 %v4608, %v4780
        %v4782 = vpop.f32.mrf.mxu0
        %4783 = vmatprep.mubr.bf16.mxu0 0
        %4784 = vmatmul.mubr.bf16.gmra.mxu0 %v3622
        %v4785 = vpop.f32.mrf.mxu0
        %v4786 = vadd.f32 %v4613, %v4785
        %v4787 = vpop.f32.mrf.mxu0
        %v4788 = vpop.f32.mrf.mxu0
        %v4789 = vadd.f32 %v4616, %v4788
        %v4790 = vpop.f32.mrf.mxu0
        %4791 = vmatprep.mubr.bf16.mxu0 0
        %4792 = vmatmul.mubr.bf16.gmra.mxu0 %v3625
        %v4793 = vpop.f32.mrf.mxu0
        %v4794 = vadd.f32 %v4621, %v4793
        %v4795 = vpop.f32.mrf.mxu0
        %v4796 = vpop.f32.mrf.mxu0
        %v4797 = vadd.f32 %v4624, %v4796
        %v4798 = vpop.f32.mrf.mxu0
        %4799 = vmatprep.mubr.bf16.mxu0 0
        %4800 = vmatmul.mubr.bf16.gmra.mxu0 %v3628
        %v4801 = vpop.f32.mrf.mxu0
        %v4802 = vadd.f32 %v4629, %v4801
        %v4803 = vpop.f32.mrf.mxu0
        %v4804 = vpop.f32.mrf.mxu0
        %v4805 = vadd.f32 %v4632, %v4804
        %v4806 = vpop.f32.mrf.mxu0
        %4807 = vmatprep.mubr.bf16.mxu0 0
        %4808 = vmatmul.mubr.bf16.gmra.mxu0 %v3631
        %v4809 = vpop.f32.mrf.mxu0
        %v4810 = vadd.f32 %v4637, %v4809
        %v4811 = vpop.f32.mrf.mxu0
        %v4812 = vpop.f32.mrf.mxu0
        %v4813 = vadd.f32 %v4640, %v4812
        %v4814 = vpop.f32.mrf.mxu0
        %4815 = vmatprep.mubr.bf16.mxu0 0
        %4816 = vmatmul.mubr.bf16.gmra.mxu0 %v3634
        %v4817 = vpop.f32.mrf.mxu0
        %v4818 = vadd.f32 %v4645, %v4817
        %v4819 = vpop.f32.mrf.mxu0
        %v4820 = vpop.f32.mrf.mxu0
        %v4821 = vadd.f32 %v4648, %v4820
        %v4822 = vpop.f32.mrf.mxu0
        %4823 = vmatprep.mubr.bf16.mxu0 0
        %4824 = vmatmul.mubr.bf16.gmra.mxu0 %v3637
        %v4825 = vpop.f32.mrf.mxu0
        %v4826 = vadd.f32 %v4653, %v4825
        %v4827 = vpop.f32.mrf.mxu0
        %v4828 = vpop.f32.mrf.mxu0
        %v4829 = vadd.f32 %v4656, %v4828
        %v4830 = vpop.f32.mrf.mxu0
        %4831 = vdwg.mxu0
        %v4832 = vadd.f32 %v4316, %v4326
        %v4833 = vadd.f32 %v4319, %v4330
        %v4834 = vadd.f32 %v4324, %v4336
        %v4835 = vadd.f32 %v4328, %v4340
        %v4836 = vadd.f32 %v4334, %v4346
        %v4837 = vadd.f32 %v4338, %v4350
        %v4838 = vadd.f32 %v4344, %v4356
        %v4839 = vadd.f32 %v4348, %v4360
        %v4840 = vadd.f32 %v4354, %v4366
        %v4841 = vadd.f32 %v4358, %v4370
        %v4842 = vadd.f32 %v4364, %v4376
        %v4843 = vadd.f32 %v4368, %v4380
        %v4844 = vadd.f32 %v4374, %v4386
        %v4845 = vadd.f32 %v4378, %v4390
        %v4846 = vadd.f32 %v4384, %v4396
        %v4847 = vadd.f32 %v4388, %v4400
        %v4848 = vadd.f32 %v4394, %v4406
        %v4849 = vadd.f32 %v4398, %v4410
        %v4850 = vadd.f32 %v4404, %v4416
        %v4851 = vadd.f32 %v4408, %v4420
        %v4852 = vadd.f32 %v4414, %v4426
        %v4853 = vadd.f32 %v4418, %v4430
        %v4854 = vadd.f32 %v4424, %v4436
        %v4855 = vadd.f32 %v4428, %v4440
        %v4856 = vadd.f32 %v4434, %v4446
        %v4857 = vadd.f32 %v4438, %v4450
        %v4858 = vadd.f32 %v4444, %v4456
        %v4859 = vadd.f32 %v4448, %v4460
        %v4860 = vadd.f32 %v4454, %v4466
        %v4861 = vadd.f32 %v4458, %v4470
        %v4862 = vadd.f32 %v4464, %v4475
        %v4863 = vadd.f32 %v4468, %v4478
        %v4864 = vadd.f32 %v4832, %v4706
        %v4865 = vadd.f32 %v4833, %v4709
        %v4866 = vadd.f32 %v4834, %v4714
        %v4867 = vadd.f32 %v4835, %v4717
        %v4868 = vadd.f32 %v4836, %v4722
        %v4869 = vadd.f32 %v4837, %v4725
        %v4870 = vadd.f32 %v4838, %v4730
        %v4871 = vadd.f32 %v4839, %v4733
        %v4872 = vadd.f32 %v4840, %v4738
        %v4873 = vadd.f32 %v4841, %v4741
        %v4874 = vadd.f32 %v4842, %v4746
        %v4875 = vadd.f32 %v4843, %v4749
        %v4876 = vadd.f32 %v4844, %v4754
        %v4877 = vadd.f32 %v4845, %v4757
        %v4878 = vadd.f32 %v4846, %v4762
        %v4879 = vadd.f32 %v4847, %v4765
        %v4880 = vadd.f32 %v4848, %v4770
        %v4881 = vadd.f32 %v4849, %v4773
        %v4882 = vadd.f32 %v4850, %v4778
        %v4883 = vadd.f32 %v4851, %v4781
        %v4884 = vadd.f32 %v4852, %v4786
        %v4885 = vadd.f32 %v4853, %v4789
        %v4886 = vadd.f32 %v4854, %v4794
        %v4887 = vadd.f32 %v4855, %v4797
        %v4888 = vadd.f32 %v4856, %v4802
        %v4889 = vadd.f32 %v4857, %v4805
        %v4890 = vadd.f32 %v4858, %v4810
        %v4891 = vadd.f32 %v4859, %v4813
        %v4892 = vadd.f32 %v4860, %v4818
        %v4893 = vadd.f32 %v4861, %v4821
        %v4894 = vadd.f32 %v4862, %v4826
        %v4895 = vadd.f32 %v4863, %v4829
        %v4896 = vadd.f32 %v4864, %v4865
        %v4897 = vadd.f32 %v4896, %v4866
        %v4898 = vadd.f32 %v4897, %v4867
        %v4899 = vadd.f32 %v4898, %v4868
        %v4900 = vadd.f32 %v4899, %v4869
        %v4901 = vadd.f32 %v4900, %v4870
        %v4902 = vadd.f32 %v4901, %v4871
        %v4903 = vadd.f32 %v4902, %v4872
        %v4904 = vadd.f32 %v4903, %v4873
        %v4905 = vadd.f32 %v4904, %v4874
        %v4906 = vadd.f32 %v4905, %v4875
        %v4907 = vadd.f32 %v4906, %v4876
        %v4908 = vadd.f32 %v4907, %v4877
        %v4909 = vadd.f32 %v4908, %v4878
        %v4910 = vadd.f32 %v4909, %v4879
        %v4911 = vadd.f32 %v4910, %v4880
        %v4912 = vadd.f32 %v4911, %v4881
        %v4913 = vadd.f32 %v4912, %v4882
        %v4914 = vadd.f32 %v4913, %v4883
        %v4915 = vadd.f32 %v4914, %v4884
        %v4916 = vadd.f32 %v4915, %v4885
        %v4917 = vadd.f32 %v4916, %v4886
        %v4918 = vadd.f32 %v4917, %v4887
        %v4919 = vadd.f32 %v4918, %v4888
        %v4920 = vadd.f32 %v4919, %v4889
        %v4921 = vadd.f32 %v4920, %v4890
        %v4922 = vadd.f32 %v4921, %v4891
        %v4923 = vadd.f32 %v4922, %v4892
        %v4924 = vadd.f32 %v4923, %v4893
        %v4925 = vadd.f32 %v4924, %v4894
        %v4926 = vadd.f32 %v4925, %v4895
        %v4927 = vrot.slane %v4926, 4
        %v4928 = vadd.f32 %v4926, %v4927
        %v4929 = vrot.slane %v4928, 2
        %v4930 = vadd.f32 %v4928, %v4929
        %v4931 = vrot.slane %v4930, 1
        %v4932 = vadd.f32 %v4930, %v4931
        %v4933 = vmul.f32 %v4932, 0.00390625
        %v4934 = vsub.f32 %v4864, %v4933
        %v4935 = vsub.f32 %v4865, %v4933
        %v4936 = vsub.f32 %v4866, %v4933
        %v4937 = vsub.f32 %v4867, %v4933
        %v4938 = vsub.f32 %v4868, %v4933
        %v4939 = vsub.f32 %v4869, %v4933
        %v4940 = vsub.f32 %v4870, %v4933
        %v4941 = vsub.f32 %v4871, %v4933
        %v4942 = vsub.f32 %v4872, %v4933
        %v4943 = vsub.f32 %v4873, %v4933
        %v4944 = vsub.f32 %v4874, %v4933
        %v4945 = vsub.f32 %v4875, %v4933
        %v4946 = vsub.f32 %v4876, %v4933
        %v4947 = vsub.f32 %v4877, %v4933
        %v4948 = vsub.f32 %v4878, %v4933
        %v4949 = vsub.f32 %v4879, %v4933
        %v4950 = vsub.f32 %v4880, %v4933
        %v4951 = vsub.f32 %v4881, %v4933
        %v4952 = vsub.f32 %v4882, %v4933
        %v4953 = vsub.f32 %v4883, %v4933
        %v4954 = vsub.f32 %v4884, %v4933
        %v4955 = vsub.f32 %v4885, %v4933
        %v4956 = vsub.f32 %v4886, %v4933
        %v4957 = vsub.f32 %v4887, %v4933
        %v4958 = vsub.f32 %v4888, %v4933
        %v4959 = vsub.f32 %v4889, %v4933
        %v4960 = vsub.f32 %v4890, %v4933
        %v4961 = vsub.f32 %v4891, %v4933
        %v4962 = vsub.f32 %v4892, %v4933
        %v4963 = vsub.f32 %v4893, %v4933
        %v4964 = vsub.f32 %v4894, %v4933
        %v4965 = vsub.f32 %v4895, %v4933
        %v4966 = vmul.f32 %v4934, %v4934
        %v4967 = vmul.f32 %v4935, %v4935
        %v4968 = vmul.f32 %v4936, %v4936
        %v4969 = vmul.f32 %v4937, %v4937
        %v4970 = vmul.f32 %v4938, %v4938
        %v4971 = vmul.f32 %v4939, %v4939
        %v4972 = vmul.f32 %v4940, %v4940
        %v4973 = vmul.f32 %v4941, %v4941
        %v4974 = vmul.f32 %v4942, %v4942
        %v4975 = vmul.f32 %v4943, %v4943
        %v4976 = vmul.f32 %v4944, %v4944
        %v4977 = vmul.f32 %v4945, %v4945
        %v4978 = vmul.f32 %v4946, %v4946
        %v4979 = vmul.f32 %v4947, %v4947
        %v4980 = vmul.f32 %v4948, %v4948
        %v4981 = vmul.f32 %v4949, %v4949
        %v4982 = vmul.f32 %v4950, %v4950
        %v4983 = vmul.f32 %v4951, %v4951
        %v4984 = vmul.f32 %v4952, %v4952
        %v4985 = vmul.f32 %v4953, %v4953
        %v4986 = vmul.f32 %v4954, %v4954
        %v4987 = vmul.f32 %v4955, %v4955
        %v4988 = vmul.f32 %v4956, %v4956
        %v4989 = vmul.f32 %v4957, %v4957
        %v4990 = vmul.f32 %v4958, %v4958
        %v4991 = vmul.f32 %v4959, %v4959
        %v4992 = vmul.f32 %v4960, %v4960
        %v4993 = vmul.f32 %v4961, %v4961
        %v4994 = vmul.f32 %v4962, %v4962
        %v4995 = vmul.f32 %v4963, %v4963
        %v4996 = vmul.f32 %v4964, %v4964
        %v4997 = vmul.f32 %v4965, %v4965
        %v4998 = vadd.f32 %v4966, %v4967
        %v4999 = vadd.f32 %v4998, %v4968
        %v5000 = vadd.f32 %v4999, %v4969
        %v5001 = vadd.f32 %v5000, %v4970
        %v5002 = vadd.f32 %v5001, %v4971
        %v5003 = vadd.f32 %v5002, %v4972
        %v5004 = vadd.f32 %v5003, %v4973
        %v5005 = vadd.f32 %v5004, %v4974
        %v5006 = vadd.f32 %v5005, %v4975
        %v5007 = vadd.f32 %v5006, %v4976
        %v5008 = vadd.f32 %v5007, %v4977
        %v5009 = vadd.f32 %v5008, %v4978
        %v5010 = vadd.f32 %v5009, %v4979
        %v5011 = vadd.f32 %v5010, %v4980
        %v5012 = vadd.f32 %v5011, %v4981
        %v5013 = vadd.f32 %v5012, %v4982
        %v5014 = vadd.f32 %v5013, %v4983
        %v5015 = vadd.f32 %v5014, %v4984
        %v5016 = vadd.f32 %v5015, %v4985
        %v5017 = vadd.f32 %v5016, %v4986
        %v5018 = vadd.f32 %v5017, %v4987
        %v5019 = vadd.f32 %v5018, %v4988
        %v5020 = vadd.f32 %v5019, %v4989
        %v5021 = vadd.f32 %v5020, %v4990
        %v5022 = vadd.f32 %v5021, %v4991
        %v5023 = vadd.f32 %v5022, %v4992
        %v5024 = vadd.f32 %v5023, %v4993
        %v5025 = vadd.f32 %v5024, %v4994
        %v5026 = vadd.f32 %v5025, %v4995
        %v5027 = vadd.f32 %v5026, %v4996
        %v5028 = vadd.f32 %v5027, %v4997
        %v5029 = vrot.slane %v5028, 4
        %v5030 = vadd.f32 %v5028, %v5029
        %v5031 = vrot.slane %v5030, 2
        %v5032 = vadd.f32 %v5030, %v5031
        %v5033 = vrot.slane %v5032, 1
        %v5034 = vadd.f32 %v5032, %v5033
        %v5035 = vmul.f32 %v5034, 0.00390625
        %v5036 = vadd.f32 %v5035, 1e-05
        %v5037 = vrsqrt.pop %v5036
        %v5038 = vld [vmem:[%s6] sm:$0x1]
        %v5039 = vmul.f32 %v5037, %v5038
        %v5040 = vlaneseq
        %v5041 = vshrl.u32 %v5040, 7
        %v5042 = vsub.s32 0, %v5041
        %v5043 = vrot.slane %v5039, %v5042
        %v5044 = vmul.f32 %v4934, %v5043
        %v5045 = vmul.f32 %v4935, %v5043
        %v5046 = vmul.f32 %v4936, %v5043
        %v5047 = vmul.f32 %v4937, %v5043
        %v5048 = vmul.f32 %v4938, %v5043
        %v5049 = vmul.f32 %v4939, %v5043
        %v5050 = vmul.f32 %v4940, %v5043
        %v5051 = vmul.f32 %v4941, %v5043
        %v5052 = vmul.f32 %v4942, %v5043
        %v5053 = vmul.f32 %v4943, %v5043
        %v5054 = vmul.f32 %v4944, %v5043
        %v5055 = vmul.f32 %v4945, %v5043
        %v5056 = vmul.f32 %v4946, %v5043
        %v5057 = vmul.f32 %v4947, %v5043
        %v5058 = vmul.f32 %v4948, %v5043
        %v5059 = vmul.f32 %v4949, %v5043
        %v5060 = vmul.f32 %v4950, %v5043
        %v5061 = vmul.f32 %v4951, %v5043
        %v5062 = vmul.f32 %v4952, %v5043
        %v5063 = vmul.f32 %v4953, %v5043
        %v5064 = vmul.f32 %v4954, %v5043
        %v5065 = vmul.f32 %v4955, %v5043
        %v5066 = vmul.f32 %v4956, %v5043
        %v5067 = vmul.f32 %v4957, %v5043
        %v5068 = vmul.f32 %v4958, %v5043
        %v5069 = vmul.f32 %v4959, %v5043
        %v5070 = vmul.f32 %v4960, %v5043
        %v5071 = vmul.f32 %v4961, %v5043
        %v5072 = vmul.f32 %v4962, %v5043
        %v5073 = vmul.f32 %v4963, %v5043
        %v5074 = vmul.f32 %v4964, %v5043
        %v5075 = vmul.f32 %v4965, %v5043
        %v5076 = vld [vmem:[%s7] sm:$0x1]
        %v5078 = vlaneseq
        %v5079 = vshrl.u32 %v5078, 7
        %v5080 = vsub.s32 0, %v5079
        %v5081 = vrot.slane %v5076, %v5080
        %v5083 = vadd.f32 %v5044, %v5081
        %v5084 = vadd.f32 %v5045, %v5081
        %v5085 = vadd.f32 %v5046, %v5081
        %v5086 = vadd.f32 %v5047, %v5081
        %v5087 = vadd.f32 %v5048, %v5081
        %v5088 = vadd.f32 %v5049, %v5081
        %v5089 = vadd.f32 %v5050, %v5081
        %v5090 = vadd.f32 %v5051, %v5081
        %v5091 = vadd.f32 %v5052, %v5081
        %v5092 = vadd.f32 %v5053, %v5081
        %v5093 = vadd.f32 %v5054, %v5081
        %v5094 = vadd.f32 %v5055, %v5081
        %v5095 = vadd.f32 %v5056, %v5081
        %v5096 = vadd.f32 %v5057, %v5081
        %v5097 = vadd.f32 %v5058, %v5081
        %v5098 = vadd.f32 %v5059, %v5081
        %v5099 = vadd.f32 %v5060, %v5081
        %v5100 = vadd.f32 %v5061, %v5081
        %v5101 = vadd.f32 %v5062, %v5081
        %v5102 = vadd.f32 %v5063, %v5081
        %v5103 = vadd.f32 %v5064, %v5081
        %v5104 = vadd.f32 %v5065, %v5081
        %v5105 = vadd.f32 %v5066, %v5081
        %v5106 = vadd.f32 %v5067, %v5081
        %v5107 = vadd.f32 %v5068, %v5081
        %v5108 = vadd.f32 %v5069, %v5081
        %v5109 = vadd.f32 %v5070, %v5081
        %v5110 = vadd.f32 %v5071, %v5081
        %v5111 = vadd.f32 %v5072, %v5081
        %v5112 = vadd.f32 %v5073, %v5081
        %v5113 = vadd.f32 %v5074, %v5081
        %v5114 = vadd.f32 %v5075, %v5081
        %v5115 = vld [vmem:[%s347] sm:$0xff]
        %v5116 = vld [vmem:[%s347 + $0x8] sm:$0xff]
        %v5117 = vld [vmem:[%s347 + $0x10] sm:$0xff]
        %v5118 = vld [vmem:[%s347 + $0x18] sm:$0xff]
        %v5119 = vld [vmem:[%s347 + $0x20] sm:$0xff]
        %v5120 = vld [vmem:[%s347 + $0x28] sm:$0xff]
        %v5121 = vld [vmem:[%s347 + $0x30] sm:$0xff]
        %v5122 = vld [vmem:[%s347 + $0x38] sm:$0xff]
        %v5123 = vld [vmem:[%s347 + $0x40] sm:$0xff]
        %v5124 = vld [vmem:[%s347 + $0x48] sm:$0xff]
        %v5125 = vld [vmem:[%s347 + $0x50] sm:$0xff]
        %v5126 = vld [vmem:[%s347 + $0x58] sm:$0xff]
        %v5127 = vld [vmem:[%s347 + $0x60] sm:$0xff]
        %v5128 = vld [vmem:[%s347 + $0x68] sm:$0xff]
        %v5129 = vld [vmem:[%s347 + $0x70] sm:$0xff]
        %v5130 = vld [vmem:[%s347 + $0x78] sm:$0xff]
        %v5131 = vld [vmem:[%s347 + $0x80] sm:$0xff]
        %v5132 = vld [vmem:[%s347 + $0x88] sm:$0xff]
        %v5133 = vld [vmem:[%s347 + $0x90] sm:$0xff]
        %v5134 = vld [vmem:[%s347 + $0x98] sm:$0xff]
        %v5135 = vld [vmem:[%s347 + $0xa0] sm:$0xff]
        %v5136 = vld [vmem:[%s347 + $0xa8] sm:$0xff]
        %v5137 = vld [vmem:[%s347 + $0xb0] sm:$0xff]
        %v5138 = vld [vmem:[%s347 + $0xb8] sm:$0xff]
        %v5139 = vld [vmem:[%s347 + $0xc0] sm:$0xff]
        %v5140 = vld [vmem:[%s347 + $0xc8] sm:$0xff]
        %v5141 = vld [vmem:[%s347 + $0xd0] sm:$0xff]
        %v5142 = vld [vmem:[%s347 + $0xd8] sm:$0xff]
        %v5143 = vld [vmem:[%s347 + $0xe0] sm:$0xff]
        %v5144 = vld [vmem:[%s347 + $0xe8] sm:$0xff]
        %v5145 = vld [vmem:[%s347 + $0xf0] sm:$0xff]
        %v5146 = vld [vmem:[%s347 + $0xf8] sm:$0xff]
        %v5147 = vadd.f32 %v5083, %v5115
        %v5148 = vadd.f32 %v5084, %v5116
        %v5149 = vadd.f32 %v5085, %v5117
        %v5150 = vadd.f32 %v5086, %v5118
        %v5151 = vadd.f32 %v5087, %v5119
        %v5152 = vadd.f32 %v5088, %v5120
        %v5153 = vadd.f32 %v5089, %v5121
        %v5154 = vadd.f32 %v5090, %v5122
        %v5155 = vadd.f32 %v5091, %v5123
        %v5156 = vadd.f32 %v5092, %v5124
        %v5157 = vadd.f32 %v5093, %v5125
        %v5158 = vadd.f32 %v5094, %v5126
        %v5159 = vadd.f32 %v5095, %v5127
        %v5160 = vadd.f32 %v5096, %v5128
        %v5161 = vadd.f32 %v5097, %v5129
        %v5162 = vadd.f32 %v5098, %v5130
        %v5163 = vadd.f32 %v5099, %v5131
        %v5164 = vadd.f32 %v5100, %v5132
        %v5165 = vadd.f32 %v5101, %v5133
        %v5166 = vadd.f32 %v5102, %v5134
        %v5167 = vadd.f32 %v5103, %v5135
        %v5168 = vadd.f32 %v5104, %v5136
        %v5169 = vadd.f32 %v5105, %v5137
        %v5170 = vadd.f32 %v5106, %v5138
        %v5171 = vadd.f32 %v5107, %v5139
        %v5172 = vadd.f32 %v5108, %v5140
        %v5173 = vadd.f32 %v5109, %v5141
        %v5174 = vadd.f32 %v5110, %v5142
        %v5175 = vadd.f32 %v5111, %v5143
        %v5176 = vadd.f32 %v5112, %v5144
        %v5177 = vadd.f32 %v5113, %v5145
        %v5178 = vadd.f32 %v5114, %v5146
        %v5179 = vmax.f32 %v5147, 0.0
        %v5180 = vmax.f32 %v5148, 0.0
        %v5181 = vmax.f32 %v5149, 0.0
        %v5182 = vmax.f32 %v5150, 0.0
        %v5183 = vmax.f32 %v5151, 0.0
        %v5184 = vmax.f32 %v5152, 0.0
        %v5185 = vmax.f32 %v5153, 0.0
        %v5186 = vmax.f32 %v5154, 0.0
        %v5187 = vmax.f32 %v5155, 0.0
        %v5188 = vmax.f32 %v5156, 0.0
        %v5189 = vmax.f32 %v5157, 0.0
        %v5190 = vmax.f32 %v5158, 0.0
        %v5191 = vmax.f32 %v5159, 0.0
        %v5192 = vmax.f32 %v5160, 0.0
        %v5193 = vmax.f32 %v5161, 0.0
        %v5194 = vmax.f32 %v5162, 0.0
        %v5195 = vmax.f32 %v5163, 0.0
        %v5196 = vmax.f32 %v5164, 0.0
        %v5197 = vmax.f32 %v5165, 0.0
        %v5198 = vmax.f32 %v5166, 0.0
        %v5199 = vmax.f32 %v5167, 0.0
        %v5200 = vmax.f32 %v5168, 0.0
        %v5201 = vmax.f32 %v5169, 0.0
        %v5202 = vmax.f32 %v5170, 0.0
        %v5203 = vmax.f32 %v5171, 0.0
        %v5204 = vmax.f32 %v5172, 0.0
        %v5205 = vmax.f32 %v5173, 0.0
        %v5206 = vmax.f32 %v5174, 0.0
        %v5207 = vmax.f32 %v5175, 0.0
        %v5208 = vmax.f32 %v5176, 0.0
        %v5209 = vmax.f32 %v5177, 0.0
        %v5210 = vmax.f32 %v5178, 0.0
        %5211 = vst [vmem:[%s392] sm:$0xff] %v5179
        %5212 = vst [vmem:[%s392 + $0x8] sm:$0xff] %v5180
        %5213 = vst [vmem:[%s392 + $0x10] sm:$0xff] %v5181
        %5214 = vst [vmem:[%s392 + $0x18] sm:$0xff] %v5182
        %5215 = vst [vmem:[%s392 + $0x20] sm:$0xff] %v5183
        %5216 = vst [vmem:[%s392 + $0x28] sm:$0xff] %v5184
        %5217 = vst [vmem:[%s392 + $0x30] sm:$0xff] %v5185
        %5218 = vst [vmem:[%s392 + $0x38] sm:$0xff] %v5186
        %5219 = vst [vmem:[%s392 + $0x40] sm:$0xff] %v5187
        %5220 = vst [vmem:[%s392 + $0x48] sm:$0xff] %v5188
        %5221 = vst [vmem:[%s392 + $0x50] sm:$0xff] %v5189
        %5222 = vst [vmem:[%s392 + $0x58] sm:$0xff] %v5190
        %5223 = vst [vmem:[%s392 + $0x60] sm:$0xff] %v5191
        %5224 = vst [vmem:[%s392 + $0x68] sm:$0xff] %v5192
        %5225 = vst [vmem:[%s392 + $0x70] sm:$0xff] %v5193
        %5226 = vst [vmem:[%s392 + $0x78] sm:$0xff] %v5194
        %5227 = vst [vmem:[%s392 + $0x80] sm:$0xff] %v5195
        %5228 = vst [vmem:[%s392 + $0x88] sm:$0xff] %v5196
        %5229 = vst [vmem:[%s392 + $0x90] sm:$0xff] %v5197
        %5230 = vst [vmem:[%s392 + $0x98] sm:$0xff] %v5198
        %5231 = vst [vmem:[%s392 + $0xa0] sm:$0xff] %v5199
        %5232 = vst [vmem:[%s392 + $0xa8] sm:$0xff] %v5200
        %5233 = vst [vmem:[%s392 + $0xb0] sm:$0xff] %v5201
        %5234 = vst [vmem:[%s392 + $0xb8] sm:$0xff] %v5202
        %5235 = vst [vmem:[%s392 + $0xc0] sm:$0xff] %v5203
        %5236 = vst [vmem:[%s392 + $0xc8] sm:$0xff] %v5204
        %5237 = vst [vmem:[%s392 + $0xd0] sm:$0xff] %v5205
        %5238 = vst [vmem:[%s392 + $0xd8] sm:$0xff] %v5206
        %5239 = vst [vmem:[%s392 + $0xe0] sm:$0xff] %v5207
        %5240 = vst [vmem:[%s392 + $0xe8] sm:$0xff] %v5208
        %5241 = vst [vmem:[%s392 + $0xf0] sm:$0xff] %v5209
        %5242 = vst [vmem:[%s392 + $0xf8] sm:$0xff] %v5210
        %s5243 = sand.u32 %s215, 1
        %s5244 = scalar_lea.sflag [#allocation5], %s5243
        %s5245 = sand.u32 %s215, 1
        %s5246 = smul.addr %s5245, 256
        %s5247 = scalar_lea.vmem [#allocation11], %s5246
        // Predicated region
        $region69: #{tpu_custom_call.1} parent=51 // pred_check
          %p5248 = pneg %p225
        $region70: #{tpu_custom_call.1} parent=51 // pred_check_branch
          %5250 = sbr.rel (%p5248) target = $region72
        $region71: #{tpu_custom_call.1} parent=51 // pred_region
          %s5252 = ssub.s32 4096, 4096
          %5253 = vsyncadd %s5244, %s5252
          %s5254 = smul.addr %s29, 32
          %s5255 = smul.addr %s5254, 128
          %s5256 = scalar_lea.hbm %s8, %s5255
          %s5257 = sshll.u32 %s5247, 4
          %s5258 = int_to_ptr.vmem [resolvable:$true] %s5257
          %5263 = dma.vmem_to_hbm [thread:$0]  %s5258, 4096, %s5256, %s5244, 128, 128, 8
        $region72: #{tpu_custom_call.1} parent=51 // pred_fallthru
          _
      $region52: #{tpu_custom_call.1} parent=5 // pred_fallthru
        _
      %p5264 = scmp.le.s32.totalorder 2, %s24
      // Predicated region
      $region73: #{tpu_custom_call.1} parent=5 // pred_check
        %p5265 = pneg %p5264
      $region74: #{tpu_custom_call.1} parent=5 // pred_check_branch
        %5267 = sbr.rel (%p5265) target = $region76
      $region75: #{tpu_custom_call.1} parent=5 // pred_region
        %s5268 = ssub.s32 %s24, 2
        // Predicated region
        $region77: #{tpu_custom_call.1} parent=75 // pred_check
          %p5269 = pneg %p231
        $region78: #{tpu_custom_call.1} parent=75 // pred_check_branch
          %5271 = sbr.rel (%p5269) target = $region80
        $region79: #{tpu_custom_call.1} parent=75 // pred_region
          %s5272 = sand.u32 %s216, 1
          %s5273 = scalar_lea.sflag [#allocation5], %s5272
          %s5274 = sand.u32 %s216, 1
          %s5275 = smul.addr %s5274, 256
          %s5276 = scalar_lea.vmem [#allocation11], %s5275
          %5277 = dma.done %s5273, 4096
        $region80: #{tpu_custom_call.1} parent=75 // pred_fallthru
          _
      $region76: #{tpu_custom_call.1} parent=5 // pred_fallthru
        _
    $region6: #{tpu_custom_call.1} parent=1 // loop_footer
      %s28 = sadd.s32 1, %s24
    $region7: #{tpu_custom_call.1} parent=1 // loop_footer_branch
      %23 = sbr.rel target = $region3
    $region8: #{tpu_custom_call.1} parent=1 // loop_exit
      _
    %5278 = vsyncpa [#allocation4], 1
    %s5279 = scalar_lea.sflag [#allocation4], 1
    %5280 = vsyncpa %s5279, 1
    %5281 = vsyncpa [#allocation7], 1
    %s5282 = scalar_lea.sflag [#allocation7], 1
    %5283 = vsyncpa %s5282, 1
    %5284 = vsyncpa [#allocation10], 1
    %5285 = vsyncpa [#allocation5], 1
    %s5286 = scalar_lea.sflag [#allocation5], 1
    %5287 = vsyncpa %s5286, 1

</llo_original>
